<compile_context>
chip_gen: v6e
topology: v6e:2x2x1
jax: 0.10.0
libtpu: 0.0.40
codegen_flags: <defaults>
</compile_context>

<pallas_src>
import math

import jax
import jax.numpy as jnp
from jax import lax
from jax.experimental import pallas as pl
from jax.experimental.pallas import tpu as pltpu

# ----------------------------- small config ---------------------------------
VOCAB = 100
HIDDEN = 32              # config.hidden_size
N_LAYERS = 2
N_HEADS = 2
HEAD_DIM = HIDDEN // N_HEADS
INTERMEDIATE = 64
MAX_POS = 16
TYPE_VOCAB = 2
NUM_LABELS = 3           # config.num_labels
LSTM_H = HIDDEN // 2     # bidirectional LSTM hidden size per direction
LN_EPS = 1e-12
BATCH = 2
SEQ = 8
TOKENS = BATCH * SEQ
LANES = 128              # lane-dense output width; also 8 * LSTM_H (packed gates)
BLK = 128                # per-head lane-aligned block inside the fused projection
WIDE_LANES = 6 * BLK     # [Q_h0 | K_h0 | Q_h1 | K_h1 | VO_h0 | VO_h1]

assert 8 * LSTM_H == LANES, "packed LSTM gate layout assumes 8*LSTM_H == 128"

# -------- wide slab layout: per layer 40 rows (32 weight rows + 1 bias row) --
W_LAYER_ROWS = 40
WIDE_ROWS = N_LAYERS * W_LAYER_ROWS

# -------- narrow ([*,128]) slab row map --------------------------------------
N_EMB_LN_G = 0
N_EMB_LN_B = 1
N_FWD_MASK = 2                      # 1.0 on forward-direction gate lanes
N_GATE_SC = 3                       # 1.0 on g-gate lanes, 0.5 elsewhere
N_GATE_BS = 4                       # 0.0 on g-gate lanes, 0.5 elsewhere
N_LAYER_BASE = 8
N_LAYER_ROWS = 104
L_AO_B, L_LN1_G, L_LN1_B, L_I_B, L_O_B, L_LN2_G, L_LN2_B = 0, 1, 2, 3, 4, 5, 6
L_I_W = 8                           # +8  .. +40   intermediate weight [32,64]
L_O_W = 40                          # +40 .. +104  output weight       [64,32]
N_LSTM_BASE = N_LAYER_BASE + N_LAYERS * N_LAYER_ROWS   # 216
N_LSTM_WIH = N_LSTM_BASE                                # [32,128]
N_LSTM_BIH = N_LSTM_BASE + 32                           # [1,128]
N_LSTM_WHH = N_LSTM_BASE + 40                           # [32,128] block-diag
N_CLS_W = N_LSTM_BASE + 72                              # [32,128] lane-padded
N_CLS_B = N_CLS_W + 32                                  # [1,128]
N_PF = 328                                              # fwd time-major perm  [16,16]
N_PB = N_PF + TOKENS                                    # bwd time-major perm  [16,16]
N_SEL = N_PB + TOKENS                                   # CLS row selector     [2,16]
N_EYE = 368                                             # identity lane-pad    [32,128]
NARROW_ROWS = N_EYE + HIDDEN                            # 400


# ----------------------------- fused Pallas kernel ---------------------------
def _fused_forward_kernel(emb_ref, mask2d_ref, wide_ref, nar_ref, logits_ref, cls_ref):
    f32 = jnp.float32
    T = TOKENS

    def dot(a, b):
        return jnp.dot(a, b, preferred_element_type=f32)

    def dot_t(a, b):  # a @ b.T
        return lax.dot_general(a, b, (((1,), (1,)), ((), ())), preferred_element_type=f32)

    def vrow(r, w=LANES):
        return nar_ref[r:r + 1, 0:w]

    def layer_norm(x, g, b):
        mu = jnp.mean(x, axis=-1, keepdims=True)
        var = jnp.mean((x - mu) ** 2, axis=-1, keepdims=True)
        return (x - mu) * lax.rsqrt(var + LN_EPS) * g + b

    # -------- BERT embeddings LayerNorm -------------------------------------
    x = layer_norm(emb_ref[...], vrow(N_EMB_LN_G, HIDDEN), vrow(N_EMB_LN_B, HIDDEN))
    mask2d = mask2d_ref[...]                                            # [T, T]
    scale = 1.0 / math.sqrt(HEAD_DIM)

    # -------- 2 transformer layers -------------------------------------------
    for l in range(N_LAYERS):
        wb = l * W_LAYER_ROWS
        nb = N_LAYER_BASE + l * N_LAYER_ROWS

        # fused projection: per-head [Q | K | V@Wo] at 128-lane-aligned blocks,
        # zero-padded, so every operand below is a whole-vreg slice (no rotates).
        proj = (dot(x, wide_ref[wb:wb + HIDDEN, :])
                + wide_ref[wb + HIDDEN:wb + HIDDEN + 1, :])             # [T, 768]

        attn = vrow(nb + L_AO_B, LANES)                                 # Wo bias (lanes 0:32)
        for h in range(N_HEADS):
            q = proj[:, (2 * h) * BLK:(2 * h + 1) * BLK]                # [T, 128]
            k = proj[:, (2 * h + 1) * BLK:(2 * h + 2) * BLK]
            vo = proj[:, (4 + h) * BLK:(5 + h) * BLK]                   # V@Wo, real lanes 0:32
            s = dot_t(q, k) * scale + mask2d                            # [T, T]
            p = jnp.exp(s - jnp.max(s, axis=-1, keepdims=True))
            p = p / jnp.sum(p, axis=-1, keepdims=True)                  # exact softmax
            attn = attn + dot(p, vo)                                    # already in output space

        x = layer_norm(attn[:, 0:HIDDEN] + x,
                       vrow(nb + L_LN1_G, HIDDEN), vrow(nb + L_LN1_B, HIDDEN))

        inter = (dot(x, nar_ref[nb + L_I_W:nb + L_I_W + HIDDEN, 0:INTERMEDIATE])
                 + vrow(nb + L_I_B, INTERMEDIATE))
        inter = 0.5 * inter * (1.0 + lax.erf(inter * (1.0 / math.sqrt(2.0))))
        ffn = (dot(inter, nar_ref[nb + L_O_W:nb + L_O_W + INTERMEDIATE, 0:HIDDEN])
               + vrow(nb + L_O_B, HIDDEN))
        x = layer_norm(ffn + x,
                       vrow(nb + L_LN2_G, HIDDEN), vrow(nb + L_LN2_B, HIDDEN))

    seq_out = x                                                         # [T, H]

    # -------- cls_output = sequence_output[:, 0, :] (one full-tile store) ----
    sel_cls = nar_ref[N_SEL:N_SEL + BATCH, 0:T]                         # [B, T] one-hot rows
    eye_pad = nar_ref[N_EYE:N_EYE + HIDDEN, :]                          # [H, 128] identity pad
    cls_ref[...] = dot(dot(sel_cls, seq_out), eye_pad)                  # [B, 128] lane-dense

    # -------- bidirectional LSTM ---------------------------------------------
    # Packed gate lanes: [i_f i_b | f_f f_b | g_f g_b | o_f o_b], chunks of 16.
    w_ih = nar_ref[N_LSTM_WIH:N_LSTM_WIH + HIDDEN, :]                   # [32, 128]
    b_ih = nar_ref[N_LSTM_BIH:N_LSTM_BIH + 1, :]                        # [1, 128]
    w_hh = nar_ref[N_LSTM_WHH:N_LSTM_WHH + 2 * LSTM_H, :]               # [32, 128] block-diag

    gates_in = dot(seq_out, w_ih) + b_ih                                # [T, 128]

    # One-time time-major + direction-combined rearrangement, hoisted off the
    # recurrence: two constant permutation matmuls (idle MXU) + one lane blend.
    pf = nar_ref[N_PF:N_PF + T, 0:T]
    pb = nar_ref[N_PB:N_PB + T, 0:T]
    fm = vrow(N_FWD_MASK)                                               # 1.0 on fwd lanes
    g_tm = fm * dot(pf, gates_in) + (1.0 - fm) * dot(pb, gates_in)      # [T, 128] time-major

    sc = vrow(N_GATE_SC)                                                # 1.0 on g lanes else 0.5
    bs = vrow(N_GATE_BS)                                                # 0.0 on g lanes else 0.5
    G2 = 2 * LSTM_H

    h_cat = jnp.zeros((BATCH, G2), f32)                                 # [fwd | bwd]
    c_cat = jnp.zeros((BATCH, G2), f32)
    h_t0 = h_cat
    for t in range(SEQ):
        g_in = g_tm[t * BATCH:(t + 1) * BATCH, :]                       # [B, 128], off the chain
        gates = g_in + dot(h_cat, w_hh)                                 # [B, 128]
        th = jnp.tanh(gates * sc)                                       # single EUP pass
        act = th * sc + bs                                              # sigmoid(x)=0.5*tanh(x/2)+0.5
        i_g = act[:, 0:G2]
        f_g = act[:, G2:2 * G2]
        g_g = act[:, 2 * G2:3 * G2]
        o_g = act[:, 3 * G2:4 * G2]
        c_cat = f_g * c_cat + i_g * g_g
        h_cat = o_g * jnp.tanh(c_cat)
        if t == 0:
            h_t0 = h_cat   # forward hidden at time 0 -> lstm_out[:, 0, :LSTM_H]

    # lstm_out[:, 0] = [h_fwd(t=0) | h_bwd final carry] (PyTorch bi-LSTM semantics)
    pm = fm[:, 0:G2]                                                    # [1, 32]: 1 on fwd half
    pooled = pm * h_t0 + (1.0 - pm) * h_cat                             # [B, 2*LSTM_H]

    # -------- classifier: lane-dense padded logits, one full-tile store ------
    logits_ref[...] = (dot(pooled, nar_ref[N_CLS_W:N_CLS_W + HIDDEN, :])
                       + nar_ref[N_CLS_B:N_CLS_B + 1, :])               # [B, 128]


def _full_block_spec(a):
    nd = a.ndim
    return pl.BlockSpec(a.shape, lambda i, nd=nd: (0,) * nd)


# ----------------------------- model wrapper ---------------------------------
def forward(packed, input_ids, attention_mask, token_type_ids, position_ids):
    b, s = input_ids.shape

    # TODO(synk): embedding-table gathers have no tiled-matmul hot path; plain-JAX glue.
    emb = (jnp.take(packed["word_emb"], input_ids, axis=0)
           + jnp.take(packed["pos_emb"], position_ids, axis=0)
           + jnp.take(packed["type_emb"], token_type_ids, axis=0))
    emb2 = emb.reshape(b * s, HIDDEN).astype(jnp.float32)

    # Additive attention bias over the flattened [B*S] key axis: HF-style
    # (1-mask)*-1e4 for same-batch keys, -1e9 for cross-batch keys so a single
    # flattened softmax reproduces per-batch attention exactly.
    mask_flat = ((1.0 - attention_mask.astype(jnp.float32)) * -10000.0).reshape(b * s)
    batch_id = jnp.repeat(jnp.arange(b, dtype=jnp.int32), s)
    same = batch_id[:, None] == batch_id[None, :]
    mask2d = jnp.where(same, mask_flat[None, :], -1e9).astype(jnp.float32)

    args = (emb2, mask2d, packed["wide"], packed["narrow"])

    logits_pad, cls_pad = pl.pallas_call(
        _fused_forward_kernel,
        out_shape=(jax.ShapeDtypeStruct((b, LANES), jnp.float32),
                   jax.ShapeDtypeStruct((b, LANES), jnp.float32)),
        grid=(1,),
        in_specs=[_full_block_spec(a) for a in args],
        out_specs=(pl.BlockSpec((b, LANES), lambda i: (0, 0)),
                   pl.BlockSpec((b, LANES), lambda i: (0, 0))),
        compiler_params=pltpu.CompilerParams(dimension_semantics=("arbitrary",)),
        cost_estimate=pl.CostEstimate(flops=3_000_000, transcendentals=6_000,
                                      bytes_accessed=480_000),
    )(*args)

    logits = logits_pad[:, :NUM_LABELS]
    cls_output = cls_pad[:, :HIDDEN]
    return logits, cls_output


# ----------------------------- parameters ------------------------------------
def init_params(key):
    keys = iter(jax.random.split(key, 256))

    def nrm(shape, scale=0.02):
        return scale * jax.random.normal(next(keys), shape, dtype=jnp.float32)

    p = {
        "word_emb": nrm((VOCAB, HIDDEN)),
        "pos_emb": nrm((MAX_POS, HIDDEN)),
        "type_emb": nrm((TYPE_VOCAB, HIDDEN)),
        "emb_ln_g": jnp.ones((HIDDEN,), jnp.float32),
        "emb_ln_b": jnp.zeros((HIDDEN,), jnp.float32),
        "layers": [],
    }
    for _ in range(N_LAYERS):
        p["layers"].append(dict(
            q_w=nrm((HIDDEN, HIDDEN)), q_b=jnp.zeros((HIDDEN,), jnp.float32),
            k_w=nrm((HIDDEN, HIDDEN)), k_b=jnp.zeros((HIDDEN,), jnp.float32),
            v_w=nrm((HIDDEN, HIDDEN)), v_b=jnp.zeros((HIDDEN,), jnp.float32),
            ao_w=nrm((HIDDEN, HIDDEN)), ao_b=jnp.zeros((HIDDEN,), jnp.float32),
            ln1_g=jnp.ones((HIDDEN,), jnp.float32), ln1_b=jnp.zeros((HIDDEN,), jnp.float32),
            i_w=nrm((HIDDEN, INTERMEDIATE)), i_b=jnp.zeros((INTERMEDIATE,), jnp.float32),
            o_w=nrm((INTERMEDIATE, HIDDEN)), o_b=jnp.zeros((HIDDEN,), jnp.float32),
            ln2_g=jnp.ones((HIDDEN,), jnp.float32), ln2_b=jnp.zeros((HIDDEN,), jnp.float32),
        ))
    k = 1.0 / math.sqrt(LSTM_H)
    p["lstm"] = dict(
        # PyTorch-shaped LSTM params: W_ih [4*Hh, H], W_hh [4*Hh, Hh], gate order i,f,g,o
        w_ih_f=nrm((4 * LSTM_H, HIDDEN), scale=k), w_hh_f=nrm((4 * LSTM_H, LSTM_H), scale=k),
        b_ih_f=nrm((4 * LSTM_H,), scale=k), b_hh_f=nrm((4 * LSTM_H,), scale=k),
        w_ih_b=nrm((4 * LSTM_H, HIDDEN), scale=k), w_hh_b=nrm((4 * LSTM_H, LSTM_H), scale=k),
        b_ih_b=nrm((4 * LSTM_H,), scale=k), b_hh_b=nrm((4 * LSTM_H,), scale=k),
    )
    p["cls_w"] = nrm((HIDDEN, NUM_LABELS))
    p["cls_b"] = jnp.zeros((NUM_LABELS,), jnp.float32)
    return p


def pack_params(p):
    """One-time packing of all parameters into two contiguous VMEM slabs:
      wide [80,768]  : fused per-layer attention projection (Q/K/V@Wo per head,
                       each at a 128-lane-aligned zero-padded block) + its bias.
      narrow [400,128]: LayerNorms, FFN weights, bi-LSTM packed-gate weights,
                       classifier, plus constant permutation/selection matrices
                       and LSTM lane masks.  All layout work is hoisted here."""
    f32 = jnp.float32
    d = HEAD_DIM
    T = TOKENS

    # -------------------------- wide slab -----------------------------------
    wide = jnp.zeros((WIDE_ROWS, WIDE_LANES), f32)
    for l, L in enumerate(p["layers"]):
        w = jnp.zeros((HIDDEN, WIDE_LANES), f32)
        b = jnp.zeros((WIDE_LANES,), f32)
        for h in range(N_HEADS):
            sl = slice(h * d, (h + 1) * d)
            vo_w = L["v_w"][:, sl] @ L["ao_w"][sl, :]        # fold output proj into V
            vo_b = L["v_b"][sl] @ L["ao_w"][sl, :]
            w = w.at[:, (2 * h) * BLK:(2 * h) * BLK + d].set(L["q_w"][:, sl])
            w = w.at[:, (2 * h + 1) * BLK:(2 * h + 1) * BLK + d].set(L["k_w"][:, sl])
            w = w.at[:, (4 + h) * BLK:(4 + h) * BLK + HIDDEN].set(vo_w)
            b = b.at[(2 * h) * BLK:(2 * h) * BLK + d].set(L["q_b"][sl])
            b = b.at[(2 * h + 1) * BLK:(2 * h + 1) * BLK + d].set(L["k_b"][sl])
            b = b.at[(4 + h) * BLK:(4 + h) * BLK + HIDDEN].set(vo_b)
        base = l * W_LAYER_ROWS
        wide = wide.at[base:base + HIDDEN, :].set(w)
        wide = wide.at[base + HIDDEN, :].set(b)

    # -------------------------- narrow slab ---------------------------------
    nar = jnp.zeros((NARROW_ROWS, LANES), f32)
    nar = nar.at[N_EMB_LN_G, :HIDDEN].set(p["emb_ln_g"])
    nar = nar.at[N_EMB_LN_B, :HIDDEN].set(p["emb_ln_b"])

    lane = jnp.arange(LANES)
    fm = ((lane % (2 * LSTM_H)) < LSTM_H).astype(f32)        # forward-direction lanes
    is_g = (lane >= 4 * LSTM_H) & (lane < 6 * LSTM_H)        # cell-candidate gate lanes
    nar = nar.at[N_FWD_MASK, :].set(fm)
    nar = nar.at[N_GATE_SC, :].set(jnp.where(is_g, 1.0, 0.5).astype(f32))
    nar = nar.at[N_GATE_BS, :].set(jnp.where(is_g, 0.0, 0.5).astype(f32))

    for l, L in enumerate(p["layers"]):
        nb = N_LAYER_BASE + l * N_LAYER_ROWS
        nar = nar.at[nb + L_AO_B, :HIDDEN].set(L["ao_b"])
        nar = nar.at[nb + L_LN1_G, :HIDDEN].set(L["ln1_g"])
        nar = nar.at[nb + L_LN1_B, :HIDDEN].set(L["ln1_b"])
        nar = nar.at[nb + L_I_B, :INTERMEDIATE].set(L["i_b"])
        nar = nar.at[nb + L_O_B, :HIDDEN].set(L["o_b"])
        nar = nar.at[nb + L_LN2_G, :HIDDEN].set(L["ln2_g"])
        nar = nar.at[nb + L_LN2_B, :HIDDEN].set(L["ln2_b"])
        nar = nar.at[nb + L_I_W:nb + L_I_W + HIDDEN, :INTERMEDIATE].set(L["i_w"])
        nar = nar.at[nb + L_O_W:nb + L_O_W + INTERMEDIATE, :HIDDEN].set(L["o_w"])

    # ---- bi-LSTM packing: lane layout [i_f i_b | f_f f_b | g_f g_b | o_f o_b]
    lp = p["lstm"]
    Hh = LSTM_H
    w_cols, b_cols = [], []
    for g in range(4):  # PyTorch gate order i, f, g, o
        for (w_ih_d, b_ih_d, b_hh_d) in ((lp["w_ih_f"], lp["b_ih_f"], lp["b_hh_f"]),
                                         (lp["w_ih_b"], lp["b_ih_b"], lp["b_hh_b"])):
            w_cols.append(w_ih_d[g * Hh:(g + 1) * Hh, :].T)          # [H, Hh]
            b_cols.append((b_ih_d + b_hh_d)[g * Hh:(g + 1) * Hh])
    nar = nar.at[N_LSTM_WIH:N_LSTM_WIH + HIDDEN, :].set(jnp.concatenate(w_cols, axis=1))
    nar = nar.at[N_LSTM_BIH, :].set(jnp.concatenate(b_cols))

    w_hh = jnp.zeros((2 * Hh, 8 * Hh), f32)                          # block-diagonal
    for g in range(4):
        w_hh = w_hh.at[0:Hh, g * 2 * Hh: g * 2 * Hh + Hh].set(
            lp["w_hh_f"][g * Hh:(g + 1) * Hh, :].T)
        w_hh = w_hh.at[Hh:2 * Hh, g * 2 * Hh + Hh:(g + 1) * 2 * Hh].set(
            lp["w_hh_b"][g * Hh:(g + 1) * Hh, :].T)
    nar = nar.at[N_LSTM_WHH:N_LSTM_WHH + 2 * Hh, :].set(w_hh)

    # ---- classifier padded to 128 lanes ----
    nar = nar.at[N_CLS_W:N_CLS_W + HIDDEN, :NUM_LABELS].set(p["cls_w"])
    nar = nar.at[N_CLS_B, :NUM_LABELS].set(p["cls_b"])

    # ---- constant permutation / selection matrices --------------------------
    rows = jnp.arange(T)
    t_idx = rows // BATCH
    b_idx = rows % BATCH
    cols = jnp.arange(T)[None, :]
    pf = (cols == (b_idx * SEQ + t_idx)[:, None]).astype(f32)                 # [T, T]
    pb = (cols == (b_idx * SEQ + (SEQ - 1 - t_idx))[:, None]).astype(f32)     # [T, T]
    sel_cls = (cols == (jnp.arange(BATCH) * SEQ)[:, None]).astype(f32)        # [B, T]
    eye_pad = (jnp.arange(LANES)[None, :] == jnp.arange(HIDDEN)[:, None]).astype(f32)
    nar = nar.at[N_PF:N_PF + T, :T].set(pf)
    nar = nar.at[N_PB:N_PB + T, :T].set(pb)
    nar = nar.at[N_SEL:N_SEL + BATCH, :T].set(sel_cls)
    nar = nar.at[N_EYE:N_EYE + HIDDEN, :].set(eye_pad)

    return dict(word_emb=p["word_emb"], pos_emb=p["pos_emb"], type_emb=p["type_emb"],
                wide=wide, narrow=nar)


# ----------------------------- main -------------------------------------------
if __name__ == "__main__":
    root = jax.random.PRNGKey(0)
    pkey, dkey = jax.random.split(root)
    params = init_params(pkey)
    packed = pack_params(params)   # one-time packing, hoisted out of forward()

    input_ids = jax.random.randint(dkey, (BATCH, SEQ), 0, VOCAB, dtype=jnp.int32)
    attention_mask = jnp.ones((BATCH, SEQ), jnp.int32).at[1, 6:].set(0)
    token_type_ids = jnp.zeros((BATCH, SEQ), jnp.int32)
    position_ids = jnp.broadcast_to(jnp.arange(SEQ, dtype=jnp.int32), (BATCH, SEQ))

    logits, cls_output = jax.jit(forward)(
        packed, input_ids, attention_mask, token_type_ids, position_ids)
    jax.block_until_ready((logits, cls_output))

    assert logits.shape == (BATCH, NUM_LABELS)
    assert cls_output.shape == (BATCH, HIDDEN)
    assert jnp.all(jnp.isfinite(logits)) and jnp.all(jnp.isfinite(cls_output))
    print("KERNEL_OK")
</pallas_src>

<mosaic_0001>
module attributes {stable_mosaic.version = 11 : i64} {
  func.func @_fused_forward_kernel(%arg0: i32, %arg1: memref<16x32xf32, #tpu.memory_space<vmem>>, %arg2: memref<16x16xf32, #tpu.memory_space<vmem>>, %arg3: memref<80x768xf32, #tpu.memory_space<vmem>>, %arg4: memref<400x128xf32, #tpu.memory_space<vmem>>, %arg5: memref<2x128xf32, #tpu.memory_space<vmem>>, %arg6: memref<2x128xf32, #tpu.memory_space<vmem>>) attributes {dimension_semantics = [#tpu.dimension_semantics<arbitrary>], iteration_bounds = array<i64: 1>, scalar_prefetch = 0 : i64, scratch_operands = 0 : i64, tpu.core_type = #tpu.core_type<tc>, window_params = [{pipeline_mode = #tpu.pipeline_mode<synchronous>, transform_indices = @transform_0, window_bounds = array<i64: 16, 32>}, {pipeline_mode = #tpu.pipeline_mode<synchronous>, transform_indices = @transform_1, window_bounds = array<i64: 16, 16>}, {pipeline_mode = #tpu.pipeline_mode<synchronous>, transform_indices = @transform_2, window_bounds = array<i64: 80, 768>}, {pipeline_mode = #tpu.pipeline_mode<synchronous>, transform_indices = @transform_3, window_bounds = array<i64: 400, 128>}, {pipeline_mode = #tpu.pipeline_mode<synchronous>, transform_indices = @transform_4, window_bounds = array<i64: 2, 128>}, {pipeline_mode = #tpu.pipeline_mode<synchronous>, transform_indices = @transform_5, window_bounds = array<i64: 2, 128>}]} {
    %c0 = arith.constant 0 : index
    %c0_0 = arith.constant 0 : index
    %0 = vector.load %arg1[%c0, %c0_0] : memref<16x32xf32, #tpu.memory_space<vmem>>, vector<16x32xf32>
    %c0_1 = arith.constant 0 : index
    %c0_2 = arith.constant 0 : index
    %1 = vector.load %arg4[%c0_1, %c0_2] : memref<400x128xf32, #tpu.memory_space<vmem>>, vector<1x32xf32>
    %c1 = arith.constant 1 : index
    %c0_3 = arith.constant 0 : index
    %2 = vector.load %arg4[%c1, %c0_3] : memref<400x128xf32, #tpu.memory_space<vmem>>, vector<1x32xf32>
    %cst = arith.constant dense<0.000000e+00> : vector<16xf32>
    %3 = vector.multi_reduction <add>, %0, %cst [1] : vector<16x32xf32> to vector<16xf32>
    %4 = vector.shape_cast %3 : vector<16xf32> to vector<16x1xf32>
    %cst_4 = arith.constant 3.200000e+01 : f32
    %5 = vector.broadcast %cst_4 : f32 to vector<16x1xf32>
    %6 = arith.divf %4, %5 : vector<16x1xf32>
    %7 = vector.broadcast %6 : vector<16x1xf32> to vector<16x32xf32>
    %8 = arith.subf %0, %7 : vector<16x32xf32>
    %9 = arith.mulf %8, %8 : vector<16x32xf32>
    %cst_5 = arith.constant dense<0.000000e+00> : vector<16xf32>
    %10 = vector.multi_reduction <add>, %9, %cst_5 [1] : vector<16x32xf32> to vector<16xf32>
    %11 = vector.shape_cast %10 : vector<16xf32> to vector<16x1xf32>
    %cst_6 = arith.constant 3.200000e+01 : f32
    %12 = vector.broadcast %cst_6 : f32 to vector<16x1xf32>
    %13 = arith.divf %11, %12 : vector<16x1xf32>
    %14 = vector.broadcast %6 : vector<16x1xf32> to vector<16x32xf32>
    %15 = arith.subf %0, %14 : vector<16x32xf32>
    %cst_7 = arith.constant 9.99999996E-13 : f32
    %16 = vector.broadcast %cst_7 : f32 to vector<16x1xf32>
    %17 = arith.addf %13, %16 : vector<16x1xf32>
    %18 = math.rsqrt %17 : vector<16x1xf32>
    %19 = vector.broadcast %18 : vector<16x1xf32> to vector<16x32xf32>
    %20 = arith.mulf %15, %19 : vector<16x32xf32>
    %21 = vector.broadcast %1 : vector<1x32xf32> to vector<16x32xf32>
    %22 = arith.mulf %20, %21 : vector<16x32xf32>
    %23 = vector.broadcast %2 : vector<1x32xf32> to vector<16x32xf32>
    %24 = arith.addf %22, %23 : vector<16x32xf32>
    %c0_8 = arith.constant 0 : index
    %c0_9 = arith.constant 0 : index
    %25 = vector.load %arg2[%c0_8, %c0_9] : memref<16x16xf32, #tpu.memory_space<vmem>>, vector<16x16xf32>
    %c0_10 = arith.constant 0 : index
    %c0_11 = arith.constant 0 : index
    %26 = vector.load %arg3[%c0_10, %c0_11] : memref<80x768xf32, #tpu.memory_space<vmem>>, vector<32x768xf32>
    %cst_12 = arith.constant dense<0.000000e+00> : vector<16x768xf32>
    %27 = tpu.matmul %24, %26, %cst_12 {dimension_numbers = #tpu.dot_dimension_numbers<[1], [0], [0], [1], [0, 0, 1, 1], [], []>} : vector<16x32xf32>, vector<32x768xf32>, vector<16x768xf32> -> vector<16x768xf32>
    %c32 = arith.constant 32 : index
    %c0_13 = arith.constant 0 : index
    %28 = vector.load %arg3[%c32, %c0_13] : memref<80x768xf32, #tpu.memory_space<vmem>>, vector<1x768xf32>
    %29 = vector.broadcast %28 : vector<1x768xf32> to vector<16x768xf32>
    %30 = arith.addf %27, %29 : vector<16x768xf32>
    %c8 = arith.constant 8 : index
    %c0_14 = arith.constant 0 : index
    %31 = vector.load %arg4[%c8, %c0_14] : memref<400x128xf32, #tpu.memory_space<vmem>>, vector<1x128xf32>
    %32 = vector.extract_strided_slice %30 {offsets = [0, 0], sizes = [16, 128], strides = [1, 1]} : vector<16x768xf32> to vector<16x128xf32>
    %33 = vector.extract_strided_slice %30 {offsets = [0, 128], sizes = [16, 128], strides = [1, 1]} : vector<16x768xf32> to vector<16x128xf32>
    %34 = vector.extract_strided_slice %30 {offsets = [0, 512], sizes = [16, 128], strides = [1, 1]} : vector<16x768xf32> to vector<16x128xf32>
    %cst_15 = arith.constant dense<0.000000e+00> : vector<16x16xf32>
    %35 = tpu.matmul %32, %33, %cst_15 {dimension_numbers = #tpu.dot_dimension_numbers<[1], [1], [0], [0], [0, 0, 1, 0], [], []>} : vector<16x128xf32>, vector<16x128xf32>, vector<16x16xf32> -> vector<16x16xf32>
    %cst_16 = arith.constant 2.500000e-01 : f32
    %36 = vector.broadcast %cst_16 : f32 to vector<16x16xf32>
    %37 = arith.mulf %35, %36 : vector<16x16xf32>
    %38 = arith.addf %37, %25 : vector<16x16xf32>
    %cst_17 = arith.constant dense<0xFF800000> : vector<16xf32>
    %39 = vector.multi_reduction <maximumf>, %38, %cst_17 [1] : vector<16x16xf32> to vector<16xf32>
    %40 = vector.shape_cast %39 : vector<16xf32> to vector<16x1xf32>
    %41 = vector.broadcast %40 : vector<16x1xf32> to vector<16x16xf32>
    %42 = arith.subf %38, %41 : vector<16x16xf32>
    %43 = math.exp %42 : vector<16x16xf32>
    %cst_18 = arith.constant dense<0.000000e+00> : vector<16xf32>
    %44 = vector.multi_reduction <add>, %43, %cst_18 [1] : vector<16x16xf32> to vector<16xf32>
    %45 = vector.shape_cast %44 : vector<16xf32> to vector<16x1xf32>
    %46 = vector.broadcast %45 : vector<16x1xf32> to vector<16x16xf32>
    %47 = arith.divf %43, %46 : vector<16x16xf32>
    %cst_19 = arith.constant dense<0.000000e+00> : vector<16x128xf32>
    %48 = tpu.matmul %47, %34, %cst_19 {dimension_numbers = #tpu.dot_dimension_numbers<[1], [0], [0], [1], [0, 0, 1, 1], [], []>} : vector<16x16xf32>, vector<16x128xf32>, vector<16x128xf32> -> vector<16x128xf32>
    %49 = vector.broadcast %31 : vector<1x128xf32> to vector<16x128xf32>
    %50 = arith.addf %49, %48 : vector<16x128xf32>
    %51 = vector.extract_strided_slice %30 {offsets = [0, 256], sizes = [16, 128], strides = [1, 1]} : vector<16x768xf32> to vector<16x128xf32>
    %52 = vector.extract_strided_slice %30 {offsets = [0, 384], sizes = [16, 128], strides = [1, 1]} : vector<16x768xf32> to vector<16x128xf32>
    %53 = vector.extract_strided_slice %30 {offsets = [0, 640], sizes = [16, 128], strides = [1, 1]} : vector<16x768xf32> to vector<16x128xf32>
    %cst_20 = arith.constant dense<0.000000e+00> : vector<16x16xf32>
    %54 = tpu.matmul %51, %52, %cst_20 {dimension_numbers = #tpu.dot_dimension_numbers<[1], [1], [0], [0], [0, 0, 1, 0], [], []>} : vector<16x128xf32>, vector<16x128xf32>, vector<16x16xf32> -> vector<16x16xf32>
    %cst_21 = arith.constant 2.500000e-01 : f32
    %55 = vector.broadcast %cst_21 : f32 to vector<16x16xf32>
    %56 = arith.mulf %54, %55 : vector<16x16xf32>
    %57 = arith.addf %56, %25 : vector<16x16xf32>
    %cst_22 = arith.constant dense<0xFF800000> : vector<16xf32>
    %58 = vector.multi_reduction <maximumf>, %57, %cst_22 [1] : vector<16x16xf32> to vector<16xf32>
    %59 = vector.shape_cast %58 : vector<16xf32> to vector<16x1xf32>
    %60 = vector.broadcast %59 : vector<16x1xf32> to vector<16x16xf32>
    %61 = arith.subf %57, %60 : vector<16x16xf32>
    %62 = math.exp %61 : vector<16x16xf32>
    %cst_23 = arith.constant dense<0.000000e+00> : vector<16xf32>
    %63 = vector.multi_reduction <add>, %62, %cst_23 [1] : vector<16x16xf32> to vector<16xf32>
    %64 = vector.shape_cast %63 : vector<16xf32> to vector<16x1xf32>
    %65 = vector.broadcast %64 : vector<16x1xf32> to vector<16x16xf32>
    %66 = arith.divf %62, %65 : vector<16x16xf32>
    %cst_24 = arith.constant dense<0.000000e+00> : vector<16x128xf32>
    %67 = tpu.matmul %66, %53, %cst_24 {dimension_numbers = #tpu.dot_dimension_numbers<[1], [0], [0], [1], [0, 0, 1, 1], [], []>} : vector<16x16xf32>, vector<16x128xf32>, vector<16x128xf32> -> vector<16x128xf32>
    %68 = arith.addf %50, %67 : vector<16x128xf32>
    %69 = vector.extract_strided_slice %68 {offsets = [0, 0], sizes = [16, 32], strides = [1, 1]} : vector<16x128xf32> to vector<16x32xf32>
    %70 = arith.addf %69, %24 : vector<16x32xf32>
    %c9 = arith.constant 9 : index
    %c0_25 = arith.constant 0 : index
    %71 = vector.load %arg4[%c9, %c0_25] : memref<400x128xf32, #tpu.memory_space<vmem>>, vector<1x32xf32>
    %c10 = arith.constant 10 : index
    %c0_26 = arith.constant 0 : index
    %72 = vector.load %arg4[%c10, %c0_26] : memref<400x128xf32, #tpu.memory_space<vmem>>, vector<1x32xf32>
    %cst_27 = arith.constant dense<0.000000e+00> : vector<16xf32>
    %73 = vector.multi_reduction <add>, %70, %cst_27 [1] : vector<16x32xf32> to vector<16xf32>
    %74 = vector.shape_cast %73 : vector<16xf32> to vector<16x1xf32>
    %cst_28 = arith.constant 3.200000e+01 : f32
    %75 = vector.broadcast %cst_28 : f32 to vector<16x1xf32>
    %76 = arith.divf %74, %75 : vector<16x1xf32>
    %77 = vector.broadcast %76 : vector<16x1xf32> to vector<16x32xf32>
    %78 = arith.subf %70, %77 : vector<16x32xf32>
    %79 = arith.mulf %78, %78 : vector<16x32xf32>
    %cst_29 = arith.constant dense<0.000000e+00> : vector<16xf32>
    %80 = vector.multi_reduction <add>, %79, %cst_29 [1] : vector<16x32xf32> to vector<16xf32>
    %81 = vector.shape_cast %80 : vector<16xf32> to vector<16x1xf32>
    %cst_30 = arith.constant 3.200000e+01 : f32
    %82 = vector.broadcast %cst_30 : f32 to vector<16x1xf32>
    %83 = arith.divf %81, %82 : vector<16x1xf32>
    %84 = vector.broadcast %76 : vector<16x1xf32> to vector<16x32xf32>
    %85 = arith.subf %70, %84 : vector<16x32xf32>
    %cst_31 = arith.constant 9.99999996E-13 : f32
    %86 = vector.broadcast %cst_31 : f32 to vector<16x1xf32>
    %87 = arith.addf %83, %86 : vector<16x1xf32>
    %88 = math.rsqrt %87 : vector<16x1xf32>
    %89 = vector.broadcast %88 : vector<16x1xf32> to vector<16x32xf32>
    %90 = arith.mulf %85, %89 : vector<16x32xf32>
    %91 = vector.broadcast %71 : vector<1x32xf32> to vector<16x32xf32>
    %92 = arith.mulf %90, %91 : vector<16x32xf32>
    %93 = vector.broadcast %72 : vector<1x32xf32> to vector<16x32xf32>
    %94 = arith.addf %92, %93 : vector<16x32xf32>
    %c16 = arith.constant 16 : index
    %c0_32 = arith.constant 0 : index
    %95 = vector.load %arg4[%c16, %c0_32] : memref<400x128xf32, #tpu.memory_space<vmem>>, vector<32x64xf32>
    %cst_33 = arith.constant dense<0.000000e+00> : vector<16x64xf32>
    %96 = tpu.matmul %94, %95, %cst_33 {dimension_numbers = #tpu.dot_dimension_numbers<[1], [0], [0], [1], [0, 0, 1, 1], [], []>} : vector<16x32xf32>, vector<32x64xf32>, vector<16x64xf32> -> vector<16x64xf32>
    %c11 = arith.constant 11 : index
    %c0_34 = arith.constant 0 : index
    %97 = vector.load %arg4[%c11, %c0_34] : memref<400x128xf32, #tpu.memory_space<vmem>>, vector<1x64xf32>
    %98 = vector.broadcast %97 : vector<1x64xf32> to vector<16x64xf32>
    %99 = arith.addf %96, %98 : vector<16x64xf32>
    %cst_35 = arith.constant 5.000000e-01 : f32
    %100 = vector.broadcast %cst_35 : f32 to vector<16x64xf32>
    %101 = arith.mulf %100, %99 : vector<16x64xf32>
    %cst_36 = arith.constant 0.707106769 : f32
    %102 = vector.broadcast %cst_36 : f32 to vector<16x64xf32>
    %103 = arith.mulf %99, %102 : vector<16x64xf32>
    %104 = math.erf %103 : vector<16x64xf32>
    %cst_37 = arith.constant 1.000000e+00 : f32
    %105 = vector.broadcast %cst_37 : f32 to vector<16x64xf32>
    %106 = arith.addf %105, %104 : vector<16x64xf32>
    %107 = arith.mulf %101, %106 : vector<16x64xf32>
    %c48 = arith.constant 48 : index
    %c0_38 = arith.constant 0 : index
    %108 = vector.load %arg4[%c48, %c0_38] : memref<400x128xf32, #tpu.memory_space<vmem>>, vector<64x32xf32>
    %cst_39 = arith.constant dense<0.000000e+00> : vector<16x32xf32>
    %109 = tpu.matmul %107, %108, %cst_39 {dimension_numbers = #tpu.dot_dimension_numbers<[1], [0], [0], [1], [0, 0, 1, 1], [], []>} : vector<16x64xf32>, vector<64x32xf32>, vector<16x32xf32> -> vector<16x32xf32>
    %c12 = arith.constant 12 : index
    %c0_40 = arith.constant 0 : index
    %110 = vector.load %arg4[%c12, %c0_40] : memref<400x128xf32, #tpu.memory_space<vmem>>, vector<1x32xf32>
    %111 = vector.broadcast %110 : vector<1x32xf32> to vector<16x32xf32>
    %112 = arith.addf %109, %111 : vector<16x32xf32>
    %113 = arith.addf %112, %94 : vector<16x32xf32>
    %c13 = arith.constant 13 : index
    %c0_41 = arith.constant 0 : index
    %114 = vector.load %arg4[%c13, %c0_41] : memref<400x128xf32, #tpu.memory_space<vmem>>, vector<1x32xf32>
    %c14 = arith.constant 14 : index
    %c0_42 = arith.constant 0 : index
    %115 = vector.load %arg4[%c14, %c0_42] : memref<400x128xf32, #tpu.memory_space<vmem>>, vector<1x32xf32>
    %cst_43 = arith.constant dense<0.000000e+00> : vector<16xf32>
    %116 = vector.multi_reduction <add>, %113, %cst_43 [1] : vector<16x32xf32> to vector<16xf32>
    %117 = vector.shape_cast %116 : vector<16xf32> to vector<16x1xf32>
    %cst_44 = arith.constant 3.200000e+01 : f32
    %118 = vector.broadcast %cst_44 : f32 to vector<16x1xf32>
    %119 = arith.divf %117, %118 : vector<16x1xf32>
    %120 = vector.broadcast %119 : vector<16x1xf32> to vector<16x32xf32>
    %121 = arith.subf %113, %120 : vector<16x32xf32>
    %122 = arith.mulf %121, %121 : vector<16x32xf32>
    %cst_45 = arith.constant dense<0.000000e+00> : vector<16xf32>
    %123 = vector.multi_reduction <add>, %122, %cst_45 [1] : vector<16x32xf32> to vector<16xf32>
    %124 = vector.shape_cast %123 : vector<16xf32> to vector<16x1xf32>
    %cst_46 = arith.constant 3.200000e+01 : f32
    %125 = vector.broadcast %cst_46 : f32 to vector<16x1xf32>
    %126 = arith.divf %124, %125 : vector<16x1xf32>
    %127 = vector.broadcast %119 : vector<16x1xf32> to vector<16x32xf32>
    %128 = arith.subf %113, %127 : vector<16x32xf32>
    %cst_47 = arith.constant 9.99999996E-13 : f32
    %129 = vector.broadcast %cst_47 : f32 to vector<16x1xf32>
    %130 = arith.addf %126, %129 : vector<16x1xf32>
    %131 = math.rsqrt %130 : vector<16x1xf32>
    %132 = vector.broadcast %131 : vector<16x1xf32> to vector<16x32xf32>
    %133 = arith.mulf %128, %132 : vector<16x32xf32>
    %134 = vector.broadcast %114 : vector<1x32xf32> to vector<16x32xf32>
    %135 = arith.mulf %133, %134 : vector<16x32xf32>
    %136 = vector.broadcast %115 : vector<1x32xf32> to vector<16x32xf32>
    %137 = arith.addf %135, %136 : vector<16x32xf32>
    %c40 = arith.constant 40 : index
    %c0_48 = arith.constant 0 : index
    %138 = vector.load %arg3[%c40, %c0_48] : memref<80x768xf32, #tpu.memory_space<vmem>>, vector<32x768xf32>
    %cst_49 = arith.constant dense<0.000000e+00> : vector<16x768xf32>
    %139 = tpu.matmul %137, %138, %cst_49 {dimension_numbers = #tpu.dot_dimension_numbers<[1], [0], [0], [1], [0, 0, 1, 1], [], []>} : vector<16x32xf32>, vector<32x768xf32>, vector<16x768xf32> -> vector<16x768xf32>
    %c72 = arith.constant 72 : index
    %c0_50 = arith.constant 0 : index
    %140 = vector.load %arg3[%c72, %c0_50] : memref<80x768xf32, #tpu.memory_space<vmem>>, vector<1x768xf32>
    %141 = vector.broadcast %140 : vector<1x768xf32> to vector<16x768xf32>
    %142 = arith.addf %139, %141 : vector<16x768xf32>
    %c112 = arith.constant 112 : index
    %c0_51 = arith.constant 0 : index
    %143 = vector.load %arg4[%c112, %c0_51] : memref<400x128xf32, #tpu.memory_space<vmem>>, vector<1x128xf32>
    %144 = vector.extract_strided_slice %142 {offsets = [0, 0], sizes = [16, 128], strides = [1, 1]} : vector<16x768xf32> to vector<16x128xf32>
    %145 = vector.extract_strided_slice %142 {offsets = [0, 128], sizes = [16, 128], strides = [1, 1]} : vector<16x768xf32> to vector<16x128xf32>
    %146 = vector.extract_strided_slice %142 {offsets = [0, 512], sizes = [16, 128], strides = [1, 1]} : vector<16x768xf32> to vector<16x128xf32>
    %cst_52 = arith.constant dense<0.000000e+00> : vector<16x16xf32>
    %147 = tpu.matmul %144, %145, %cst_52 {dimension_numbers = #tpu.dot_dimension_numbers<[1], [1], [0], [0], [0, 0, 1, 0], [], []>} : vector<16x128xf32>, vector<16x128xf32>, vector<16x16xf32> -> vector<16x16xf32>
    %cst_53 = arith.constant 2.500000e-01 : f32
    %148 = vector.broadcast %cst_53 : f32 to vector<16x16xf32>
    %149 = arith.mulf %147, %148 : vector<16x16xf32>
    %150 = arith.addf %149, %25 : vector<16x16xf32>
    %cst_54 = arith.constant dense<0xFF800000> : vector<16xf32>
    %151 = vector.multi_reduction <maximumf>, %150, %cst_54 [1] : vector<16x16xf32> to vector<16xf32>
    %152 = vector.shape_cast %151 : vector<16xf32> to vector<16x1xf32>
    %153 = vector.broadcast %152 : vector<16x1xf32> to vector<16x16xf32>
    %154 = arith.subf %150, %153 : vector<16x16xf32>
    %155 = math.exp %154 : vector<16x16xf32>
    %cst_55 = arith.constant dense<0.000000e+00> : vector<16xf32>
    %156 = vector.multi_reduction <add>, %155, %cst_55 [1] : vector<16x16xf32> to vector<16xf32>
    %157 = vector.shape_cast %156 : vector<16xf32> to vector<16x1xf32>
    %158 = vector.broadcast %157 : vector<16x1xf32> to vector<16x16xf32>
    %159 = arith.divf %155, %158 : vector<16x16xf32>
    %cst_56 = arith.constant dense<0.000000e+00> : vector<16x128xf32>
    %160 = tpu.matmul %159, %146, %cst_56 {dimension_numbers = #tpu.dot_dimension_numbers<[1], [0], [0], [1], [0, 0, 1, 1], [], []>} : vector<16x16xf32>, vector<16x128xf32>, vector<16x128xf32> -> vector<16x128xf32>
    %161 = vector.broadcast %143 : vector<1x128xf32> to vector<16x128xf32>
    %162 = arith.addf %161, %160 : vector<16x128xf32>
    %163 = vector.extract_strided_slice %142 {offsets = [0, 256], sizes = [16, 128], strides = [1, 1]} : vector<16x768xf32> to vector<16x128xf32>
    %164 = vector.extract_strided_slice %142 {offsets = [0, 384], sizes = [16, 128], strides = [1, 1]} : vector<16x768xf32> to vector<16x128xf32>
    %165 = vector.extract_strided_slice %142 {offsets = [0, 640], sizes = [16, 128], strides = [1, 1]} : vector<16x768xf32> to vector<16x128xf32>
    %cst_57 = arith.constant dense<0.000000e+00> : vector<16x16xf32>
    %166 = tpu.matmul %163, %164, %cst_57 {dimension_numbers = #tpu.dot_dimension_numbers<[1], [1], [0], [0], [0, 0, 1, 0], [], []>} : vector<16x128xf32>, vector<16x128xf32>, vector<16x16xf32> -> vector<16x16xf32>
    %cst_58 = arith.constant 2.500000e-01 : f32
    %167 = vector.broadcast %cst_58 : f32 to vector<16x16xf32>
    %168 = arith.mulf %166, %167 : vector<16x16xf32>
    %169 = arith.addf %168, %25 : vector<16x16xf32>
    %cst_59 = arith.constant dense<0xFF800000> : vector<16xf32>
    %170 = vector.multi_reduction <maximumf>, %169, %cst_59 [1] : vector<16x16xf32> to vector<16xf32>
    %171 = vector.shape_cast %170 : vector<16xf32> to vector<16x1xf32>
    %172 = vector.broadcast %171 : vector<16x1xf32> to vector<16x16xf32>
    %173 = arith.subf %169, %172 : vector<16x16xf32>
    %174 = math.exp %173 : vector<16x16xf32>
    %cst_60 = arith.constant dense<0.000000e+00> : vector<16xf32>
    %175 = vector.multi_reduction <add>, %174, %cst_60 [1] : vector<16x16xf32> to vector<16xf32>
    %176 = vector.shape_cast %175 : vector<16xf32> to vector<16x1xf32>
    %177 = vector.broadcast %176 : vector<16x1xf32> to vector<16x16xf32>
    %178 = arith.divf %174, %177 : vector<16x16xf32>
    %cst_61 = arith.constant dense<0.000000e+00> : vector<16x128xf32>
    %179 = tpu.matmul %178, %165, %cst_61 {dimension_numbers = #tpu.dot_dimension_numbers<[1], [0], [0], [1], [0, 0, 1, 1], [], []>} : vector<16x16xf32>, vector<16x128xf32>, vector<16x128xf32> -> vector<16x128xf32>
    %180 = arith.addf %162, %179 : vector<16x128xf32>
    %181 = vector.extract_strided_slice %180 {offsets = [0, 0], sizes = [16, 32], strides = [1, 1]} : vector<16x128xf32> to vector<16x32xf32>
    %182 = arith.addf %181, %137 : vector<16x32xf32>
    %c113 = arith.constant 113 : index
    %c0_62 = arith.constant 0 : index
    %183 = vector.load %arg4[%c113, %c0_62] : memref<400x128xf32, #tpu.memory_space<vmem>>, vector<1x32xf32>
    %c114 = arith.constant 114 : index
    %c0_63 = arith.constant 0 : index
    %184 = vector.load %arg4[%c114, %c0_63] : memref<400x128xf32, #tpu.memory_space<vmem>>, vector<1x32xf32>
    %cst_64 = arith.constant dense<0.000000e+00> : vector<16xf32>
    %185 = vector.multi_reduction <add>, %182, %cst_64 [1] : vector<16x32xf32> to vector<16xf32>
    %186 = vector.shape_cast %185 : vector<16xf32> to vector<16x1xf32>
    %cst_65 = arith.constant 3.200000e+01 : f32
    %187 = vector.broadcast %cst_65 : f32 to vector<16x1xf32>
    %188 = arith.divf %186, %187 : vector<16x1xf32>
    %189 = vector.broadcast %188 : vector<16x1xf32> to vector<16x32xf32>
    %190 = arith.subf %182, %189 : vector<16x32xf32>
    %191 = arith.mulf %190, %190 : vector<16x32xf32>
    %cst_66 = arith.constant dense<0.000000e+00> : vector<16xf32>
    %192 = vector.multi_reduction <add>, %191, %cst_66 [1] : vector<16x32xf32> to vector<16xf32>
    %193 = vector.shape_cast %192 : vector<16xf32> to vector<16x1xf32>
    %cst_67 = arith.constant 3.200000e+01 : f32
    %194 = vector.broadcast %cst_67 : f32 to vector<16x1xf32>
    %195 = arith.divf %193, %194 : vector<16x1xf32>
    %196 = vector.broadcast %188 : vector<16x1xf32> to vector<16x32xf32>
    %197 = arith.subf %182, %196 : vector<16x32xf32>
    %cst_68 = arith.constant 9.99999996E-13 : f32
    %198 = vector.broadcast %cst_68 : f32 to vector<16x1xf32>
    %199 = arith.addf %195, %198 : vector<16x1xf32>
    %200 = math.rsqrt %199 : vector<16x1xf32>
    %201 = vector.broadcast %200 : vector<16x1xf32> to vector<16x32xf32>
    %202 = arith.mulf %197, %201 : vector<16x32xf32>
    %203 = vector.broadcast %183 : vector<1x32xf32> to vector<16x32xf32>
    %204 = arith.mulf %202, %203 : vector<16x32xf32>
    %205 = vector.broadcast %184 : vector<1x32xf32> to vector<16x32xf32>
    %206 = arith.addf %204, %205 : vector<16x32xf32>
    %c120 = arith.constant 120 : index
    %c0_69 = arith.constant 0 : index
    %207 = vector.load %arg4[%c120, %c0_69] : memref<400x128xf32, #tpu.memory_space<vmem>>, vector<32x64xf32>
    %cst_70 = arith.constant dense<0.000000e+00> : vector<16x64xf32>
    %208 = tpu.matmul %206, %207, %cst_70 {dimension_numbers = #tpu.dot_dimension_numbers<[1], [0], [0], [1], [0, 0, 1, 1], [], []>} : vector<16x32xf32>, vector<32x64xf32>, vector<16x64xf32> -> vector<16x64xf32>
    %c115 = arith.constant 115 : index
    %c0_71 = arith.constant 0 : index
    %209 = vector.load %arg4[%c115, %c0_71] : memref<400x128xf32, #tpu.memory_space<vmem>>, vector<1x64xf32>
    %210 = vector.broadcast %209 : vector<1x64xf32> to vector<16x64xf32>
    %211 = arith.addf %208, %210 : vector<16x64xf32>
    %cst_72 = arith.constant 5.000000e-01 : f32
    %212 = vector.broadcast %cst_72 : f32 to vector<16x64xf32>
    %213 = arith.mulf %212, %211 : vector<16x64xf32>
    %cst_73 = arith.constant 0.707106769 : f32
    %214 = vector.broadcast %cst_73 : f32 to vector<16x64xf32>
    %215 = arith.mulf %211, %214 : vector<16x64xf32>
    %216 = math.erf %215 : vector<16x64xf32>
    %cst_74 = arith.constant 1.000000e+00 : f32
    %217 = vector.broadcast %cst_74 : f32 to vector<16x64xf32>
    %218 = arith.addf %217, %216 : vector<16x64xf32>
    %219 = arith.mulf %213, %218 : vector<16x64xf32>
    %c152 = arith.constant 152 : index
    %c0_75 = arith.constant 0 : index
    %220 = vector.load %arg4[%c152, %c0_75] : memref<400x128xf32, #tpu.memory_space<vmem>>, vector<64x32xf32>
    %cst_76 = arith.constant dense<0.000000e+00> : vector<16x32xf32>
    %221 = tpu.matmul %219, %220, %cst_76 {dimension_numbers = #tpu.dot_dimension_numbers<[1], [0], [0], [1], [0, 0, 1, 1], [], []>} : vector<16x64xf32>, vector<64x32xf32>, vector<16x32xf32> -> vector<16x32xf32>
    %c116 = arith.constant 116 : index
    %c0_77 = arith.constant 0 : index
    %222 = vector.load %arg4[%c116, %c0_77] : memref<400x128xf32, #tpu.memory_space<vmem>>, vector<1x32xf32>
    %223 = vector.broadcast %222 : vector<1x32xf32> to vector<16x32xf32>
    %224 = arith.addf %221, %223 : vector<16x32xf32>
    %225 = arith.addf %224, %206 : vector<16x32xf32>
    %c117 = arith.constant 117 : index
    %c0_78 = arith.constant 0 : index
    %226 = vector.load %arg4[%c117, %c0_78] : memref<400x128xf32, #tpu.memory_space<vmem>>, vector<1x32xf32>
    %c118 = arith.constant 118 : index
    %c0_79 = arith.constant 0 : index
    %227 = vector.load %arg4[%c118, %c0_79] : memref<400x128xf32, #tpu.memory_space<vmem>>, vector<1x32xf32>
    %cst_80 = arith.constant dense<0.000000e+00> : vector<16xf32>
    %228 = vector.multi_reduction <add>, %225, %cst_80 [1] : vector<16x32xf32> to vector<16xf32>
    %229 = vector.shape_cast %228 : vector<16xf32> to vector<16x1xf32>
    %cst_81 = arith.constant 3.200000e+01 : f32
    %230 = vector.broadcast %cst_81 : f32 to vector<16x1xf32>
    %231 = arith.divf %229, %230 : vector<16x1xf32>
    %232 = vector.broadcast %231 : vector<16x1xf32> to vector<16x32xf32>
    %233 = arith.subf %225, %232 : vector<16x32xf32>
    %234 = arith.mulf %233, %233 : vector<16x32xf32>
    %cst_82 = arith.constant dense<0.000000e+00> : vector<16xf32>
    %235 = vector.multi_reduction <add>, %234, %cst_82 [1] : vector<16x32xf32> to vector<16xf32>
    %236 = vector.shape_cast %235 : vector<16xf32> to vector<16x1xf32>
    %cst_83 = arith.constant 3.200000e+01 : f32
    %237 = vector.broadcast %cst_83 : f32 to vector<16x1xf32>
    %238 = arith.divf %236, %237 : vector<16x1xf32>
    %239 = vector.broadcast %231 : vector<16x1xf32> to vector<16x32xf32>
    %240 = arith.subf %225, %239 : vector<16x32xf32>
    %cst_84 = arith.constant 9.99999996E-13 : f32
    %241 = vector.broadcast %cst_84 : f32 to vector<16x1xf32>
    %242 = arith.addf %238, %241 : vector<16x1xf32>
    %243 = math.rsqrt %242 : vector<16x1xf32>
    %244 = vector.broadcast %243 : vector<16x1xf32> to vector<16x32xf32>
    %245 = arith.mulf %240, %244 : vector<16x32xf32>
    %246 = vector.broadcast %226 : vector<1x32xf32> to vector<16x32xf32>
    %247 = arith.mulf %245, %246 : vector<16x32xf32>
    %248 = vector.broadcast %227 : vector<1x32xf32> to vector<16x32xf32>
    %249 = arith.addf %247, %248 : vector<16x32xf32>
    %c360 = arith.constant 360 : index
    %c0_85 = arith.constant 0 : index
    %250 = vector.load %arg4[%c360, %c0_85] : memref<400x128xf32, #tpu.memory_space<vmem>>, vector<2x16xf32>
    %c368 = arith.constant 368 : index
    %c0_86 = arith.constant 0 : index
    %251 = vector.load %arg4[%c368, %c0_86] : memref<400x128xf32, #tpu.memory_space<vmem>>, vector<32x128xf32>
    %cst_87 = arith.constant dense<0.000000e+00> : vector<2x32xf32>
    %252 = tpu.matmul %250, %249, %cst_87 {dimension_numbers = #tpu.dot_dimension_numbers<[1], [0], [0], [1], [0, 0, 1, 1], [], []>} : vector<2x16xf32>, vector<16x32xf32>, vector<2x32xf32> -> vector<2x32xf32>
    %cst_88 = arith.constant dense<0.000000e+00> : vector<2x128xf32>
    %253 = tpu.matmul %252, %251, %cst_88 {dimension_numbers = #tpu.dot_dimension_numbers<[1], [0], [0], [1], [0, 0, 1, 1], [], []>} : vector<2x32xf32>, vector<32x128xf32>, vector<2x128xf32> -> vector<2x128xf32>
    %c0_89 = arith.constant 0 : index
    %c0_90 = arith.constant 0 : index
    %254 = vector.load %arg6[%c0_89, %c0_90] : memref<2x128xf32, #tpu.memory_space<vmem>>, vector<2x128xf32>
    tpu.vector_store %arg6[%c0_89, %c0_90], %253 {strides = array<i32>} : memref<2x128xf32, #tpu.memory_space<vmem>>, vector<2x128xf32>,
    %c216 = arith.constant 216 : index
    %c0_91 = arith.constant 0 : index
    %255 = vector.load %arg4[%c216, %c0_91] : memref<400x128xf32, #tpu.memory_space<vmem>>, vector<32x128xf32>
    %c248 = arith.constant 248 : index
    %c0_92 = arith.constant 0 : index
    %256 = vector.load %arg4[%c248, %c0_92] : memref<400x128xf32, #tpu.memory_space<vmem>>, vector<1x128xf32>
    %c256 = arith.constant 256 : index
    %c0_93 = arith.constant 0 : index
    %257 = vector.load %arg4[%c256, %c0_93] : memref<400x128xf32, #tpu.memory_space<vmem>>, vector<32x128xf32>
    %cst_94 = arith.constant dense<0.000000e+00> : vector<16x128xf32>
    %258 = tpu.matmul %249, %255, %cst_94 {dimension_numbers = #tpu.dot_dimension_numbers<[1], [0], [0], [1], [0, 0, 1, 1], [], []>} : vector<16x32xf32>, vector<32x128xf32>, vector<16x128xf32> -> vector<16x128xf32>
    %259 = vector.broadcast %256 : vector<1x128xf32> to vector<16x128xf32>
    %260 = arith.addf %258, %259 : vector<16x128xf32>
    %c328 = arith.constant 328 : index
    %c0_95 = arith.constant 0 : index
    %261 = vector.load %arg4[%c328, %c0_95] : memref<400x128xf32, #tpu.memory_space<vmem>>, vector<16x16xf32>
    %c344 = arith.constant 344 : index
    %c0_96 = arith.constant 0 : index
    %262 = vector.load %arg4[%c344, %c0_96] : memref<400x128xf32, #tpu.memory_space<vmem>>, vector<16x16xf32>
    %c2 = arith.constant 2 : index
    %c0_97 = arith.constant 0 : index
    %263 = vector.load %arg4[%c2, %c0_97] : memref<400x128xf32, #tpu.memory_space<vmem>>, vector<1x128xf32>
    %cst_98 = arith.constant dense<0.000000e+00> : vector<16x128xf32>
    %264 = tpu.matmul %261, %260, %cst_98 {dimension_numbers = #tpu.dot_dimension_numbers<[1], [0], [0], [1], [0, 0, 1, 1], [], []>} : vector<16x16xf32>, vector<16x128xf32>, vector<16x128xf32> -> vector<16x128xf32>
    %265 = vector.broadcast %263 : vector<1x128xf32> to vector<16x128xf32>
    %266 = arith.mulf %265, %264 : vector<16x128xf32>
    %cst_99 = arith.constant 1.000000e+00 : f32
    %267 = vector.broadcast %cst_99 : f32 to vector<1x128xf32>
    %268 = arith.subf %267, %263 : vector<1x128xf32>
    %cst_100 = arith.constant dense<0.000000e+00> : vector<16x128xf32>
    %269 = tpu.matmul %262, %260, %cst_100 {dimension_numbers = #tpu.dot_dimension_numbers<[1], [0], [0], [1], [0, 0, 1, 1], [], []>} : vector<16x16xf32>, vector<16x128xf32>, vector<16x128xf32> -> vector<16x128xf32>
    %270 = vector.broadcast %268 : vector<1x128xf32> to vector<16x128xf32>
    %271 = arith.mulf %270, %269 : vector<16x128xf32>
    %272 = arith.addf %266, %271 : vector<16x128xf32>
    %c3 = arith.constant 3 : index
    %c0_101 = arith.constant 0 : index
    %273 = vector.load %arg4[%c3, %c0_101] : memref<400x128xf32, #tpu.memory_space<vmem>>, vector<1x128xf32>
    %c4 = arith.constant 4 : index
    %c0_102 = arith.constant 0 : index
    %274 = vector.load %arg4[%c4, %c0_102] : memref<400x128xf32, #tpu.memory_space<vmem>>, vector<1x128xf32>
    %cst_103 = arith.constant 0.000000e+00 : f32
    %275 = vector.broadcast %cst_103 : f32 to vector<2x32xf32>
    %cst_104 = arith.constant 0.000000e+00 : f32
    %276 = vector.broadcast %cst_104 : f32 to vector<2x32xf32>
    %277 = vector.extract_strided_slice %272 {offsets = [0, 0], sizes = [2, 128], strides = [1, 1]} : vector<16x128xf32> to vector<2x128xf32>
    %cst_105 = arith.constant dense<0.000000e+00> : vector<2x128xf32>
    %278 = tpu.matmul %275, %257, %cst_105 {dimension_numbers = #tpu.dot_dimension_numbers<[1], [0], [0], [1], [0, 0, 1, 1], [], []>} : vector<2x32xf32>, vector<32x128xf32>, vector<2x128xf32> -> vector<2x128xf32>
    %279 = arith.addf %277, %278 : vector<2x128xf32>
    %280 = vector.broadcast %273 : vector<1x128xf32> to vector<2x128xf32>
    %281 = arith.mulf %279, %280 : vector<2x128xf32>
    %282 = math.tanh %281 : vector<2x128xf32>
    %283 = vector.broadcast %273 : vector<1x128xf32> to vector<2x128xf32>
    %284 = arith.mulf %282, %283 : vector<2x128xf32>
    %285 = vector.broadcast %274 : vector<1x128xf32> to vector<2x128xf32>
    %286 = arith.addf %284, %285 : vector<2x128xf32>
    %287 = vector.extract_strided_slice %286 {offsets = [0, 0], sizes = [2, 32], strides = [1, 1]} : vector<2x128xf32> to vector<2x32xf32>
    %288 = vector.extract_strided_slice %286 {offsets = [0, 32], sizes = [2, 32], strides = [1, 1]} : vector<2x128xf32> to vector<2x32xf32>
    %289 = vector.extract_strided_slice %286 {offsets = [0, 64], sizes = [2, 32], strides = [1, 1]} : vector<2x128xf32> to vector<2x32xf32>
    %290 = vector.extract_strided_slice %286 {offsets = [0, 96], sizes = [2, 32], strides = [1, 1]} : vector<2x128xf32> to vector<2x32xf32>
    %291 = arith.mulf %288, %276 : vector<2x32xf32>
    %292 = arith.mulf %287, %289 : vector<2x32xf32>
    %293 = arith.addf %291, %292 : vector<2x32xf32>
    %294 = math.tanh %293 : vector<2x32xf32>
    %295 = arith.mulf %290, %294 : vector<2x32xf32>
    %296 = vector.extract_strided_slice %272 {offsets = [2, 0], sizes = [2, 128], strides = [1, 1]} : vector<16x128xf32> to vector<2x128xf32>
    %cst_106 = arith.constant dense<0.000000e+00> : vector<2x128xf32>
    %297 = tpu.matmul %295, %257, %cst_106 {dimension_numbers = #tpu.dot_dimension_numbers<[1], [0], [0], [1], [0, 0, 1, 1], [], []>} : vector<2x32xf32>, vector<32x128xf32>, vector<2x128xf32> -> vector<2x128xf32>
    %298 = arith.addf %296, %297 : vector<2x128xf32>
    %299 = vector.broadcast %273 : vector<1x128xf32> to vector<2x128xf32>
    %300 = arith.mulf %298, %299 : vector<2x128xf32>
    %301 = math.tanh %300 : vector<2x128xf32>
    %302 = vector.broadcast %273 : vector<1x128xf32> to vector<2x128xf32>
    %303 = arith.mulf %301, %302 : vector<2x128xf32>
    %304 = vector.broadcast %274 : vector<1x128xf32> to vector<2x128xf32>
    %305 = arith.addf %303, %304 : vector<2x128xf32>
    %306 = vector.extract_strided_slice %305 {offsets = [0, 0], sizes = [2, 32], strides = [1, 1]} : vector<2x128xf32> to vector<2x32xf32>
    %307 = vector.extract_strided_slice %305 {offsets = [0, 32], sizes = [2, 32], strides = [1, 1]} : vector<2x128xf32> to vector<2x32xf32>
    %308 = vector.extract_strided_slice %305 {offsets = [0, 64], sizes = [2, 32], strides = [1, 1]} : vector<2x128xf32> to vector<2x32xf32>
    %309 = vector.extract_strided_slice %305 {offsets = [0, 96], sizes = [2, 32], strides = [1, 1]} : vector<2x128xf32> to vector<2x32xf32>
    %310 = arith.mulf %307, %293 : vector<2x32xf32>
    %311 = arith.mulf %306, %308 : vector<2x32xf32>
    %312 = arith.addf %310, %311 : vector<2x32xf32>
    %313 = math.tanh %312 : vector<2x32xf32>
    %314 = arith.mulf %309, %313 : vector<2x32xf32>
    %315 = vector.extract_strided_slice %272 {offsets = [4, 0], sizes = [2, 128], strides = [1, 1]} : vector<16x128xf32> to vector<2x128xf32>
    %cst_107 = arith.constant dense<0.000000e+00> : vector<2x128xf32>
    %316 = tpu.matmul %314, %257, %cst_107 {dimension_numbers = #tpu.dot_dimension_numbers<[1], [0], [0], [1], [0, 0, 1, 1], [], []>} : vector<2x32xf32>, vector<32x128xf32>, vector<2x128xf32> -> vector<2x128xf32>
    %317 = arith.addf %315, %316 : vector<2x128xf32>
    %318 = vector.broadcast %273 : vector<1x128xf32> to vector<2x128xf32>
    %319 = arith.mulf %317, %318 : vector<2x128xf32>
    %320 = math.tanh %319 : vector<2x128xf32>
    %321 = vector.broadcast %273 : vector<1x128xf32> to vector<2x128xf32>
    %322 = arith.mulf %320, %321 : vector<2x128xf32>
    %323 = vector.broadcast %274 : vector<1x128xf32> to vector<2x128xf32>
    %324 = arith.addf %322, %323 : vector<2x128xf32>
    %325 = vector.extract_strided_slice %324 {offsets = [0, 0], sizes = [2, 32], strides = [1, 1]} : vector<2x128xf32> to vector<2x32xf32>
    %326 = vector.extract_strided_slice %324 {offsets = [0, 32], sizes = [2, 32], strides = [1, 1]} : vector<2x128xf32> to vector<2x32xf32>
    %327 = vector.extract_strided_slice %324 {offsets = [0, 64], sizes = [2, 32], strides = [1, 1]} : vector<2x128xf32> to vector<2x32xf32>
    %328 = vector.extract_strided_slice %324 {offsets = [0, 96], sizes = [2, 32], strides = [1, 1]} : vector<2x128xf32> to vector<2x32xf32>
    %329 = arith.mulf %326, %312 : vector<2x32xf32>
    %330 = arith.mulf %325, %327 : vector<2x32xf32>
    %331 = arith.addf %329, %330 : vector<2x32xf32>
    %332 = math.tanh %331 : vector<2x32xf32>
    %333 = arith.mulf %328, %332 : vector<2x32xf32>
    %334 = vector.extract_strided_slice %272 {offsets = [6, 0], sizes = [2, 128], strides = [1, 1]} : vector<16x128xf32> to vector<2x128xf32>
    %cst_108 = arith.constant dense<0.000000e+00> : vector<2x128xf32>
    %335 = tpu.matmul %333, %257, %cst_108 {dimension_numbers = #tpu.dot_dimension_numbers<[1], [0], [0], [1], [0, 0, 1, 1], [], []>} : vector<2x32xf32>, vector<32x128xf32>, vector<2x128xf32> -> vector<2x128xf32>
    %336 = arith.addf %334, %335 : vector<2x128xf32>
    %337 = vector.broadcast %273 : vector<1x128xf32> to vector<2x128xf32>
    %338 = arith.mulf %336, %337 : vector<2x128xf32>
    %339 = math.tanh %338 : vector<2x128xf32>
    %340 = vector.broadcast %273 : vector<1x128xf32> to vector<2x128xf32>
    %341 = arith.mulf %339, %340 : vector<2x128xf32>
    %342 = vector.broadcast %274 : vector<1x128xf32> to vector<2x128xf32>
    %343 = arith.addf %341, %342 : vector<2x128xf32>
    %344 = vector.extract_strided_slice %343 {offsets = [0, 0], sizes = [2, 32], strides = [1, 1]} : vector<2x128xf32> to vector<2x32xf32>
    %345 = vector.extract_strided_slice %343 {offsets = [0, 32], sizes = [2, 32], strides = [1, 1]} : vector<2x128xf32> to vector<2x32xf32>
    %346 = vector.extract_strided_slice %343 {offsets = [0, 64], sizes = [2, 32], strides = [1, 1]} : vector<2x128xf32> to vector<2x32xf32>
    %347 = vector.extract_strided_slice %343 {offsets = [0, 96], sizes = [2, 32], strides = [1, 1]} : vector<2x128xf32> to vector<2x32xf32>
    %348 = arith.mulf %345, %331 : vector<2x32xf32>
    %349 = arith.mulf %344, %346 : vector<2x32xf32>
    %350 = arith.addf %348, %349 : vector<2x32xf32>
    %351 = math.tanh %350 : vector<2x32xf32>
    %352 = arith.mulf %347, %351 : vector<2x32xf32>
    %353 = vector.extract_strided_slice %272 {offsets = [8, 0], sizes = [2, 128], strides = [1, 1]} : vector<16x128xf32> to vector<2x128xf32>
    %cst_109 = arith.constant dense<0.000000e+00> : vector<2x128xf32>
    %354 = tpu.matmul %352, %257, %cst_109 {dimension_numbers = #tpu.dot_dimension_numbers<[1], [0], [0], [1], [0, 0, 1, 1], [], []>} : vector<2x32xf32>, vector<32x128xf32>, vector<2x128xf32> -> vector<2x128xf32>
    %355 = arith.addf %353, %354 : vector<2x128xf32>
    %356 = vector.broadcast %273 : vector<1x128xf32> to vector<2x128xf32>
    %357 = arith.mulf %355, %356 : vector<2x128xf32>
    %358 = math.tanh %357 : vector<2x128xf32>
    %359 = vector.broadcast %273 : vector<1x128xf32> to vector<2x128xf32>
    %360 = arith.mulf %358, %359 : vector<2x128xf32>
    %361 = vector.broadcast %274 : vector<1x128xf32> to vector<2x128xf32>
    %362 = arith.addf %360, %361 : vector<2x128xf32>
    %363 = vector.extract_strided_slice %362 {offsets = [0, 0], sizes = [2, 32], strides = [1, 1]} : vector<2x128xf32> to vector<2x32xf32>
    %364 = vector.extract_strided_slice %362 {offsets = [0, 32], sizes = [2, 32], strides = [1, 1]} : vector<2x128xf32> to vector<2x32xf32>
    %365 = vector.extract_strided_slice %362 {offsets = [0, 64], sizes = [2, 32], strides = [1, 1]} : vector<2x128xf32> to vector<2x32xf32>
    %366 = vector.extract_strided_slice %362 {offsets = [0, 96], sizes = [2, 32], strides = [1, 1]} : vector<2x128xf32> to vector<2x32xf32>
    %367 = arith.mulf %364, %350 : vector<2x32xf32>
    %368 = arith.mulf %363, %365 : vector<2x32xf32>
    %369 = arith.addf %367, %368 : vector<2x32xf32>
    %370 = math.tanh %369 : vector<2x32xf32>
    %371 = arith.mulf %366, %370 : vector<2x32xf32>
    %372 = vector.extract_strided_slice %272 {offsets = [10, 0], sizes = [2, 128], strides = [1, 1]} : vector<16x128xf32> to vector<2x128xf32>
    %cst_110 = arith.constant dense<0.000000e+00> : vector<2x128xf32>
    %373 = tpu.matmul %371, %257, %cst_110 {dimension_numbers = #tpu.dot_dimension_numbers<[1], [0], [0], [1], [0, 0, 1, 1], [], []>} : vector<2x32xf32>, vector<32x128xf32>, vector<2x128xf32> -> vector<2x128xf32>
    %374 = arith.addf %372, %373 : vector<2x128xf32>
    %375 = vector.broadcast %273 : vector<1x128xf32> to vector<2x128xf32>
    %376 = arith.mulf %374, %375 : vector<2x128xf32>
    %377 = math.tanh %376 : vector<2x128xf32>
    %378 = vector.broadcast %273 : vector<1x128xf32> to vector<2x128xf32>
    %379 = arith.mulf %377, %378 : vector<2x128xf32>
    %380 = vector.broadcast %274 : vector<1x128xf32> to vector<2x128xf32>
    %381 = arith.addf %379, %380 : vector<2x128xf32>
    %382 = vector.extract_strided_slice %381 {offsets = [0, 0], sizes = [2, 32], strides = [1, 1]} : vector<2x128xf32> to vector<2x32xf32>
    %383 = vector.extract_strided_slice %381 {offsets = [0, 32], sizes = [2, 32], strides = [1, 1]} : vector<2x128xf32> to vector<2x32xf32>
    %384 = vector.extract_strided_slice %381 {offsets = [0, 64], sizes = [2, 32], strides = [1, 1]} : vector<2x128xf32> to vector<2x32xf32>
    %385 = vector.extract_strided_slice %381 {offsets = [0, 96], sizes = [2, 32], strides = [1, 1]} : vector<2x128xf32> to vector<2x32xf32>
    %386 = arith.mulf %383, %369 : vector<2x32xf32>
    %387 = arith.mulf %382, %384 : vector<2x32xf32>
    %388 = arith.addf %386, %387 : vector<2x32xf32>
    %389 = math.tanh %388 : vector<2x32xf32>
    %390 = arith.mulf %385, %389 : vector<2x32xf32>
    %391 = vector.extract_strided_slice %272 {offsets = [12, 0], sizes = [2, 128], strides = [1, 1]} : vector<16x128xf32> to vector<2x128xf32>
    %cst_111 = arith.constant dense<0.000000e+00> : vector<2x128xf32>
    %392 = tpu.matmul %390, %257, %cst_111 {dimension_numbers = #tpu.dot_dimension_numbers<[1], [0], [0], [1], [0, 0, 1, 1], [], []>} : vector<2x32xf32>, vector<32x128xf32>, vector<2x128xf32> -> vector<2x128xf32>
    %393 = arith.addf %391, %392 : vector<2x128xf32>
    %394 = vector.broadcast %273 : vector<1x128xf32> to vector<2x128xf32>
    %395 = arith.mulf %393, %394 : vector<2x128xf32>
    %396 = math.tanh %395 : vector<2x128xf32>
    %397 = vector.broadcast %273 : vector<1x128xf32> to vector<2x128xf32>
    %398 = arith.mulf %396, %397 : vector<2x128xf32>
    %399 = vector.broadcast %274 : vector<1x128xf32> to vector<2x128xf32>
    %400 = arith.addf %398, %399 : vector<2x128xf32>
    %401 = vector.extract_strided_slice %400 {offsets = [0, 0], sizes = [2, 32], strides = [1, 1]} : vector<2x128xf32> to vector<2x32xf32>
    %402 = vector.extract_strided_slice %400 {offsets = [0, 32], sizes = [2, 32], strides = [1, 1]} : vector<2x128xf32> to vector<2x32xf32>
    %403 = vector.extract_strided_slice %400 {offsets = [0, 64], sizes = [2, 32], strides = [1, 1]} : vector<2x128xf32> to vector<2x32xf32>
    %404 = vector.extract_strided_slice %400 {offsets = [0, 96], sizes = [2, 32], strides = [1, 1]} : vector<2x128xf32> to vector<2x32xf32>
    %405 = arith.mulf %402, %388 : vector<2x32xf32>
    %406 = arith.mulf %401, %403 : vector<2x32xf32>
    %407 = arith.addf %405, %406 : vector<2x32xf32>
    %408 = math.tanh %407 : vector<2x32xf32>
    %409 = arith.mulf %404, %408 : vector<2x32xf32>
    %410 = vector.extract_strided_slice %272 {offsets = [14, 0], sizes = [2, 128], strides = [1, 1]} : vector<16x128xf32> to vector<2x128xf32>
    %cst_112 = arith.constant dense<0.000000e+00> : vector<2x128xf32>
    %411 = tpu.matmul %409, %257, %cst_112 {dimension_numbers = #tpu.dot_dimension_numbers<[1], [0], [0], [1], [0, 0, 1, 1], [], []>} : vector<2x32xf32>, vector<32x128xf32>, vector<2x128xf32> -> vector<2x128xf32>
    %412 = arith.addf %410, %411 : vector<2x128xf32>
    %413 = vector.broadcast %273 : vector<1x128xf32> to vector<2x128xf32>
    %414 = arith.mulf %412, %413 : vector<2x128xf32>
    %415 = math.tanh %414 : vector<2x128xf32>
    %416 = vector.broadcast %273 : vector<1x128xf32> to vector<2x128xf32>
    %417 = arith.mulf %415, %416 : vector<2x128xf32>
    %418 = vector.broadcast %274 : vector<1x128xf32> to vector<2x128xf32>
    %419 = arith.addf %417, %418 : vector<2x128xf32>
    %420 = vector.extract_strided_slice %419 {offsets = [0, 0], sizes = [2, 32], strides = [1, 1]} : vector<2x128xf32> to vector<2x32xf32>
    %421 = vector.extract_strided_slice %419 {offsets = [0, 32], sizes = [2, 32], strides = [1, 1]} : vector<2x128xf32> to vector<2x32xf32>
    %422 = vector.extract_strided_slice %419 {offsets = [0, 64], sizes = [2, 32], strides = [1, 1]} : vector<2x128xf32> to vector<2x32xf32>
    %423 = vector.extract_strided_slice %419 {offsets = [0, 96], sizes = [2, 32], strides = [1, 1]} : vector<2x128xf32> to vector<2x32xf32>
    %424 = arith.mulf %421, %407 : vector<2x32xf32>
    %425 = arith.mulf %420, %422 : vector<2x32xf32>
    %426 = arith.addf %424, %425 : vector<2x32xf32>
    %427 = math.tanh %426 : vector<2x32xf32>
    %428 = arith.mulf %423, %427 : vector<2x32xf32>
    %429 = vector.extract_strided_slice %263 {offsets = [0, 0], sizes = [1, 32], strides = [1, 1]} : vector<1x128xf32> to vector<1x32xf32>
    %430 = vector.broadcast %429 : vector<1x32xf32> to vector<2x32xf32>
    %431 = arith.mulf %430, %295 : vector<2x32xf32>
    %cst_113 = arith.constant 1.000000e+00 : f32
    %432 = vector.broadcast %cst_113 : f32 to vector<1x32xf32>
    %433 = arith.subf %432, %429 : vector<1x32xf32>
    %434 = vector.broadcast %433 : vector<1x32xf32> to vector<2x32xf32>
    %435 = arith.mulf %434, %428 : vector<2x32xf32>
    %436 = arith.addf %431, %435 : vector<2x32xf32>
    %c288 = arith.constant 288 : index
    %c0_114 = arith.constant 0 : index
    %437 = vector.load %arg4[%c288, %c0_114] : memref<400x128xf32, #tpu.memory_space<vmem>>, vector<32x128xf32>
    %cst_115 = arith.constant dense<0.000000e+00> : vector<2x128xf32>
    %438 = tpu.matmul %436, %437, %cst_115 {dimension_numbers = #tpu.dot_dimension_numbers<[1], [0], [0], [1], [0, 0, 1, 1], [], []>} : vector<2x32xf32>, vector<32x128xf32>, vector<2x128xf32> -> vector<2x128xf32>
    %c320 = arith.constant 320 : index
    %c0_116 = arith.constant 0 : index
    %439 = vector.load %arg4[%c320, %c0_116] : memref<400x128xf32, #tpu.memory_space<vmem>>, vector<1x128xf32>
    %440 = vector.broadcast %439 : vector<1x128xf32> to vector<2x128xf32>
    %441 = arith.addf %438, %440 : vector<2x128xf32>
    %c0_117 = arith.constant 0 : index
    %c0_118 = arith.constant 0 : index
    %442 = vector.load %arg5[%c0_117, %c0_118] : memref<2x128xf32, #tpu.memory_space<vmem>>, vector<2x128xf32>
    tpu.vector_store %arg5[%c0_117, %c0_118], %441 {strides = array<i32>} : memref<2x128xf32, #tpu.memory_space<vmem>>, vector<2x128xf32>,
    return
  }
  func.func @transform_0(%arg0: i32) -> (i32, i32) {
    %c0_i32 = arith.constant 0 : i32
    %c0_i32_0 = arith.constant 0 : i32
    %c0_i32_1 = arith.constant 0 : i32
    return %c0_i32, %c0_i32_0 : i32, i32
  }
  func.func @transform_1(%arg0: i32) -> (i32, i32) {
    %c0_i32 = arith.constant 0 : i32
    %c0_i32_0 = arith.constant 0 : i32
    %c0_i32_1 = arith.constant 0 : i32
    return %c0_i32, %c0_i32_0 : i32, i32
  }
  func.func @transform_2(%arg0: i32) -> (i32, i32) {
    %c0_i32 = arith.constant 0 : i32
    %c0_i32_0 = arith.constant 0 : i32
    %c0_i32_1 = arith.constant 0 : i32
    return %c0_i32, %c0_i32_0 : i32, i32
  }
  func.func @transform_3(%arg0: i32) -> (i32, i32) {
    %c0_i32 = arith.constant 0 : i32
    %c0_i32_0 = arith.constant 0 : i32
    %c0_i32_1 = arith.constant 0 : i32
    return %c0_i32, %c0_i32_0 : i32, i32
  }
  func.func @transform_4(%arg0: i32) -> (i32, i32) {
    %c0_i32 = arith.constant 0 : i32
    %c0_i32_0 = arith.constant 0 : i32
    %c0_i32_1 = arith.constant 0 : i32
    return %c0_i32, %c0_i32_0 : i32, i32
  }
  func.func @transform_5(%arg0: i32) -> (i32, i32) {
    %c0_i32 = arith.constant 0 : i32
    %c0_i32_0 = arith.constant 0 : i32
    %c0_i32_1 = arith.constant 0 : i32
    return %c0_i32, %c0_i32_0 : i32, i32
  }
}

</mosaic_0001>

<llo_original>
// kernel: forward.1
$region0: #{forward.1}
  #allocation0 [shape = 'u32[]', space=smem, size = 0x4, offset = 0x4, fixed_abs, tag = 'smem constant byte address 0x4 - core index']
  #allocation1 [shape = 'u32[144,128]{1,0:T(1,128)}', space=vmem, size = 0x12000, scoped, tag = 'internal scratch']
  %s0 = inlined_call_operand.vmem [shape: f32[16,32], index: 0, kind: input, shape index: {}]
  %s1 = inlined_call_operand.vmem [shape: f32[16,16], index: 1, kind: input, shape index: {}]
  %s2 = inlined_call_operand.hbm [shape: f32[80,768], index: 2, kind: input, shape index: {}]
  %s3 = inlined_call_operand.vmem [shape: f32[400,128], index: 3, kind: input, shape index: {}]
  %s4 = inlined_call_operand.hbm [shape: f32[2,128], index: 4, kind: output, shape index: {0}]
  %s5 = inlined_call_operand.hbm [shape: f32[2,128], index: 5, kind: output, shape index: {1}]
  %6 = xla_tuple %s4, %s5
  %s7 = sld [smem:[#allocation0]]
  $region38: #{forward.1} parent=0
    _
  %s9 = ssub.s32 1, %s7
  %s10 = scalar_select 0, %s9, %s7
  $region1: #{forward.1} parent=0
    #allocation2 [shape = 'u8[245760]{0}', space=vmem, size = 0x3c000, scoped, tag = 'input window, operand 2, single buffered']
    #allocation3 [shape = 's32[1]{0}', space=sflag, size = 0x4, scoped, tag = 'scoped memory for forward.1']
    #allocation4 [shape = 's32[1]{0}', space=sflag, size = 0x4, scoped, tag = 'scoped memory for forward.1']
    #allocation5 [shape = 'u8[1024]{0}', space=vmem, size = 0x400, scoped, tag = 'output window, operand 0, single buffered']
    #allocation6 [shape = 'u8[1024]{0}', space=vmem, size = 0x400, scoped, tag = 'output window, operand 1, single buffered']
    #allocation7 [shape = 's32[1]{0}', space=sflag, size = 0x4, scoped, tag = 'scoped memory for forward.1']
    %11 = vsyncpa [#allocation3], 0
    %12 = vsyncpa [#allocation4], 0
    %13 = vsyncpa [#allocation7], 0
    // Predicated region
    $region2: #{forward.1} parent=1 // pred_check
      _
    $region3: #{forward.1} parent=1 // pred_check_branch
      %15 = sbr.rel (0) target = $region5
    $region4: #{forward.1} parent=1 // pred_region
      _
    $region5: #{forward.1} parent=1 // pred_fallthru
      _
    // Predicated region
    $region6: #{forward.1} parent=1 // pred_check
      _
    $region7: #{forward.1} parent=1 // pred_check_branch
      %17 = sbr.rel (0) target = $region9
    $region8: #{forward.1} parent=1 // pred_region
      _
    $region9: #{forward.1} parent=1 // pred_fallthru
      _
    // Predicated region
    $region10: #{forward.1} parent=1 // pred_check
      _
    $region11: #{forward.1} parent=1 // pred_check_branch
      %19 = sbr.rel (0) target = $region13
    $region12: #{forward.1} parent=1 // pred_region
      %s21 = ssub.s32 7680, 7680
      %22 = vsyncadd [#allocation3], %s21
      %s23 = sshll.u32 [#allocation2], 4
      %s24 = int_to_ptr.vmem [resolvable:$true] %s23
      %29 = dma.hbm_to_vmem [thread:$0]  %s2, 7680, %s24, [#allocation3], 768, 768, 48
    $region13: #{forward.1} parent=1 // pred_fallthru
      _
    // Predicated region
    $region14: #{forward.1} parent=1 // pred_check
      _
    $region15: #{forward.1} parent=1 // pred_check_branch
      %31 = sbr.rel (0) target = $region17
    $region16: #{forward.1} parent=1 // pred_region
      _
    $region17: #{forward.1} parent=1 // pred_fallthru
      _
    // Predicated region
    $region18: #{forward.1} parent=1 // pred_check
      _
    $region19: #{forward.1} parent=1 // pred_check_branch
      %33 = sbr.rel (0) target = $region21
    $region20: #{forward.1} parent=1 // pred_region
      %34 = dma.done [#allocation3], 7680
    $region21: #{forward.1} parent=1 // pred_fallthru
      _
    %v35 = vld [vmem:[%s0] sm:$0xff]
    %v36 = vld [vmem:[%s0 + $0x8] sm:$0xff]
    %v37 = vld [vmem:[%s3] sm:$0x1]
    %v38 = vld [vmem:[%s3 + $0x1] sm:$0x1]
    %vm39 = vcmask 261120
    %v40 = vsel %vm39, %v35, 0.0
    %41 = vadd.xlane.f32.xlu0 %v40
    %v42 = vpop.xlane.xlu0 %41
    %v43 = vsel %vm39, %v36, 0.0
    %44 = vadd.xlane.f32.xlu0 %v43
    %v45 = vpop.xlane.xlu0 %44
    %v46 = vrcp.pop 32.0
    %v47 = vmul.f32 %v42, %v46
    %v48 = vmul.f32 %v45, %v46
    %v49 = vsub.f32 %v35, %v47
    %v50 = vsub.f32 %v36, %v48
    %v51 = vmul.f32 %v49, %v49
    %v52 = vmul.f32 %v50, %v50
    %v53 = vsel %vm39, %v51, 0.0
    %54 = vadd.xlane.f32.xlu0 %v53
    %v55 = vpop.xlane.xlu0 %54
    %v56 = vsel %vm39, %v52, 0.0
    %57 = vadd.xlane.f32.xlu0 %v56
    %v58 = vpop.xlane.xlu0 %57
    %v59 = vmul.f32 %v55, %v46
    %v60 = vmul.f32 %v58, %v46
    %v61 = vadd.f32 %v59, 1e-12
    %v62 = vadd.f32 %v60, 1e-12
    %v63 = vrsqrt.pop %v61
    %v64 = vrsqrt.pop %v62
    %v65 = vmul.f32 %v49, %v63
    %v66 = vmul.f32 %v50, %v64
    %v67 = vlaneseq
    %v68 = vshrl.u32 %v67, 7
    %v69 = vsub.s32 0, %v68
    %v70 = vrot.slane %v37, %v69
    %v71 = vmul.f32 %v65, %v70
    %v72 = vmul.f32 %v66, %v70
    %v73 = vlaneseq
    %v74 = vshrl.u32 %v73, 7
    %v75 = vsub.s32 0, %v74
    %v76 = vrot.slane %v38, %v75
    %v77 = vadd.f32 %v71, %v76
    %v78 = vadd.f32 %v72, %v76
    %v79 = vld [vmem:[%s1] sm:$0xff]
    %v80 = vld [vmem:[%s1 + $0x8] sm:$0xff]
    %v81 = vld [vmem:[#allocation2] sm:$0xff]
    %v82 = vld [vmem:[#allocation2 + $0x8] sm:$0xff]
    %v83 = vld [vmem:[#allocation2 + $0x10] sm:$0xff]
    %v84 = vld [vmem:[#allocation2 + $0x18] sm:$0xff]
    %v85 = vld [vmem:[#allocation2 + $0x20] sm:$0xff]
    %v86 = vld [vmem:[#allocation2 + $0x28] sm:$0xff]
    %v87 = vld [vmem:[#allocation2 + $0x30] sm:$0xff]
    %v88 = vld [vmem:[#allocation2 + $0x38] sm:$0xff]
    %v89 = vld [vmem:[#allocation2 + $0x40] sm:$0xff]
    %v90 = vld [vmem:[#allocation2 + $0x48] sm:$0xff]
    %v91 = vld [vmem:[#allocation2 + $0x50] sm:$0xff]
    %v92 = vld [vmem:[#allocation2 + $0x58] sm:$0xff]
    %v93 = vld [vmem:[#allocation2 + $0x60] sm:$0xff]
    %v94 = vld [vmem:[#allocation2 + $0x68] sm:$0xff]
    %v95 = vld [vmem:[#allocation2 + $0x70] sm:$0xff]
    %v96 = vld [vmem:[#allocation2 + $0x78] sm:$0xff]
    %v97 = vld [vmem:[#allocation2 + $0x80] sm:$0xff]
    %v98 = vld [vmem:[#allocation2 + $0x88] sm:$0xff]
    %v99 = vld [vmem:[#allocation2 + $0x90] sm:$0xff]
    %v100 = vld [vmem:[#allocation2 + $0x98] sm:$0xff]
    %v101 = vld [vmem:[#allocation2 + $0xa0] sm:$0xff]
    %v102 = vld [vmem:[#allocation2 + $0xa8] sm:$0xff]
    %v103 = vld [vmem:[#allocation2 + $0xb0] sm:$0xff]
    %v104 = vld [vmem:[#allocation2 + $0xb8] sm:$0xff]
    %s105 = scalar_lea.vmem [#allocation2], 192
    %v106 = vld [vmem:[%s105] ss:$8 sm:$0xf]
    %v107 = vld [vmem:[%s105] ss:$8 sm:$0x30]
    %v108 = vor.u32 %v106, %v107
    %v110 = vlaneseq
    %v111 = vshrl.u32 %v110, 7
    %v112 = vsub.s32 0, %v111
    %v113 = vrot.slane %v108, %v112
    %v114 = vlaneseq
    %v115 = vshrl.u32 %v114, 7
    %v116 = vsub.s32 1, %v115
    %v117 = vrot.slane %v108, %v116
    %v118 = vlaneseq
    %v119 = vshrl.u32 %v118, 7
    %v120 = vsub.s32 2, %v119
    %v121 = vrot.slane %v108, %v120
    %v122 = vlaneseq
    %v123 = vshrl.u32 %v122, 7
    %v124 = vsub.s32 3, %v123
    %v125 = vrot.slane %v108, %v124
    %v126 = vlaneseq
    %v127 = vshrl.u32 %v126, 7
    %v128 = vsub.s32 4, %v127
    %v129 = vrot.slane %v108, %v128
    %v130 = vlaneseq
    %v131 = vshrl.u32 %v130, 7
    %v132 = vsub.s32 5, %v131
    %v133 = vrot.slane %v108, %v132
    %v141 = vsel %vm39, %v77, 0
    %v144 = vsel %vm39, %v78, 0
    %146 = vmatprep.subr.mxu0 0.0
    %147 = vmatpush1.msra.mxu0 0.0
    %148 = vmatprep.subr.mxu0 0.0
    %149 = vmatpush1.msra.mxu0 0.0
    %150 = vmatprep.subr.mxu0 0.0
    %151 = vmatpush1.msra.mxu0 0.0
    %152 = vmatprep.subr.mxu0 0.0
    %153 = vmatpush1.msra.mxu0 0.0
    %154 = vmatprep.subr.mxu0 0.0
    %155 = vmatpush1.msra.mxu0 0.0
    %156 = vmatprep.subr.mxu0 0.0
    %157 = vmatpush1.msra.mxu0 0.0
    %158 = vmatprep.subr.mxu0 0.0
    %159 = vmatpush1.msra.mxu0 0.0
    %160 = vmatprep.subr.mxu0 0.0
    %161 = vmatpush1.msra.mxu0 0.0
    %162 = vmatprep.subr.mxu0 0.0
    %163 = vmatpush1.msra.mxu0 0.0
    %164 = vmatprep.subr.mxu0 0.0
    %165 = vmatpush1.msra.mxu0 0.0
    %166 = vmatprep.subr.mxu0 0.0
    %167 = vmatpush1.msra.mxu0 0.0
    %168 = vmatprep.subr.mxu0 0.0
    %169 = vmatpush1.msra.mxu0 0.0
    %170 = vmatprep.subr.mxu0 %v100
    %171 = vmatpush1.msra.mxu0 %v99
    %172 = vmatprep.subr.mxu0 %v94
    %173 = vmatpush1.msra.mxu0 %v93
    %174 = vmatprep.subr.mxu0 %v88
    %175 = vmatpush1.msra.mxu0 %v87
    %176 = vmatprep.subr.mxu0 %v82
    %177 = vmatpush1.msra.mxu0 %v81
    %178 = vmatprep.subr.mxu0 0.0
    %179 = vmatpush2.msra.mxu0 0.0
    %180 = vmatprep.subr.mxu0 0.0
    %181 = vmatpush2.msra.mxu0 0.0
    %182 = vmatprep.subr.mxu0 0.0
    %183 = vmatpush2.msra.mxu0 0.0
    %184 = vmatprep.subr.mxu0 0.0
    %185 = vmatpush2.msra.mxu0 0.0
    %186 = vmatprep.subr.mxu0 0.0
    %187 = vmatpush2.msra.mxu0 0.0
    %188 = vmatprep.subr.mxu0 0.0
    %189 = vmatpush2.msra.mxu0 0.0
    %190 = vmatprep.subr.mxu0 0.0
    %191 = vmatpush2.msra.mxu0 0.0
    %192 = vmatprep.subr.mxu0 0.0
    %193 = vmatpush2.msra.mxu0 0.0
    %194 = vmatprep.subr.mxu0 0.0
    %195 = vmatpush2.msra.mxu0 0.0
    %196 = vmatprep.subr.mxu0 0.0
    %197 = vmatpush2.msra.mxu0 0.0
    %198 = vmatprep.subr.mxu0 0.0
    %199 = vmatpush2.msra.mxu0 0.0
    %200 = vmatprep.subr.mxu0 0.0
    %201 = vmatpush2.msra.mxu0 0.0
    %202 = vmatprep.subr.mxu0 0.0
    %203 = vmatpush2.msra.mxu0 0.0
    %204 = vmatprep.subr.mxu0 0.0
    %205 = vmatpush2.msra.mxu0 0.0
    %206 = vmatprep.subr.mxu0 0.0
    %207 = vmatpush2.msra.mxu0 0.0
    %208 = vmatprep.subr.mxu0 0.0
    %209 = vmatpush2.msra.mxu0 0.0
    %210 = vmatprep.mubr.f32.mxu0 0.0
    %211 = vmatmul.mubr.f32.gmra.mxu0 %v141
    %v212 = vpop.f32.mrf.mxu0
    %v213 = vadd.f32 %v113, %v212
    %v214 = vpop.f32.mrf.mxu0
    %v215 = vadd.f32 %v117, %v214
    %216 = vmatprep.mubr.f32.mxu0 0.0
    %217 = vmatmul.mubr.f32.gmra.mxu0 %v144
    %v218 = vpop.f32.mrf.mxu0
    %v219 = vadd.f32 %v113, %v218
    %v220 = vpop.f32.mrf.mxu0
    %v221 = vadd.f32 %v117, %v220
    %222 = vdwg.mxu0
    %223 = vmatprep.subr.mxu0 0.0
    %224 = vmatpush1.msra.mxu0 0.0
    %225 = vmatprep.subr.mxu0 0.0
    %226 = vmatpush1.msra.mxu0 0.0
    %227 = vmatprep.subr.mxu0 0.0
    %228 = vmatpush1.msra.mxu0 0.0
    %229 = vmatprep.subr.mxu0 0.0
    %230 = vmatpush1.msra.mxu0 0.0
    %231 = vmatprep.subr.mxu0 0.0
    %232 = vmatpush1.msra.mxu0 0.0
    %233 = vmatprep.subr.mxu0 0.0
    %234 = vmatpush1.msra.mxu0 0.0
    %235 = vmatprep.subr.mxu0 0.0
    %236 = vmatpush1.msra.mxu0 0.0
    %237 = vmatprep.subr.mxu0 0.0
    %238 = vmatpush1.msra.mxu0 0.0
    %239 = vmatprep.subr.mxu0 0.0
    %240 = vmatpush1.msra.mxu0 0.0
    %241 = vmatprep.subr.mxu0 0.0
    %242 = vmatpush1.msra.mxu0 0.0
    %243 = vmatprep.subr.mxu0 0.0
    %244 = vmatpush1.msra.mxu0 0.0
    %245 = vmatprep.subr.mxu0 0.0
    %246 = vmatpush1.msra.mxu0 0.0
    %247 = vmatprep.subr.mxu0 %v102
    %248 = vmatpush1.msra.mxu0 %v101
    %249 = vmatprep.subr.mxu0 %v96
    %250 = vmatpush1.msra.mxu0 %v95
    %251 = vmatprep.subr.mxu0 %v90
    %252 = vmatpush1.msra.mxu0 %v89
    %253 = vmatprep.subr.mxu0 %v84
    %254 = vmatpush1.msra.mxu0 %v83
    %255 = vmatprep.subr.mxu0 0.0
    %256 = vmatpush2.msra.mxu0 0.0
    %257 = vmatprep.subr.mxu0 0.0
    %258 = vmatpush2.msra.mxu0 0.0
    %259 = vmatprep.subr.mxu0 0.0
    %260 = vmatpush2.msra.mxu0 0.0
    %261 = vmatprep.subr.mxu0 0.0
    %262 = vmatpush2.msra.mxu0 0.0
    %263 = vmatprep.subr.mxu0 0.0
    %264 = vmatpush2.msra.mxu0 0.0
    %265 = vmatprep.subr.mxu0 0.0
    %266 = vmatpush2.msra.mxu0 0.0
    %267 = vmatprep.subr.mxu0 0.0
    %268 = vmatpush2.msra.mxu0 0.0
    %269 = vmatprep.subr.mxu0 0.0
    %270 = vmatpush2.msra.mxu0 0.0
    %271 = vmatprep.subr.mxu0 0.0
    %272 = vmatpush2.msra.mxu0 0.0
    %273 = vmatprep.subr.mxu0 0.0
    %274 = vmatpush2.msra.mxu0 0.0
    %275 = vmatprep.subr.mxu0 0.0
    %276 = vmatpush2.msra.mxu0 0.0
    %277 = vmatprep.subr.mxu0 0.0
    %278 = vmatpush2.msra.mxu0 0.0
    %279 = vmatprep.subr.mxu0 0.0
    %280 = vmatpush2.msra.mxu0 0.0
    %281 = vmatprep.subr.mxu0 0.0
    %282 = vmatpush2.msra.mxu0 0.0
    %283 = vmatprep.subr.mxu0 0.0
    %284 = vmatpush2.msra.mxu0 0.0
    %285 = vmatprep.subr.mxu0 0.0
    %286 = vmatpush2.msra.mxu0 0.0
    %287 = vmatprep.mubr.f32.mxu0 0.0
    %288 = vmatmul.mubr.f32.gmra.mxu0 %v141
    %v289 = vpop.f32.mrf.mxu0
    %v290 = vadd.f32 %v121, %v289
    %v291 = vpop.f32.mrf.mxu0
    %v292 = vadd.f32 %v125, %v291
    %293 = vmatprep.mubr.f32.mxu0 0.0
    %294 = vmatmul.mubr.f32.gmra.mxu0 %v144
    %v295 = vpop.f32.mrf.mxu0
    %v296 = vadd.f32 %v121, %v295
    %v297 = vpop.f32.mrf.mxu0
    %v298 = vadd.f32 %v125, %v297
    %299 = vdwg.mxu0
    %300 = vmatprep.subr.mxu0 0.0
    %301 = vmatpush1.msra.mxu0 0.0
    %302 = vmatprep.subr.mxu0 0.0
    %303 = vmatpush1.msra.mxu0 0.0
    %304 = vmatprep.subr.mxu0 0.0
    %305 = vmatpush1.msra.mxu0 0.0
    %306 = vmatprep.subr.mxu0 0.0
    %307 = vmatpush1.msra.mxu0 0.0
    %308 = vmatprep.subr.mxu0 0.0
    %309 = vmatpush1.msra.mxu0 0.0
    %310 = vmatprep.subr.mxu0 0.0
    %311 = vmatpush1.msra.mxu0 0.0
    %312 = vmatprep.subr.mxu0 0.0
    %313 = vmatpush1.msra.mxu0 0.0
    %314 = vmatprep.subr.mxu0 0.0
    %315 = vmatpush1.msra.mxu0 0.0
    %316 = vmatprep.subr.mxu0 0.0
    %317 = vmatpush1.msra.mxu0 0.0
    %318 = vmatprep.subr.mxu0 0.0
    %319 = vmatpush1.msra.mxu0 0.0
    %320 = vmatprep.subr.mxu0 0.0
    %321 = vmatpush1.msra.mxu0 0.0
    %322 = vmatprep.subr.mxu0 0.0
    %323 = vmatpush1.msra.mxu0 0.0
    %324 = vmatprep.subr.mxu0 %v104
    %325 = vmatpush1.msra.mxu0 %v103
    %326 = vmatprep.subr.mxu0 %v98
    %327 = vmatpush1.msra.mxu0 %v97
    %328 = vmatprep.subr.mxu0 %v92
    %329 = vmatpush1.msra.mxu0 %v91
    %330 = vmatprep.subr.mxu0 %v86
    %331 = vmatpush1.msra.mxu0 %v85
    %332 = vmatprep.subr.mxu0 0.0
    %333 = vmatpush2.msra.mxu0 0.0
    %334 = vmatprep.subr.mxu0 0.0
    %335 = vmatpush2.msra.mxu0 0.0
    %336 = vmatprep.subr.mxu0 0.0
    %337 = vmatpush2.msra.mxu0 0.0
    %338 = vmatprep.subr.mxu0 0.0
    %339 = vmatpush2.msra.mxu0 0.0
    %340 = vmatprep.subr.mxu0 0.0
    %341 = vmatpush2.msra.mxu0 0.0
    %342 = vmatprep.subr.mxu0 0.0
    %343 = vmatpush2.msra.mxu0 0.0
    %344 = vmatprep.subr.mxu0 0.0
    %345 = vmatpush2.msra.mxu0 0.0
    %346 = vmatprep.subr.mxu0 0.0
    %347 = vmatpush2.msra.mxu0 0.0
    %348 = vmatprep.subr.mxu0 0.0
    %349 = vmatpush2.msra.mxu0 0.0
    %350 = vmatprep.subr.mxu0 0.0
    %351 = vmatpush2.msra.mxu0 0.0
    %352 = vmatprep.subr.mxu0 0.0
    %353 = vmatpush2.msra.mxu0 0.0
    %354 = vmatprep.subr.mxu0 0.0
    %355 = vmatpush2.msra.mxu0 0.0
    %356 = vmatprep.subr.mxu0 0.0
    %357 = vmatpush2.msra.mxu0 0.0
    %358 = vmatprep.subr.mxu0 0.0
    %359 = vmatpush2.msra.mxu0 0.0
    %360 = vmatprep.subr.mxu0 0.0
    %361 = vmatpush2.msra.mxu0 0.0
    %362 = vmatprep.subr.mxu0 0.0
    %363 = vmatpush2.msra.mxu0 0.0
    %364 = vmatprep.mubr.f32.mxu0 0.0
    %365 = vmatmul.mubr.f32.gmra.mxu0 %v141
    %v366 = vpop.f32.mrf.mxu0
    %v367 = vadd.f32 %v129, %v366
    %v368 = vpop.f32.mrf.mxu0
    %v369 = vadd.f32 %v133, %v368
    %370 = vmatprep.mubr.f32.mxu0 0.0
    %371 = vmatmul.mubr.f32.gmra.mxu0 %v144
    %v372 = vpop.f32.mrf.mxu0
    %v373 = vadd.f32 %v129, %v372
    %v374 = vpop.f32.mrf.mxu0
    %v375 = vadd.f32 %v133, %v374
    %376 = vdwg.mxu0
    %v377 = vld [vmem:[%s3 + $0x8] sm:$0x1]
    %378 = vmatprep.subr.mxu0 0.0
    %379 = vmatpush1.xpose.msra.mxu0 0.0
    %380 = vmatprep.subr.mxu0 0.0
    %381 = vmatpush1.xpose.msra.mxu0 0.0
    %382 = vmatprep.subr.mxu0 0.0
    %383 = vmatpush1.xpose.msra.mxu0 0.0
    %384 = vmatprep.subr.mxu0 0.0
    %385 = vmatpush1.xpose.msra.mxu0 0.0
    %386 = vmatprep.subr.mxu0 0.0
    %387 = vmatpush1.xpose.msra.mxu0 0.0
    %388 = vmatprep.subr.mxu0 0.0
    %389 = vmatpush1.xpose.msra.mxu0 0.0
    %390 = vmatprep.subr.mxu0 0.0
    %391 = vmatpush1.xpose.msra.mxu0 0.0
    %392 = vmatprep.subr.mxu0 0.0
    %393 = vmatpush1.xpose.msra.mxu0 0.0
    %394 = vmatprep.subr.mxu0 0.0
    %395 = vmatpush1.xpose.msra.mxu0 0.0
    %396 = vmatprep.subr.mxu0 0.0
    %397 = vmatpush1.xpose.msra.mxu0 0.0
    %398 = vmatprep.subr.mxu0 0.0
    %399 = vmatpush1.xpose.msra.mxu0 0.0
    %400 = vmatprep.subr.mxu0 0.0
    %401 = vmatpush1.xpose.msra.mxu0 0.0
    %402 = vmatprep.subr.mxu0 0.0
    %403 = vmatpush1.xpose.msra.mxu0 0.0
    %404 = vmatprep.subr.mxu0 0.0
    %405 = vmatpush1.xpose.msra.mxu0 0.0
    %406 = vmatprep.subr.mxu0 0.0
    %407 = vmatpush1.xpose.msra.mxu0 %v221
    %408 = vmatprep.subr.mxu0 0.0
    %409 = vmatpush1.xpose.msra.mxu0 %v215
    %410 = vmatprep.subr.mxu0 0.0
    %411 = vmatpush2.xpose.msra.mxu0 0.0
    %412 = vmatprep.subr.mxu0 0.0
    %413 = vmatpush2.xpose.msra.mxu0 0.0
    %414 = vmatprep.subr.mxu0 0.0
    %415 = vmatpush2.xpose.msra.mxu0 0.0
    %416 = vmatprep.subr.mxu0 0.0
    %417 = vmatpush2.xpose.msra.mxu0 0.0
    %418 = vmatprep.subr.mxu0 0.0
    %419 = vmatpush2.xpose.msra.mxu0 0.0
    %420 = vmatprep.subr.mxu0 0.0
    %421 = vmatpush2.xpose.msra.mxu0 0.0
    %422 = vmatprep.subr.mxu0 0.0
    %423 = vmatpush2.xpose.msra.mxu0 0.0
    %424 = vmatprep.subr.mxu0 0.0
    %425 = vmatpush2.xpose.msra.mxu0 0.0
    %426 = vmatprep.subr.mxu0 0.0
    %427 = vmatpush2.xpose.msra.mxu0 0.0
    %428 = vmatprep.subr.mxu0 0.0
    %429 = vmatpush2.xpose.msra.mxu0 0.0
    %430 = vmatprep.subr.mxu0 0.0
    %431 = vmatpush2.xpose.msra.mxu0 0.0
    %432 = vmatprep.subr.mxu0 0.0
    %433 = vmatpush2.xpose.msra.mxu0 0.0
    %434 = vmatprep.subr.mxu0 0.0
    %435 = vmatpush2.xpose.msra.mxu0 0.0
    %436 = vmatprep.subr.mxu0 0.0
    %437 = vmatpush2.xpose.msra.mxu0 0.0
    %438 = vmatprep.subr.mxu0 0.0
    %439 = vmatpush2.xpose.msra.mxu0 0.0
    %440 = vmatprep.subr.mxu0 0.0
    %441 = vmatpush2.xpose.msra.mxu0 0.0
    %442 = vmatprep.mubr.f32.mxu0 0.0
    %443 = vmatmul.mubr.f32.gmra.mxu0 %v213
    %v444 = vpop.f32.mrf.mxu0
    %v445 = vadd.f32 0.0, %v444
    %v446 = vpop.f32.mrf.mxu0
    %447 = vmatprep.mubr.f32.mxu0 0.0
    %448 = vmatmul.mubr.f32.gmra.mxu0 %v219
    %v449 = vpop.f32.mrf.mxu0
    %v450 = vadd.f32 0.0, %v449
    %v451 = vpop.f32.mrf.mxu0
    %452 = vdwg.mxu0
    %v453 = vmul.f32 %v445, 0.25
    %v454 = vmul.f32 %v450, 0.25
    %v455 = vadd.f32 %v453, %v79
    %v456 = vadd.f32 %v454, %v80
    %vm457 = vcmask 130048
    %v458 = vsel %vm457, %v455, -inf
    %459 = vmax.xlane.f32.xlu0 %v458
    %v460 = vpop.xlane.xlu0 %459
    %v461 = vsel %vm457, %v456, -inf
    %462 = vmax.xlane.f32.xlu0 %v461
    %v463 = vpop.xlane.xlu0 %462
    %v464 = vsub.f32 %v455, %v460
    %v465 = vsub.f32 %v456, %v463
    %v466 = vmul.f32 %v464, 1.442695
    %v467 = vpow.pop %v466
    %v468 = vmul.f32 %v465, 1.442695
    %v469 = vpow.pop %v468
    %v470 = vsel %vm457, %v467, 0.0
    %471 = vadd.xlane.f32.xlu0 %v470
    %v472 = vpop.xlane.xlu0 %471
    %v473 = vsel %vm457, %v469, 0.0
    %474 = vadd.xlane.f32.xlu0 %v473
    %v475 = vpop.xlane.xlu0 %474
    %v476 = vrcp.pop %v472
    %v477 = vmul.f32 %v467, %v476
    %v478 = vrcp.pop %v475
    %v479 = vmul.f32 %v469, %v478
    %v481 = vsel %vm457, %v477, 0
    %v484 = vsel %vm457, %v479, 0
    %486 = vmatprep.subr.mxu0 0.0
    %487 = vmatpush1.msra.mxu0 0.0
    %488 = vmatprep.subr.mxu0 0.0
    %489 = vmatpush1.msra.mxu0 0.0
    %490 = vmatprep.subr.mxu0 0.0
    %491 = vmatpush1.msra.mxu0 0.0
    %492 = vmatprep.subr.mxu0 0.0
    %493 = vmatpush1.msra.mxu0 0.0
    %494 = vmatprep.subr.mxu0 0.0
    %495 = vmatpush1.msra.mxu0 0.0
    %496 = vmatprep.subr.mxu0 0.0
    %497 = vmatpush1.msra.mxu0 0.0
    %498 = vmatprep.subr.mxu0 0.0
    %499 = vmatpush1.msra.mxu0 0.0
    %500 = vmatprep.subr.mxu0 0.0
    %501 = vmatpush1.msra.mxu0 0.0
    %502 = vmatprep.subr.mxu0 0.0
    %503 = vmatpush1.msra.mxu0 0.0
    %504 = vmatprep.subr.mxu0 0.0
    %505 = vmatpush1.msra.mxu0 0.0
    %506 = vmatprep.subr.mxu0 0.0
    %507 = vmatpush1.msra.mxu0 0.0
    %508 = vmatprep.subr.mxu0 0.0
    %509 = vmatpush1.msra.mxu0 0.0
    %510 = vmatprep.subr.mxu0 0.0
    %511 = vmatpush1.msra.mxu0 0.0
    %512 = vmatprep.subr.mxu0 0.0
    %513 = vmatpush1.msra.mxu0 0.0
    %514 = vmatprep.subr.mxu0 0.0
    %515 = vmatpush1.msra.mxu0 %v373
    %516 = vmatprep.subr.mxu0 0.0
    %517 = vmatpush1.msra.mxu0 %v367
    %518 = vmatprep.subr.mxu0 0.0
    %519 = vmatpush2.msra.mxu0 0.0
    %520 = vmatprep.subr.mxu0 0.0
    %521 = vmatpush2.msra.mxu0 0.0
    %522 = vmatprep.subr.mxu0 0.0
    %523 = vmatpush2.msra.mxu0 0.0
    %524 = vmatprep.subr.mxu0 0.0
    %525 = vmatpush2.msra.mxu0 0.0
    %526 = vmatprep.subr.mxu0 0.0
    %527 = vmatpush2.msra.mxu0 0.0
    %528 = vmatprep.subr.mxu0 0.0
    %529 = vmatpush2.msra.mxu0 0.0
    %530 = vmatprep.subr.mxu0 0.0
    %531 = vmatpush2.msra.mxu0 0.0
    %532 = vmatprep.subr.mxu0 0.0
    %533 = vmatpush2.msra.mxu0 0.0
    %534 = vmatprep.subr.mxu0 0.0
    %535 = vmatpush2.msra.mxu0 0.0
    %536 = vmatprep.subr.mxu0 0.0
    %537 = vmatpush2.msra.mxu0 0.0
    %538 = vmatprep.subr.mxu0 0.0
    %539 = vmatpush2.msra.mxu0 0.0
    %540 = vmatprep.subr.mxu0 0.0
    %541 = vmatpush2.msra.mxu0 0.0
    %542 = vmatprep.subr.mxu0 0.0
    %543 = vmatpush2.msra.mxu0 0.0
    %544 = vmatprep.subr.mxu0 0.0
    %545 = vmatpush2.msra.mxu0 0.0
    %546 = vmatprep.subr.mxu0 0.0
    %547 = vmatpush2.msra.mxu0 0.0
    %548 = vmatprep.subr.mxu0 0.0
    %549 = vmatpush2.msra.mxu0 0.0
    %550 = vmatprep.mubr.f32.mxu0 0.0
    %551 = vmatmul.mubr.f32.gmra.mxu0 %v481
    %v552 = vpop.f32.mrf.mxu0
    %v553 = vadd.f32 0.0, %v552
    %v554 = vpop.f32.mrf.mxu0
    %555 = vmatprep.mubr.f32.mxu0 0.0
    %556 = vmatmul.mubr.f32.gmra.mxu0 %v484
    %v557 = vpop.f32.mrf.mxu0
    %v558 = vadd.f32 0.0, %v557
    %v559 = vpop.f32.mrf.mxu0
    %560 = vdwg.mxu0
    %v561 = vlaneseq
    %v562 = vshrl.u32 %v561, 7
    %v563 = vsub.s32 0, %v562
    %v564 = vrot.slane %v377, %v563
    %v565 = vadd.f32 %v564, %v553
    %v566 = vadd.f32 %v564, %v558
    %567 = vmatprep.subr.mxu0 0.0
    %568 = vmatpush1.xpose.msra.mxu0 0.0
    %569 = vmatprep.subr.mxu0 0.0
    %570 = vmatpush1.xpose.msra.mxu0 0.0
    %571 = vmatprep.subr.mxu0 0.0
    %572 = vmatpush1.xpose.msra.mxu0 0.0
    %573 = vmatprep.subr.mxu0 0.0
    %574 = vmatpush1.xpose.msra.mxu0 0.0
    %575 = vmatprep.subr.mxu0 0.0
    %576 = vmatpush1.xpose.msra.mxu0 0.0
    %577 = vmatprep.subr.mxu0 0.0
    %578 = vmatpush1.xpose.msra.mxu0 0.0
    %579 = vmatprep.subr.mxu0 0.0
    %580 = vmatpush1.xpose.msra.mxu0 0.0
    %581 = vmatprep.subr.mxu0 0.0
    %582 = vmatpush1.xpose.msra.mxu0 0.0
    %583 = vmatprep.subr.mxu0 0.0
    %584 = vmatpush1.xpose.msra.mxu0 0.0
    %585 = vmatprep.subr.mxu0 0.0
    %586 = vmatpush1.xpose.msra.mxu0 0.0
    %587 = vmatprep.subr.mxu0 0.0
    %588 = vmatpush1.xpose.msra.mxu0 0.0
    %589 = vmatprep.subr.mxu0 0.0
    %590 = vmatpush1.xpose.msra.mxu0 0.0
    %591 = vmatprep.subr.mxu0 0.0
    %592 = vmatpush1.xpose.msra.mxu0 0.0
    %593 = vmatprep.subr.mxu0 0.0
    %594 = vmatpush1.xpose.msra.mxu0 0.0
    %595 = vmatprep.subr.mxu0 0.0
    %596 = vmatpush1.xpose.msra.mxu0 %v298
    %597 = vmatprep.subr.mxu0 0.0
    %598 = vmatpush1.xpose.msra.mxu0 %v292
    %599 = vmatprep.subr.mxu0 0.0
    %600 = vmatpush2.xpose.msra.mxu0 0.0
    %601 = vmatprep.subr.mxu0 0.0
    %602 = vmatpush2.xpose.msra.mxu0 0.0
    %603 = vmatprep.subr.mxu0 0.0
    %604 = vmatpush2.xpose.msra.mxu0 0.0
    %605 = vmatprep.subr.mxu0 0.0
    %606 = vmatpush2.xpose.msra.mxu0 0.0
    %607 = vmatprep.subr.mxu0 0.0
    %608 = vmatpush2.xpose.msra.mxu0 0.0
    %609 = vmatprep.subr.mxu0 0.0
    %610 = vmatpush2.xpose.msra.mxu0 0.0
    %611 = vmatprep.subr.mxu0 0.0
    %612 = vmatpush2.xpose.msra.mxu0 0.0
    %613 = vmatprep.subr.mxu0 0.0
    %614 = vmatpush2.xpose.msra.mxu0 0.0
    %615 = vmatprep.subr.mxu0 0.0
    %616 = vmatpush2.xpose.msra.mxu0 0.0
    %617 = vmatprep.subr.mxu0 0.0
    %618 = vmatpush2.xpose.msra.mxu0 0.0
    %619 = vmatprep.subr.mxu0 0.0
    %620 = vmatpush2.xpose.msra.mxu0 0.0
    %621 = vmatprep.subr.mxu0 0.0
    %622 = vmatpush2.xpose.msra.mxu0 0.0
    %623 = vmatprep.subr.mxu0 0.0
    %624 = vmatpush2.xpose.msra.mxu0 0.0
    %625 = vmatprep.subr.mxu0 0.0
    %626 = vmatpush2.xpose.msra.mxu0 0.0
    %627 = vmatprep.subr.mxu0 0.0
    %628 = vmatpush2.xpose.msra.mxu0 0.0
    %629 = vmatprep.subr.mxu0 0.0
    %630 = vmatpush2.xpose.msra.mxu0 0.0
    %631 = vmatprep.mubr.f32.mxu0 0.0
    %632 = vmatmul.mubr.f32.gmra.mxu0 %v290
    %v633 = vpop.f32.mrf.mxu0
    %v634 = vadd.f32 0.0, %v633
    %v635 = vpop.f32.mrf.mxu0
    %636 = vmatprep.mubr.f32.mxu0 0.0
    %637 = vmatmul.mubr.f32.gmra.mxu0 %v296
    %v638 = vpop.f32.mrf.mxu0
    %v639 = vadd.f32 0.0, %v638
    %v640 = vpop.f32.mrf.mxu0
    %641 = vdwg.mxu0
    %v642 = vmul.f32 %v634, 0.25
    %v643 = vmul.f32 %v639, 0.25
    %v644 = vadd.f32 %v642, %v79
    %v645 = vadd.f32 %v643, %v80
    %v646 = vsel %vm457, %v644, -inf
    %647 = vmax.xlane.f32.xlu0 %v646
    %v648 = vpop.xlane.xlu0 %647
    %v649 = vsel %vm457, %v645, -inf
    %650 = vmax.xlane.f32.xlu0 %v649
    %v651 = vpop.xlane.xlu0 %650
    %v652 = vsub.f32 %v644, %v648
    %v653 = vsub.f32 %v645, %v651
    %v654 = vmul.f32 %v652, 1.442695
    %v655 = vpow.pop %v654
    %v656 = vmul.f32 %v653, 1.442695
    %v657 = vpow.pop %v656
    %v658 = vsel %vm457, %v655, 0.0
    %659 = vadd.xlane.f32.xlu0 %v658
    %v660 = vpop.xlane.xlu0 %659
    %v661 = vsel %vm457, %v657, 0.0
    %662 = vadd.xlane.f32.xlu0 %v661
    %v663 = vpop.xlane.xlu0 %662
    %v664 = vrcp.pop %v660
    %v665 = vmul.f32 %v655, %v664
    %v666 = vrcp.pop %v663
    %v667 = vmul.f32 %v657, %v666
    %v669 = vsel %vm457, %v665, 0
    %v672 = vsel %vm457, %v667, 0
    %674 = vmatprep.subr.mxu0 0.0
    %675 = vmatpush1.msra.mxu0 0.0
    %676 = vmatprep.subr.mxu0 0.0
    %677 = vmatpush1.msra.mxu0 0.0
    %678 = vmatprep.subr.mxu0 0.0
    %679 = vmatpush1.msra.mxu0 0.0
    %680 = vmatprep.subr.mxu0 0.0
    %681 = vmatpush1.msra.mxu0 0.0
    %682 = vmatprep.subr.mxu0 0.0
    %683 = vmatpush1.msra.mxu0 0.0
    %684 = vmatprep.subr.mxu0 0.0
    %685 = vmatpush1.msra.mxu0 0.0
    %686 = vmatprep.subr.mxu0 0.0
    %687 = vmatpush1.msra.mxu0 0.0
    %688 = vmatprep.subr.mxu0 0.0
    %689 = vmatpush1.msra.mxu0 0.0
    %690 = vmatprep.subr.mxu0 0.0
    %691 = vmatpush1.msra.mxu0 0.0
    %692 = vmatprep.subr.mxu0 0.0
    %693 = vmatpush1.msra.mxu0 0.0
    %694 = vmatprep.subr.mxu0 0.0
    %695 = vmatpush1.msra.mxu0 0.0
    %696 = vmatprep.subr.mxu0 0.0
    %697 = vmatpush1.msra.mxu0 0.0
    %698 = vmatprep.subr.mxu0 0.0
    %699 = vmatpush1.msra.mxu0 0.0
    %700 = vmatprep.subr.mxu0 0.0
    %701 = vmatpush1.msra.mxu0 0.0
    %702 = vmatprep.subr.mxu0 0.0
    %703 = vmatpush1.msra.mxu0 %v375
    %704 = vmatprep.subr.mxu0 0.0
    %705 = vmatpush1.msra.mxu0 %v369
    %706 = vmatprep.subr.mxu0 0.0
    %707 = vmatpush2.msra.mxu0 0.0
    %708 = vmatprep.subr.mxu0 0.0
    %709 = vmatpush2.msra.mxu0 0.0
    %710 = vmatprep.subr.mxu0 0.0
    %711 = vmatpush2.msra.mxu0 0.0
    %712 = vmatprep.subr.mxu0 0.0
    %713 = vmatpush2.msra.mxu0 0.0
    %714 = vmatprep.subr.mxu0 0.0
    %715 = vmatpush2.msra.mxu0 0.0
    %716 = vmatprep.subr.mxu0 0.0
    %717 = vmatpush2.msra.mxu0 0.0
    %718 = vmatprep.subr.mxu0 0.0
    %719 = vmatpush2.msra.mxu0 0.0
    %720 = vmatprep.subr.mxu0 0.0
    %721 = vmatpush2.msra.mxu0 0.0
    %722 = vmatprep.subr.mxu0 0.0
    %723 = vmatpush2.msra.mxu0 0.0
    %724 = vmatprep.subr.mxu0 0.0
    %725 = vmatpush2.msra.mxu0 0.0
    %726 = vmatprep.subr.mxu0 0.0
    %727 = vmatpush2.msra.mxu0 0.0
    %728 = vmatprep.subr.mxu0 0.0
    %729 = vmatpush2.msra.mxu0 0.0
    %730 = vmatprep.subr.mxu0 0.0
    %731 = vmatpush2.msra.mxu0 0.0
    %732 = vmatprep.subr.mxu0 0.0
    %733 = vmatpush2.msra.mxu0 0.0
    %734 = vmatprep.subr.mxu0 0.0
    %735 = vmatpush2.msra.mxu0 0.0
    %736 = vmatprep.subr.mxu0 0.0
    %737 = vmatpush2.msra.mxu0 0.0
    %738 = vmatprep.mubr.f32.mxu0 0.0
    %739 = vmatmul.mubr.f32.gmra.mxu0 %v669
    %v740 = vpop.f32.mrf.mxu0
    %v741 = vadd.f32 0.0, %v740
    %v742 = vpop.f32.mrf.mxu0
    %743 = vmatprep.mubr.f32.mxu0 0.0
    %744 = vmatmul.mubr.f32.gmra.mxu0 %v672
    %v745 = vpop.f32.mrf.mxu0
    %v746 = vadd.f32 0.0, %v745
    %v747 = vpop.f32.mrf.mxu0
    %748 = vdwg.mxu0
    %v749 = vadd.f32 %v565, %v741
    %v750 = vadd.f32 %v566, %v746
    %v751 = vadd.f32 %v749, %v77
    %v752 = vadd.f32 %v750, %v78
    %v753 = vld [vmem:[%s3 + $0x9] sm:$0x1]
    %v754 = vld [vmem:[%s3 + $0xa] sm:$0x1]
    %v755 = vsel %vm39, %v751, 0.0
    %756 = vadd.xlane.f32.xlu0 %v755
    %v757 = vpop.xlane.xlu0 %756
    %v758 = vsel %vm39, %v752, 0.0
    %759 = vadd.xlane.f32.xlu0 %v758
    %v760 = vpop.xlane.xlu0 %759
    %v761 = vmul.f32 %v757, %v46
    %v762 = vmul.f32 %v760, %v46
    %v763 = vsub.f32 %v751, %v761
    %v764 = vsub.f32 %v752, %v762
    %v765 = vmul.f32 %v763, %v763
    %v766 = vmul.f32 %v764, %v764
    %v767 = vsel %vm39, %v765, 0.0
    %768 = vadd.xlane.f32.xlu0 %v767
    %v769 = vpop.xlane.xlu0 %768
    %v770 = vsel %vm39, %v766, 0.0
    %771 = vadd.xlane.f32.xlu0 %v770
    %v772 = vpop.xlane.xlu0 %771
    %v773 = vmul.f32 %v769, %v46
    %v774 = vmul.f32 %v772, %v46
    %v775 = vadd.f32 %v773, 1e-12
    %v776 = vadd.f32 %v774, 1e-12
    %v777 = vrsqrt.pop %v775
    %v778 = vrsqrt.pop %v776
    %v779 = vmul.f32 %v763, %v777
    %v780 = vmul.f32 %v764, %v778
    %v781 = vlaneseq
    %v782 = vshrl.u32 %v781, 7
    %v783 = vsub.s32 0, %v782
    %v784 = vrot.slane %v753, %v783
    %v785 = vmul.f32 %v779, %v784
    %v786 = vmul.f32 %v780, %v784
    %v787 = vlaneseq
    %v788 = vshrl.u32 %v787, 7
    %v789 = vsub.s32 0, %v788
    %v790 = vrot.slane %v754, %v789
    %v791 = vadd.f32 %v785, %v790
    %v792 = vadd.f32 %v786, %v790
    %v793 = vld [vmem:[%s3 + $0x10] sm:$0xff]
    %v794 = vld [vmem:[%s3 + $0x18] sm:$0xff]
    %v795 = vld [vmem:[%s3 + $0x20] sm:$0xff]
    %v796 = vld [vmem:[%s3 + $0x28] sm:$0xff]
    %v797 = vld [vmem:[%s3 + $0xb] sm:$0x1]
    %v798 = vlaneseq
    %v799 = vshrl.u32 %v798, 7
    %v800 = vsub.s32 0, %v799
    %v801 = vrot.slane %v797, %v800
    %v803 = vsel %vm39, %v791, 0
    %v806 = vsel %vm39, %v792, 0
    %808 = vmatprep.subr.mxu0 0.0
    %809 = vmatpush1.msra.mxu0 0.0
    %810 = vmatprep.subr.mxu0 0.0
    %811 = vmatpush1.msra.mxu0 0.0
    %812 = vmatprep.subr.mxu0 0.0
    %813 = vmatpush1.msra.mxu0 0.0
    %814 = vmatprep.subr.mxu0 0.0
    %815 = vmatpush1.msra.mxu0 0.0
    %816 = vmatprep.subr.mxu0 0.0
    %817 = vmatpush1.msra.mxu0 0.0
    %818 = vmatprep.subr.mxu0 0.0
    %819 = vmatpush1.msra.mxu0 0.0
    %820 = vmatprep.subr.mxu0 0.0
    %821 = vmatpush1.msra.mxu0 0.0
    %822 = vmatprep.subr.mxu0 0.0
    %823 = vmatpush1.msra.mxu0 0.0
    %824 = vmatprep.subr.mxu0 0.0
    %825 = vmatpush1.msra.mxu0 0.0
    %826 = vmatprep.subr.mxu0 0.0
    %827 = vmatpush1.msra.mxu0 0.0
    %828 = vmatprep.subr.mxu0 0.0
    %829 = vmatpush1.msra.mxu0 0.0
    %830 = vmatprep.subr.mxu0 0.0
    %831 = vmatpush1.msra.mxu0 0.0
    %832 = vmatprep.subr.mxu0 0.0
    %833 = vmatpush1.msra.mxu0 %v796
    %834 = vmatprep.subr.mxu0 0.0
    %835 = vmatpush1.msra.mxu0 %v795
    %836 = vmatprep.subr.mxu0 0.0
    %837 = vmatpush1.msra.mxu0 %v794
    %838 = vmatprep.subr.mxu0 0.0
    %839 = vmatpush1.msra.mxu0 %v793
    %840 = vmatprep.subr.mxu0 0.0
    %841 = vmatpush2.msra.mxu0 0.0
    %842 = vmatprep.subr.mxu0 0.0
    %843 = vmatpush2.msra.mxu0 0.0
    %844 = vmatprep.subr.mxu0 0.0
    %845 = vmatpush2.msra.mxu0 0.0
    %846 = vmatprep.subr.mxu0 0.0
    %847 = vmatpush2.msra.mxu0 0.0
    %848 = vmatprep.subr.mxu0 0.0
    %849 = vmatpush2.msra.mxu0 0.0
    %850 = vmatprep.subr.mxu0 0.0
    %851 = vmatpush2.msra.mxu0 0.0
    %852 = vmatprep.subr.mxu0 0.0
    %853 = vmatpush2.msra.mxu0 0.0
    %854 = vmatprep.subr.mxu0 0.0
    %855 = vmatpush2.msra.mxu0 0.0
    %856 = vmatprep.subr.mxu0 0.0
    %857 = vmatpush2.msra.mxu0 0.0
    %858 = vmatprep.subr.mxu0 0.0
    %859 = vmatpush2.msra.mxu0 0.0
    %860 = vmatprep.subr.mxu0 0.0
    %861 = vmatpush2.msra.mxu0 0.0
    %862 = vmatprep.subr.mxu0 0.0
    %863 = vmatpush2.msra.mxu0 0.0
    %864 = vmatprep.subr.mxu0 0.0
    %865 = vmatpush2.msra.mxu0 0.0
    %866 = vmatprep.subr.mxu0 0.0
    %867 = vmatpush2.msra.mxu0 0.0
    %868 = vmatprep.subr.mxu0 0.0
    %869 = vmatpush2.msra.mxu0 0.0
    %870 = vmatprep.subr.mxu0 0.0
    %871 = vmatpush2.msra.mxu0 0.0
    %872 = vmatprep.mubr.f32.mxu0 0.0
    %873 = vmatmul.mubr.f32.gmra.mxu0 %v803
    %v874 = vpop.f32.mrf.mxu0
    %v875 = vadd.f32 %v801, %v874
    %v876 = vpop.f32.mrf.mxu0
    %877 = vmatprep.mubr.f32.mxu0 0.0
    %878 = vmatmul.mubr.f32.gmra.mxu0 %v806
    %v879 = vpop.f32.mrf.mxu0
    %v880 = vadd.f32 %v801, %v879
    %v881 = vpop.f32.mrf.mxu0
    %882 = vdwg.mxu0
    %v883 = vmul.f32 %v875, 0.5
    %v884 = vmul.f32 %v880, 0.5
    %v885 = vmul.f32 %v875, 0.70710677
    %v886 = vmul.f32 %v880, 0.70710677
    %v887 = verf.f32.pop %v885
    %v888 = verf.f32.pop %v886
    %v889 = vadd.f32 %v887, 1.0
    %v890 = vadd.f32 %v888, 1.0
    %v891 = vmul.f32 %v883, %v889
    %v892 = vmul.f32 %v884, %v890
    %v893 = vld [vmem:[%s3 + $0x30] sm:$0xff]
    %v894 = vld [vmem:[%s3 + $0x38] sm:$0xff]
    %v895 = vld [vmem:[%s3 + $0x40] sm:$0xff]
    %v896 = vld [vmem:[%s3 + $0x48] sm:$0xff]
    %v897 = vld [vmem:[%s3 + $0x50] sm:$0xff]
    %v898 = vld [vmem:[%s3 + $0x58] sm:$0xff]
    %v899 = vld [vmem:[%s3 + $0x60] sm:$0xff]
    %v900 = vld [vmem:[%s3 + $0x68] sm:$0xff]
    %v901 = vld [vmem:[%s3 + $0xc] sm:$0x1]
    %v902 = vlaneseq
    %v903 = vshrl.u32 %v902, 7
    %v904 = vsub.s32 0, %v903
    %v905 = vrot.slane %v901, %v904
    %vm906 = vcmask 523264
    %v908 = vsel %vm906, %v891, 0
    %v911 = vsel %vm906, %v892, 0
    %913 = vmatprep.subr.mxu0 0.0
    %914 = vmatpush1.msra.mxu0 0.0
    %915 = vmatprep.subr.mxu0 0.0
    %916 = vmatpush1.msra.mxu0 0.0
    %917 = vmatprep.subr.mxu0 0.0
    %918 = vmatpush1.msra.mxu0 0.0
    %919 = vmatprep.subr.mxu0 0.0
    %920 = vmatpush1.msra.mxu0 0.0
    %921 = vmatprep.subr.mxu0 0.0
    %922 = vmatpush1.msra.mxu0 0.0
    %923 = vmatprep.subr.mxu0 0.0
    %924 = vmatpush1.msra.mxu0 0.0
    %925 = vmatprep.subr.mxu0 0.0
    %926 = vmatpush1.msra.mxu0 0.0
    %927 = vmatprep.subr.mxu0 0.0
    %928 = vmatpush1.msra.mxu0 0.0
    %929 = vmatprep.subr.mxu0 0.0
    %930 = vmatpush1.msra.mxu0 %v900
    %931 = vmatprep.subr.mxu0 0.0
    %932 = vmatpush1.msra.mxu0 %v899
    %933 = vmatprep.subr.mxu0 0.0
    %934 = vmatpush1.msra.mxu0 %v898
    %935 = vmatprep.subr.mxu0 0.0
    %936 = vmatpush1.msra.mxu0 %v897
    %937 = vmatprep.subr.mxu0 0.0
    %938 = vmatpush1.msra.mxu0 %v896
    %939 = vmatprep.subr.mxu0 0.0
    %940 = vmatpush1.msra.mxu0 %v895
    %941 = vmatprep.subr.mxu0 0.0
    %942 = vmatpush1.msra.mxu0 %v894
    %943 = vmatprep.subr.mxu0 0.0
    %944 = vmatpush1.msra.mxu0 %v893
    %945 = vmatprep.subr.mxu0 0.0
    %946 = vmatpush2.msra.mxu0 0.0
    %947 = vmatprep.subr.mxu0 0.0
    %948 = vmatpush2.msra.mxu0 0.0
    %949 = vmatprep.subr.mxu0 0.0
    %950 = vmatpush2.msra.mxu0 0.0
    %951 = vmatprep.subr.mxu0 0.0
    %952 = vmatpush2.msra.mxu0 0.0
    %953 = vmatprep.subr.mxu0 0.0
    %954 = vmatpush2.msra.mxu0 0.0
    %955 = vmatprep.subr.mxu0 0.0
    %956 = vmatpush2.msra.mxu0 0.0
    %957 = vmatprep.subr.mxu0 0.0
    %958 = vmatpush2.msra.mxu0 0.0
    %959 = vmatprep.subr.mxu0 0.0
    %960 = vmatpush2.msra.mxu0 0.0
    %961 = vmatprep.subr.mxu0 0.0
    %962 = vmatpush2.msra.mxu0 0.0
    %963 = vmatprep.subr.mxu0 0.0
    %964 = vmatpush2.msra.mxu0 0.0
    %965 = vmatprep.subr.mxu0 0.0
    %966 = vmatpush2.msra.mxu0 0.0
    %967 = vmatprep.subr.mxu0 0.0
    %968 = vmatpush2.msra.mxu0 0.0
    %969 = vmatprep.subr.mxu0 0.0
    %970 = vmatpush2.msra.mxu0 0.0
    %971 = vmatprep.subr.mxu0 0.0
    %972 = vmatpush2.msra.mxu0 0.0
    %973 = vmatprep.subr.mxu0 0.0
    %974 = vmatpush2.msra.mxu0 0.0
    %975 = vmatprep.subr.mxu0 0.0
    %976 = vmatpush2.msra.mxu0 0.0
    %977 = vmatprep.mubr.f32.mxu0 0.0
    %978 = vmatmul.mubr.f32.gmra.mxu0 %v908
    %v979 = vpop.f32.mrf.mxu0
    %v980 = vadd.f32 %v905, %v979
    %v981 = vpop.f32.mrf.mxu0
    %982 = vmatprep.mubr.f32.mxu0 0.0
    %983 = vmatmul.mubr.f32.gmra.mxu0 %v911
    %v984 = vpop.f32.mrf.mxu0
    %v985 = vadd.f32 %v905, %v984
    %v986 = vpop.f32.mrf.mxu0
    %987 = vdwg.mxu0
    %v988 = vadd.f32 %v980, %v791
    %v989 = vadd.f32 %v985, %v792
    %v990 = vld [vmem:[%s3 + $0xd] sm:$0x1]
    %v991 = vld [vmem:[%s3 + $0xe] sm:$0x1]
    %v992 = vsel %vm39, %v988, 0.0
    %993 = vadd.xlane.f32.xlu0 %v992
    %v994 = vpop.xlane.xlu0 %993
    %v995 = vsel %vm39, %v989, 0.0
    %996 = vadd.xlane.f32.xlu0 %v995
    %v997 = vpop.xlane.xlu0 %996
    %v998 = vmul.f32 %v994, %v46
    %v999 = vmul.f32 %v997, %v46
    %v1000 = vsub.f32 %v988, %v998
    %v1001 = vsub.f32 %v989, %v999
    %v1002 = vmul.f32 %v1000, %v1000
    %v1003 = vmul.f32 %v1001, %v1001
    %v1004 = vsel %vm39, %v1002, 0.0
    %1005 = vadd.xlane.f32.xlu0 %v1004
    %v1006 = vpop.xlane.xlu0 %1005
    %v1007 = vsel %vm39, %v1003, 0.0
    %1008 = vadd.xlane.f32.xlu0 %v1007
    %v1009 = vpop.xlane.xlu0 %1008
    %v1010 = vmul.f32 %v1006, %v46
    %v1011 = vmul.f32 %v1009, %v46
    %v1012 = vadd.f32 %v1010, 1e-12
    %v1013 = vadd.f32 %v1011, 1e-12
    %v1014 = vrsqrt.pop %v1012
    %v1015 = vrsqrt.pop %v1013
    %v1016 = vmul.f32 %v1000, %v1014
    %v1017 = vmul.f32 %v1001, %v1015
    %v1018 = vlaneseq
    %v1019 = vshrl.u32 %v1018, 7
    %v1020 = vsub.s32 0, %v1019
    %v1021 = vrot.slane %v990, %v1020
    %v1022 = vmul.f32 %v1016, %v1021
    %v1023 = vmul.f32 %v1017, %v1021
    %v1024 = vlaneseq
    %v1025 = vshrl.u32 %v1024, 7
    %v1026 = vsub.s32 0, %v1025
    %v1027 = vrot.slane %v991, %v1026
    %v1028 = vadd.f32 %v1022, %v1027
    %v1029 = vadd.f32 %v1023, %v1027
    %v1030 = vld [vmem:[#allocation2 + $0xf0] sm:$0xff]
    %v1031 = vld [vmem:[#allocation2 + $0xf8] sm:$0xff]
    %v1032 = vld [vmem:[#allocation2 + $0x100] sm:$0xff]
    %v1033 = vld [vmem:[#allocation2 + $0x108] sm:$0xff]
    %v1034 = vld [vmem:[#allocation2 + $0x110] sm:$0xff]
    %v1035 = vld [vmem:[#allocation2 + $0x118] sm:$0xff]
    %v1036 = vld [vmem:[#allocation2 + $0x120] sm:$0xff]
    %v1037 = vld [vmem:[#allocation2 + $0x128] sm:$0xff]
    %v1038 = vld [vmem:[#allocation2 + $0x130] sm:$0xff]
    %v1039 = vld [vmem:[#allocation2 + $0x138] sm:$0xff]
    %v1040 = vld [vmem:[#allocation2 + $0x140] sm:$0xff]
    %v1041 = vld [vmem:[#allocation2 + $0x148] sm:$0xff]
    %v1042 = vld [vmem:[#allocation2 + $0x150] sm:$0xff]
    %v1043 = vld [vmem:[#allocation2 + $0x158] sm:$0xff]
    %v1044 = vld [vmem:[#allocation2 + $0x160] sm:$0xff]
    %v1045 = vld [vmem:[#allocation2 + $0x168] sm:$0xff]
    %v1046 = vld [vmem:[#allocation2 + $0x170] sm:$0xff]
    %v1047 = vld [vmem:[#allocation2 + $0x178] sm:$0xff]
    %v1048 = vld [vmem:[#allocation2 + $0x180] sm:$0xff]
    %v1049 = vld [vmem:[#allocation2 + $0x188] sm:$0xff]
    %v1050 = vld [vmem:[#allocation2 + $0x190] sm:$0xff]
    %v1051 = vld [vmem:[#allocation2 + $0x198] sm:$0xff]
    %v1052 = vld [vmem:[#allocation2 + $0x1a0] sm:$0xff]
    %v1053 = vld [vmem:[#allocation2 + $0x1a8] sm:$0xff]
    %s1054 = scalar_lea.vmem [#allocation2], 432
    %v1055 = vld [vmem:[%s1054] ss:$8 sm:$0xf]
    %v1056 = vld [vmem:[%s1054] ss:$8 sm:$0x30]
    %v1057 = vor.u32 %v1055, %v1056
    %v1059 = vlaneseq
    %v1060 = vshrl.u32 %v1059, 7
    %v1061 = vsub.s32 0, %v1060
    %v1062 = vrot.slane %v1057, %v1061
    %v1063 = vlaneseq
    %v1064 = vshrl.u32 %v1063, 7
    %v1065 = vsub.s32 1, %v1064
    %v1066 = vrot.slane %v1057, %v1065
    %v1067 = vlaneseq
    %v1068 = vshrl.u32 %v1067, 7
    %v1069 = vsub.s32 2, %v1068
    %v1070 = vrot.slane %v1057, %v1069
    %v1071 = vlaneseq
    %v1072 = vshrl.u32 %v1071, 7
    %v1073 = vsub.s32 3, %v1072
    %v1074 = vrot.slane %v1057, %v1073
    %v1075 = vlaneseq
    %v1076 = vshrl.u32 %v1075, 7
    %v1077 = vsub.s32 4, %v1076
    %v1078 = vrot.slane %v1057, %v1077
    %v1079 = vlaneseq
    %v1080 = vshrl.u32 %v1079, 7
    %v1081 = vsub.s32 5, %v1080
    %v1082 = vrot.slane %v1057, %v1081
    %v1090 = vsel %vm39, %v1028, 0
    %v1093 = vsel %vm39, %v1029, 0
    %1095 = vmatprep.subr.mxu0 0.0
    %1096 = vmatpush1.msra.mxu0 0.0
    %1097 = vmatprep.subr.mxu0 0.0
    %1098 = vmatpush1.msra.mxu0 0.0
    %1099 = vmatprep.subr.mxu0 0.0
    %1100 = vmatpush1.msra.mxu0 0.0
    %1101 = vmatprep.subr.mxu0 0.0
    %1102 = vmatpush1.msra.mxu0 0.0
    %1103 = vmatprep.subr.mxu0 0.0
    %1104 = vmatpush1.msra.mxu0 0.0
    %1105 = vmatprep.subr.mxu0 0.0
    %1106 = vmatpush1.msra.mxu0 0.0
    %1107 = vmatprep.subr.mxu0 0.0
    %1108 = vmatpush1.msra.mxu0 0.0
    %1109 = vmatprep.subr.mxu0 0.0
    %1110 = vmatpush1.msra.mxu0 0.0
    %1111 = vmatprep.subr.mxu0 0.0
    %1112 = vmatpush1.msra.mxu0 0.0
    %1113 = vmatprep.subr.mxu0 0.0
    %1114 = vmatpush1.msra.mxu0 0.0
    %1115 = vmatprep.subr.mxu0 0.0
    %1116 = vmatpush1.msra.mxu0 0.0
    %1117 = vmatprep.subr.mxu0 0.0
    %1118 = vmatpush1.msra.mxu0 0.0
    %1119 = vmatprep.subr.mxu0 %v1049
    %1120 = vmatpush1.msra.mxu0 %v1048
    %1121 = vmatprep.subr.mxu0 %v1043
    %1122 = vmatpush1.msra.mxu0 %v1042
    %1123 = vmatprep.subr.mxu0 %v1037
    %1124 = vmatpush1.msra.mxu0 %v1036
    %1125 = vmatprep.subr.mxu0 %v1031
    %1126 = vmatpush1.msra.mxu0 %v1030
    %1127 = vmatprep.subr.mxu0 0.0
    %1128 = vmatpush2.msra.mxu0 0.0
    %1129 = vmatprep.subr.mxu0 0.0
    %1130 = vmatpush2.msra.mxu0 0.0
    %1131 = vmatprep.subr.mxu0 0.0
    %1132 = vmatpush2.msra.mxu0 0.0
    %1133 = vmatprep.subr.mxu0 0.0
    %1134 = vmatpush2.msra.mxu0 0.0
    %1135 = vmatprep.subr.mxu0 0.0
    %1136 = vmatpush2.msra.mxu0 0.0
    %1137 = vmatprep.subr.mxu0 0.0
    %1138 = vmatpush2.msra.mxu0 0.0
    %1139 = vmatprep.subr.mxu0 0.0
    %1140 = vmatpush2.msra.mxu0 0.0
    %1141 = vmatprep.subr.mxu0 0.0
    %1142 = vmatpush2.msra.mxu0 0.0
    %1143 = vmatprep.subr.mxu0 0.0
    %1144 = vmatpush2.msra.mxu0 0.0
    %1145 = vmatprep.subr.mxu0 0.0
    %1146 = vmatpush2.msra.mxu0 0.0
    %1147 = vmatprep.subr.mxu0 0.0
    %1148 = vmatpush2.msra.mxu0 0.0
    %1149 = vmatprep.subr.mxu0 0.0
    %1150 = vmatpush2.msra.mxu0 0.0
    %1151 = vmatprep.subr.mxu0 0.0
    %1152 = vmatpush2.msra.mxu0 0.0
    %1153 = vmatprep.subr.mxu0 0.0
    %1154 = vmatpush2.msra.mxu0 0.0
    %1155 = vmatprep.subr.mxu0 0.0
    %1156 = vmatpush2.msra.mxu0 0.0
    %1157 = vmatprep.subr.mxu0 0.0
    %1158 = vmatpush2.msra.mxu0 0.0
    %1159 = vmatprep.mubr.f32.mxu0 0.0
    %1160 = vmatmul.mubr.f32.gmra.mxu0 %v1090
    %v1161 = vpop.f32.mrf.mxu0
    %v1162 = vadd.f32 %v1062, %v1161
    %v1163 = vpop.f32.mrf.mxu0
    %v1164 = vadd.f32 %v1066, %v1163
    %1165 = vmatprep.mubr.f32.mxu0 0.0
    %1166 = vmatmul.mubr.f32.gmra.mxu0 %v1093
    %v1167 = vpop.f32.mrf.mxu0
    %v1168 = vadd.f32 %v1062, %v1167
    %v1169 = vpop.f32.mrf.mxu0
    %v1170 = vadd.f32 %v1066, %v1169
    %1171 = vdwg.mxu0
    %1172 = vmatprep.subr.mxu0 0.0
    %1173 = vmatpush1.msra.mxu0 0.0
    %1174 = vmatprep.subr.mxu0 0.0
    %1175 = vmatpush1.msra.mxu0 0.0
    %1176 = vmatprep.subr.mxu0 0.0
    %1177 = vmatpush1.msra.mxu0 0.0
    %1178 = vmatprep.subr.mxu0 0.0
    %1179 = vmatpush1.msra.mxu0 0.0
    %1180 = vmatprep.subr.mxu0 0.0
    %1181 = vmatpush1.msra.mxu0 0.0
    %1182 = vmatprep.subr.mxu0 0.0
    %1183 = vmatpush1.msra.mxu0 0.0
    %1184 = vmatprep.subr.mxu0 0.0
    %1185 = vmatpush1.msra.mxu0 0.0
    %1186 = vmatprep.subr.mxu0 0.0
    %1187 = vmatpush1.msra.mxu0 0.0
    %1188 = vmatprep.subr.mxu0 0.0
    %1189 = vmatpush1.msra.mxu0 0.0
    %1190 = vmatprep.subr.mxu0 0.0
    %1191 = vmatpush1.msra.mxu0 0.0
    %1192 = vmatprep.subr.mxu0 0.0
    %1193 = vmatpush1.msra.mxu0 0.0
    %1194 = vmatprep.subr.mxu0 0.0
    %1195 = vmatpush1.msra.mxu0 0.0
    %1196 = vmatprep.subr.mxu0 %v1051
    %1197 = vmatpush1.msra.mxu0 %v1050
    %1198 = vmatprep.subr.mxu0 %v1045
    %1199 = vmatpush1.msra.mxu0 %v1044
    %1200 = vmatprep.subr.mxu0 %v1039
    %1201 = vmatpush1.msra.mxu0 %v1038
    %1202 = vmatprep.subr.mxu0 %v1033
    %1203 = vmatpush1.msra.mxu0 %v1032
    %1204 = vmatprep.subr.mxu0 0.0
    %1205 = vmatpush2.msra.mxu0 0.0
    %1206 = vmatprep.subr.mxu0 0.0
    %1207 = vmatpush2.msra.mxu0 0.0
    %1208 = vmatprep.subr.mxu0 0.0
    %1209 = vmatpush2.msra.mxu0 0.0
    %1210 = vmatprep.subr.mxu0 0.0
    %1211 = vmatpush2.msra.mxu0 0.0
    %1212 = vmatprep.subr.mxu0 0.0
    %1213 = vmatpush2.msra.mxu0 0.0
    %1214 = vmatprep.subr.mxu0 0.0
    %1215 = vmatpush2.msra.mxu0 0.0
    %1216 = vmatprep.subr.mxu0 0.0
    %1217 = vmatpush2.msra.mxu0 0.0
    %1218 = vmatprep.subr.mxu0 0.0
    %1219 = vmatpush2.msra.mxu0 0.0
    %1220 = vmatprep.subr.mxu0 0.0
    %1221 = vmatpush2.msra.mxu0 0.0
    %1222 = vmatprep.subr.mxu0 0.0
    %1223 = vmatpush2.msra.mxu0 0.0
    %1224 = vmatprep.subr.mxu0 0.0
    %1225 = vmatpush2.msra.mxu0 0.0
    %1226 = vmatprep.subr.mxu0 0.0
    %1227 = vmatpush2.msra.mxu0 0.0
    %1228 = vmatprep.subr.mxu0 0.0
    %1229 = vmatpush2.msra.mxu0 0.0
    %1230 = vmatprep.subr.mxu0 0.0
    %1231 = vmatpush2.msra.mxu0 0.0
    %1232 = vmatprep.subr.mxu0 0.0
    %1233 = vmatpush2.msra.mxu0 0.0
    %1234 = vmatprep.subr.mxu0 0.0
    %1235 = vmatpush2.msra.mxu0 0.0
    %1236 = vmatprep.mubr.f32.mxu0 0.0
    %1237 = vmatmul.mubr.f32.gmra.mxu0 %v1090
    %v1238 = vpop.f32.mrf.mxu0
    %v1239 = vadd.f32 %v1070, %v1238
    %v1240 = vpop.f32.mrf.mxu0
    %v1241 = vadd.f32 %v1074, %v1240
    %1242 = vmatprep.mubr.f32.mxu0 0.0
    %1243 = vmatmul.mubr.f32.gmra.mxu0 %v1093
    %v1244 = vpop.f32.mrf.mxu0
    %v1245 = vadd.f32 %v1070, %v1244
    %v1246 = vpop.f32.mrf.mxu0
    %v1247 = vadd.f32 %v1074, %v1246
    %1248 = vdwg.mxu0
    %1249 = vmatprep.subr.mxu0 0.0
    %1250 = vmatpush1.msra.mxu0 0.0
    %1251 = vmatprep.subr.mxu0 0.0
    %1252 = vmatpush1.msra.mxu0 0.0
    %1253 = vmatprep.subr.mxu0 0.0
    %1254 = vmatpush1.msra.mxu0 0.0
    %1255 = vmatprep.subr.mxu0 0.0
    %1256 = vmatpush1.msra.mxu0 0.0
    %1257 = vmatprep.subr.mxu0 0.0
    %1258 = vmatpush1.msra.mxu0 0.0
    %1259 = vmatprep.subr.mxu0 0.0
    %1260 = vmatpush1.msra.mxu0 0.0
    %1261 = vmatprep.subr.mxu0 0.0
    %1262 = vmatpush1.msra.mxu0 0.0
    %1263 = vmatprep.subr.mxu0 0.0
    %1264 = vmatpush1.msra.mxu0 0.0
    %1265 = vmatprep.subr.mxu0 0.0
    %1266 = vmatpush1.msra.mxu0 0.0
    %1267 = vmatprep.subr.mxu0 0.0
    %1268 = vmatpush1.msra.mxu0 0.0
    %1269 = vmatprep.subr.mxu0 0.0
    %1270 = vmatpush1.msra.mxu0 0.0
    %1271 = vmatprep.subr.mxu0 0.0
    %1272 = vmatpush1.msra.mxu0 0.0
    %1273 = vmatprep.subr.mxu0 %v1053
    %1274 = vmatpush1.msra.mxu0 %v1052
    %1275 = vmatprep.subr.mxu0 %v1047
    %1276 = vmatpush1.msra.mxu0 %v1046
    %1277 = vmatprep.subr.mxu0 %v1041
    %1278 = vmatpush1.msra.mxu0 %v1040
    %1279 = vmatprep.subr.mxu0 %v1035
    %1280 = vmatpush1.msra.mxu0 %v1034
    %1281 = vmatprep.subr.mxu0 0.0
    %1282 = vmatpush2.msra.mxu0 0.0
    %1283 = vmatprep.subr.mxu0 0.0
    %1284 = vmatpush2.msra.mxu0 0.0
    %1285 = vmatprep.subr.mxu0 0.0
    %1286 = vmatpush2.msra.mxu0 0.0
    %1287 = vmatprep.subr.mxu0 0.0
    %1288 = vmatpush2.msra.mxu0 0.0
    %1289 = vmatprep.subr.mxu0 0.0
    %1290 = vmatpush2.msra.mxu0 0.0
    %1291 = vmatprep.subr.mxu0 0.0
    %1292 = vmatpush2.msra.mxu0 0.0
    %1293 = vmatprep.subr.mxu0 0.0
    %1294 = vmatpush2.msra.mxu0 0.0
    %1295 = vmatprep.subr.mxu0 0.0
    %1296 = vmatpush2.msra.mxu0 0.0
    %1297 = vmatprep.subr.mxu0 0.0
    %1298 = vmatpush2.msra.mxu0 0.0
    %1299 = vmatprep.subr.mxu0 0.0
    %1300 = vmatpush2.msra.mxu0 0.0
    %1301 = vmatprep.subr.mxu0 0.0
    %1302 = vmatpush2.msra.mxu0 0.0
    %1303 = vmatprep.subr.mxu0 0.0
    %1304 = vmatpush2.msra.mxu0 0.0
    %1305 = vmatprep.subr.mxu0 0.0
    %1306 = vmatpush2.msra.mxu0 0.0
    %1307 = vmatprep.subr.mxu0 0.0
    %1308 = vmatpush2.msra.mxu0 0.0
    %1309 = vmatprep.subr.mxu0 0.0
    %1310 = vmatpush2.msra.mxu0 0.0
    %1311 = vmatprep.subr.mxu0 0.0
    %1312 = vmatpush2.msra.mxu0 0.0
    %1313 = vmatprep.mubr.f32.mxu0 0.0
    %1314 = vmatmul.mubr.f32.gmra.mxu0 %v1090
    %v1315 = vpop.f32.mrf.mxu0
    %v1316 = vadd.f32 %v1078, %v1315
    %v1317 = vpop.f32.mrf.mxu0
    %v1318 = vadd.f32 %v1082, %v1317
    %1319 = vmatprep.mubr.f32.mxu0 0.0
    %1320 = vmatmul.mubr.f32.gmra.mxu0 %v1093
    %v1321 = vpop.f32.mrf.mxu0
    %v1322 = vadd.f32 %v1078, %v1321
    %v1323 = vpop.f32.mrf.mxu0
    %v1324 = vadd.f32 %v1082, %v1323
    %1325 = vdwg.mxu0
    %v1326 = vld [vmem:[%s3 + $0x70] sm:$0x1]
    %1327 = vmatprep.subr.mxu0 0.0
    %1328 = vmatpush1.xpose.msra.mxu0 0.0
    %1329 = vmatprep.subr.mxu0 0.0
    %1330 = vmatpush1.xpose.msra.mxu0 0.0
    %1331 = vmatprep.subr.mxu0 0.0
    %1332 = vmatpush1.xpose.msra.mxu0 0.0
    %1333 = vmatprep.subr.mxu0 0.0
    %1334 = vmatpush1.xpose.msra.mxu0 0.0
    %1335 = vmatprep.subr.mxu0 0.0
    %1336 = vmatpush1.xpose.msra.mxu0 0.0
    %1337 = vmatprep.subr.mxu0 0.0
    %1338 = vmatpush1.xpose.msra.mxu0 0.0
    %1339 = vmatprep.subr.mxu0 0.0
    %1340 = vmatpush1.xpose.msra.mxu0 0.0
    %1341 = vmatprep.subr.mxu0 0.0
    %1342 = vmatpush1.xpose.msra.mxu0 0.0
    %1343 = vmatprep.subr.mxu0 0.0
    %1344 = vmatpush1.xpose.msra.mxu0 0.0
    %1345 = vmatprep.subr.mxu0 0.0
    %1346 = vmatpush1.xpose.msra.mxu0 0.0
    %1347 = vmatprep.subr.mxu0 0.0
    %1348 = vmatpush1.xpose.msra.mxu0 0.0
    %1349 = vmatprep.subr.mxu0 0.0
    %1350 = vmatpush1.xpose.msra.mxu0 0.0
    %1351 = vmatprep.subr.mxu0 0.0
    %1352 = vmatpush1.xpose.msra.mxu0 0.0
    %1353 = vmatprep.subr.mxu0 0.0
    %1354 = vmatpush1.xpose.msra.mxu0 0.0
    %1355 = vmatprep.subr.mxu0 0.0
    %1356 = vmatpush1.xpose.msra.mxu0 %v1170
    %1357 = vmatprep.subr.mxu0 0.0
    %1358 = vmatpush1.xpose.msra.mxu0 %v1164
    %1359 = vmatprep.subr.mxu0 0.0
    %1360 = vmatpush2.xpose.msra.mxu0 0.0
    %1361 = vmatprep.subr.mxu0 0.0
    %1362 = vmatpush2.xpose.msra.mxu0 0.0
    %1363 = vmatprep.subr.mxu0 0.0
    %1364 = vmatpush2.xpose.msra.mxu0 0.0
    %1365 = vmatprep.subr.mxu0 0.0
    %1366 = vmatpush2.xpose.msra.mxu0 0.0
    %1367 = vmatprep.subr.mxu0 0.0
    %1368 = vmatpush2.xpose.msra.mxu0 0.0
    %1369 = vmatprep.subr.mxu0 0.0
    %1370 = vmatpush2.xpose.msra.mxu0 0.0
    %1371 = vmatprep.subr.mxu0 0.0
    %1372 = vmatpush2.xpose.msra.mxu0 0.0
    %1373 = vmatprep.subr.mxu0 0.0
    %1374 = vmatpush2.xpose.msra.mxu0 0.0
    %1375 = vmatprep.subr.mxu0 0.0
    %1376 = vmatpush2.xpose.msra.mxu0 0.0
    %1377 = vmatprep.subr.mxu0 0.0
    %1378 = vmatpush2.xpose.msra.mxu0 0.0
    %1379 = vmatprep.subr.mxu0 0.0
    %1380 = vmatpush2.xpose.msra.mxu0 0.0
    %1381 = vmatprep.subr.mxu0 0.0
    %1382 = vmatpush2.xpose.msra.mxu0 0.0
    %1383 = vmatprep.subr.mxu0 0.0
    %1384 = vmatpush2.xpose.msra.mxu0 0.0
    %1385 = vmatprep.subr.mxu0 0.0
    %1386 = vmatpush2.xpose.msra.mxu0 0.0
    %1387 = vmatprep.subr.mxu0 0.0
    %1388 = vmatpush2.xpose.msra.mxu0 0.0
    %1389 = vmatprep.subr.mxu0 0.0
    %1390 = vmatpush2.xpose.msra.mxu0 0.0
    %1391 = vmatprep.mubr.f32.mxu0 0.0
    %1392 = vmatmul.mubr.f32.gmra.mxu0 %v1162
    %v1393 = vpop.f32.mrf.mxu0
    %v1394 = vadd.f32 0.0, %v1393
    %v1395 = vpop.f32.mrf.mxu0
    %1396 = vmatprep.mubr.f32.mxu0 0.0
    %1397 = vmatmul.mubr.f32.gmra.mxu0 %v1168
    %v1398 = vpop.f32.mrf.mxu0
    %v1399 = vadd.f32 0.0, %v1398
    %v1400 = vpop.f32.mrf.mxu0
    %1401 = vdwg.mxu0
    %v1402 = vmul.f32 %v1394, 0.25
    %v1403 = vmul.f32 %v1399, 0.25
    %v1404 = vadd.f32 %v1402, %v79
    %v1405 = vadd.f32 %v1403, %v80
    %v1406 = vsel %vm457, %v1404, -inf
    %1407 = vmax.xlane.f32.xlu0 %v1406
    %v1408 = vpop.xlane.xlu0 %1407
    %v1409 = vsel %vm457, %v1405, -inf
    %1410 = vmax.xlane.f32.xlu0 %v1409
    %v1411 = vpop.xlane.xlu0 %1410
    %v1412 = vsub.f32 %v1404, %v1408
    %v1413 = vsub.f32 %v1405, %v1411
    %v1414 = vmul.f32 %v1412, 1.442695
    %v1415 = vpow.pop %v1414
    %v1416 = vmul.f32 %v1413, 1.442695
    %v1417 = vpow.pop %v1416
    %v1418 = vsel %vm457, %v1415, 0.0
    %1419 = vadd.xlane.f32.xlu0 %v1418
    %v1420 = vpop.xlane.xlu0 %1419
    %v1421 = vsel %vm457, %v1417, 0.0
    %1422 = vadd.xlane.f32.xlu0 %v1421
    %v1423 = vpop.xlane.xlu0 %1422
    %v1424 = vrcp.pop %v1420
    %v1425 = vmul.f32 %v1415, %v1424
    %v1426 = vrcp.pop %v1423
    %v1427 = vmul.f32 %v1417, %v1426
    %v1429 = vsel %vm457, %v1425, 0
    %v1432 = vsel %vm457, %v1427, 0
    %1434 = vmatprep.subr.mxu0 0.0
    %1435 = vmatpush1.msra.mxu0 0.0
    %1436 = vmatprep.subr.mxu0 0.0
    %1437 = vmatpush1.msra.mxu0 0.0
    %1438 = vmatprep.subr.mxu0 0.0
    %1439 = vmatpush1.msra.mxu0 0.0
    %1440 = vmatprep.subr.mxu0 0.0
    %1441 = vmatpush1.msra.mxu0 0.0
    %1442 = vmatprep.subr.mxu0 0.0
    %1443 = vmatpush1.msra.mxu0 0.0
    %1444 = vmatprep.subr.mxu0 0.0
    %1445 = vmatpush1.msra.mxu0 0.0
    %1446 = vmatprep.subr.mxu0 0.0
    %1447 = vmatpush1.msra.mxu0 0.0
    %1448 = vmatprep.subr.mxu0 0.0
    %1449 = vmatpush1.msra.mxu0 0.0
    %1450 = vmatprep.subr.mxu0 0.0
    %1451 = vmatpush1.msra.mxu0 0.0
    %1452 = vmatprep.subr.mxu0 0.0
    %1453 = vmatpush1.msra.mxu0 0.0
    %1454 = vmatprep.subr.mxu0 0.0
    %1455 = vmatpush1.msra.mxu0 0.0
    %1456 = vmatprep.subr.mxu0 0.0
    %1457 = vmatpush1.msra.mxu0 0.0
    %1458 = vmatprep.subr.mxu0 0.0
    %1459 = vmatpush1.msra.mxu0 0.0
    %1460 = vmatprep.subr.mxu0 0.0
    %1461 = vmatpush1.msra.mxu0 0.0
    %1462 = vmatprep.subr.mxu0 0.0
    %1463 = vmatpush1.msra.mxu0 %v1322
    %1464 = vmatprep.subr.mxu0 0.0
    %1465 = vmatpush1.msra.mxu0 %v1316
    %1466 = vmatprep.subr.mxu0 0.0
    %1467 = vmatpush2.msra.mxu0 0.0
    %1468 = vmatprep.subr.mxu0 0.0
    %1469 = vmatpush2.msra.mxu0 0.0
    %1470 = vmatprep.subr.mxu0 0.0
    %1471 = vmatpush2.msra.mxu0 0.0
    %1472 = vmatprep.subr.mxu0 0.0
    %1473 = vmatpush2.msra.mxu0 0.0
    %1474 = vmatprep.subr.mxu0 0.0
    %1475 = vmatpush2.msra.mxu0 0.0
    %1476 = vmatprep.subr.mxu0 0.0
    %1477 = vmatpush2.msra.mxu0 0.0
    %1478 = vmatprep.subr.mxu0 0.0
    %1479 = vmatpush2.msra.mxu0 0.0
    %1480 = vmatprep.subr.mxu0 0.0
    %1481 = vmatpush2.msra.mxu0 0.0
    %1482 = vmatprep.subr.mxu0 0.0
    %1483 = vmatpush2.msra.mxu0 0.0
    %1484 = vmatprep.subr.mxu0 0.0
    %1485 = vmatpush2.msra.mxu0 0.0
    %1486 = vmatprep.subr.mxu0 0.0
    %1487 = vmatpush2.msra.mxu0 0.0
    %1488 = vmatprep.subr.mxu0 0.0
    %1489 = vmatpush2.msra.mxu0 0.0
    %1490 = vmatprep.subr.mxu0 0.0
    %1491 = vmatpush2.msra.mxu0 0.0
    %1492 = vmatprep.subr.mxu0 0.0
    %1493 = vmatpush2.msra.mxu0 0.0
    %1494 = vmatprep.subr.mxu0 0.0
    %1495 = vmatpush2.msra.mxu0 0.0
    %1496 = vmatprep.subr.mxu0 0.0
    %1497 = vmatpush2.msra.mxu0 0.0
    %1498 = vmatprep.mubr.f32.mxu0 0.0
    %1499 = vmatmul.mubr.f32.gmra.mxu0 %v1429
    %v1500 = vpop.f32.mrf.mxu0
    %v1501 = vadd.f32 0.0, %v1500
    %v1502 = vpop.f32.mrf.mxu0
    %1503 = vmatprep.mubr.f32.mxu0 0.0
    %1504 = vmatmul.mubr.f32.gmra.mxu0 %v1432
    %v1505 = vpop.f32.mrf.mxu0
    %v1506 = vadd.f32 0.0, %v1505
    %v1507 = vpop.f32.mrf.mxu0
    %1508 = vdwg.mxu0
    %v1509 = vlaneseq
    %v1510 = vshrl.u32 %v1509, 7
    %v1511 = vsub.s32 0, %v1510
    %v1512 = vrot.slane %v1326, %v1511
    %v1513 = vadd.f32 %v1512, %v1501
    %v1514 = vadd.f32 %v1512, %v1506
    %1515 = vmatprep.subr.mxu0 0.0
    %1516 = vmatpush1.xpose.msra.mxu0 0.0
    %1517 = vmatprep.subr.mxu0 0.0
    %1518 = vmatpush1.xpose.msra.mxu0 0.0
    %1519 = vmatprep.subr.mxu0 0.0
    %1520 = vmatpush1.xpose.msra.mxu0 0.0
    %1521 = vmatprep.subr.mxu0 0.0
    %1522 = vmatpush1.xpose.msra.mxu0 0.0
    %1523 = vmatprep.subr.mxu0 0.0
    %1524 = vmatpush1.xpose.msra.mxu0 0.0
    %1525 = vmatprep.subr.mxu0 0.0
    %1526 = vmatpush1.xpose.msra.mxu0 0.0
    %1527 = vmatprep.subr.mxu0 0.0
    %1528 = vmatpush1.xpose.msra.mxu0 0.0
    %1529 = vmatprep.subr.mxu0 0.0
    %1530 = vmatpush1.xpose.msra.mxu0 0.0
    %1531 = vmatprep.subr.mxu0 0.0
    %1532 = vmatpush1.xpose.msra.mxu0 0.0
    %1533 = vmatprep.subr.mxu0 0.0
    %1534 = vmatpush1.xpose.msra.mxu0 0.0
    %1535 = vmatprep.subr.mxu0 0.0
    %1536 = vmatpush1.xpose.msra.mxu0 0.0
    %1537 = vmatprep.subr.mxu0 0.0
    %1538 = vmatpush1.xpose.msra.mxu0 0.0
    %1539 = vmatprep.subr.mxu0 0.0
    %1540 = vmatpush1.xpose.msra.mxu0 0.0
    %1541 = vmatprep.subr.mxu0 0.0
    %1542 = vmatpush1.xpose.msra.mxu0 0.0
    %1543 = vmatprep.subr.mxu0 0.0
    %1544 = vmatpush1.xpose.msra.mxu0 %v1247
    %1545 = vmatprep.subr.mxu0 0.0
    %1546 = vmatpush1.xpose.msra.mxu0 %v1241
    %1547 = vmatprep.subr.mxu0 0.0
    %1548 = vmatpush2.xpose.msra.mxu0 0.0
    %1549 = vmatprep.subr.mxu0 0.0
    %1550 = vmatpush2.xpose.msra.mxu0 0.0
    %1551 = vmatprep.subr.mxu0 0.0
    %1552 = vmatpush2.xpose.msra.mxu0 0.0
    %1553 = vmatprep.subr.mxu0 0.0
    %1554 = vmatpush2.xpose.msra.mxu0 0.0
    %1555 = vmatprep.subr.mxu0 0.0
    %1556 = vmatpush2.xpose.msra.mxu0 0.0
    %1557 = vmatprep.subr.mxu0 0.0
    %1558 = vmatpush2.xpose.msra.mxu0 0.0
    %1559 = vmatprep.subr.mxu0 0.0
    %1560 = vmatpush2.xpose.msra.mxu0 0.0
    %1561 = vmatprep.subr.mxu0 0.0
    %1562 = vmatpush2.xpose.msra.mxu0 0.0
    %1563 = vmatprep.subr.mxu0 0.0
    %1564 = vmatpush2.xpose.msra.mxu0 0.0
    %1565 = vmatprep.subr.mxu0 0.0
    %1566 = vmatpush2.xpose.msra.mxu0 0.0
    %1567 = vmatprep.subr.mxu0 0.0
    %1568 = vmatpush2.xpose.msra.mxu0 0.0
    %1569 = vmatprep.subr.mxu0 0.0
    %1570 = vmatpush2.xpose.msra.mxu0 0.0
    %1571 = vmatprep.subr.mxu0 0.0
    %1572 = vmatpush2.xpose.msra.mxu0 0.0
    %1573 = vmatprep.subr.mxu0 0.0
    %1574 = vmatpush2.xpose.msra.mxu0 0.0
    %1575 = vmatprep.subr.mxu0 0.0
    %1576 = vmatpush2.xpose.msra.mxu0 0.0
    %1577 = vmatprep.subr.mxu0 0.0
    %1578 = vmatpush2.xpose.msra.mxu0 0.0
    %1579 = vmatprep.mubr.f32.mxu0 0.0
    %1580 = vmatmul.mubr.f32.gmra.mxu0 %v1239
    %v1581 = vpop.f32.mrf.mxu0
    %v1582 = vadd.f32 0.0, %v1581
    %v1583 = vpop.f32.mrf.mxu0
    %1584 = vmatprep.mubr.f32.mxu0 0.0
    %1585 = vmatmul.mubr.f32.gmra.mxu0 %v1245
    %v1586 = vpop.f32.mrf.mxu0
    %v1587 = vadd.f32 0.0, %v1586
    %v1588 = vpop.f32.mrf.mxu0
    %1589 = vdwg.mxu0
    %v1590 = vmul.f32 %v1582, 0.25
    %v1591 = vmul.f32 %v1587, 0.25
    %v1592 = vadd.f32 %v1590, %v79
    %v1593 = vadd.f32 %v1591, %v80
    %v1594 = vsel %vm457, %v1592, -inf
    %1595 = vmax.xlane.f32.xlu0 %v1594
    %v1596 = vpop.xlane.xlu0 %1595
    %v1597 = vsel %vm457, %v1593, -inf
    %1598 = vmax.xlane.f32.xlu0 %v1597
    %v1599 = vpop.xlane.xlu0 %1598
    %v1600 = vsub.f32 %v1592, %v1596
    %v1601 = vsub.f32 %v1593, %v1599
    %v1602 = vmul.f32 %v1600, 1.442695
    %v1603 = vpow.pop %v1602
    %v1604 = vmul.f32 %v1601, 1.442695
    %v1605 = vpow.pop %v1604
    %v1606 = vsel %vm457, %v1603, 0.0
    %1607 = vadd.xlane.f32.xlu0 %v1606
    %v1608 = vpop.xlane.xlu0 %1607
    %v1609 = vsel %vm457, %v1605, 0.0
    %1610 = vadd.xlane.f32.xlu0 %v1609
    %v1611 = vpop.xlane.xlu0 %1610
    %v1612 = vrcp.pop %v1608
    %v1613 = vmul.f32 %v1603, %v1612
    %v1614 = vrcp.pop %v1611
    %v1615 = vmul.f32 %v1605, %v1614
    %v1617 = vsel %vm457, %v1613, 0
    %v1620 = vsel %vm457, %v1615, 0
    %1622 = vmatprep.subr.mxu0 0.0
    %1623 = vmatpush1.msra.mxu0 0.0
    %1624 = vmatprep.subr.mxu0 0.0
    %1625 = vmatpush1.msra.mxu0 0.0
    %1626 = vmatprep.subr.mxu0 0.0
    %1627 = vmatpush1.msra.mxu0 0.0
    %1628 = vmatprep.subr.mxu0 0.0
    %1629 = vmatpush1.msra.mxu0 0.0
    %1630 = vmatprep.subr.mxu0 0.0
    %1631 = vmatpush1.msra.mxu0 0.0
    %1632 = vmatprep.subr.mxu0 0.0
    %1633 = vmatpush1.msra.mxu0 0.0
    %1634 = vmatprep.subr.mxu0 0.0
    %1635 = vmatpush1.msra.mxu0 0.0
    %1636 = vmatprep.subr.mxu0 0.0
    %1637 = vmatpush1.msra.mxu0 0.0
    %1638 = vmatprep.subr.mxu0 0.0
    %1639 = vmatpush1.msra.mxu0 0.0
    %1640 = vmatprep.subr.mxu0 0.0
    %1641 = vmatpush1.msra.mxu0 0.0
    %1642 = vmatprep.subr.mxu0 0.0
    %1643 = vmatpush1.msra.mxu0 0.0
    %1644 = vmatprep.subr.mxu0 0.0
    %1645 = vmatpush1.msra.mxu0 0.0
    %1646 = vmatprep.subr.mxu0 0.0
    %1647 = vmatpush1.msra.mxu0 0.0
    %1648 = vmatprep.subr.mxu0 0.0
    %1649 = vmatpush1.msra.mxu0 0.0
    %1650 = vmatprep.subr.mxu0 0.0
    %1651 = vmatpush1.msra.mxu0 %v1324
    %1652 = vmatprep.subr.mxu0 0.0
    %1653 = vmatpush1.msra.mxu0 %v1318
    %1654 = vmatprep.subr.mxu0 0.0
    %1655 = vmatpush2.msra.mxu0 0.0
    %1656 = vmatprep.subr.mxu0 0.0
    %1657 = vmatpush2.msra.mxu0 0.0
    %1658 = vmatprep.subr.mxu0 0.0
    %1659 = vmatpush2.msra.mxu0 0.0
    %1660 = vmatprep.subr.mxu0 0.0
    %1661 = vmatpush2.msra.mxu0 0.0
    %1662 = vmatprep.subr.mxu0 0.0
    %1663 = vmatpush2.msra.mxu0 0.0
    %1664 = vmatprep.subr.mxu0 0.0
    %1665 = vmatpush2.msra.mxu0 0.0
    %1666 = vmatprep.subr.mxu0 0.0
    %1667 = vmatpush2.msra.mxu0 0.0
    %1668 = vmatprep.subr.mxu0 0.0
    %1669 = vmatpush2.msra.mxu0 0.0
    %1670 = vmatprep.subr.mxu0 0.0
    %1671 = vmatpush2.msra.mxu0 0.0
    %1672 = vmatprep.subr.mxu0 0.0
    %1673 = vmatpush2.msra.mxu0 0.0
    %1674 = vmatprep.subr.mxu0 0.0
    %1675 = vmatpush2.msra.mxu0 0.0
    %1676 = vmatprep.subr.mxu0 0.0
    %1677 = vmatpush2.msra.mxu0 0.0
    %1678 = vmatprep.subr.mxu0 0.0
    %1679 = vmatpush2.msra.mxu0 0.0
    %1680 = vmatprep.subr.mxu0 0.0
    %1681 = vmatpush2.msra.mxu0 0.0
    %1682 = vmatprep.subr.mxu0 0.0
    %1683 = vmatpush2.msra.mxu0 0.0
    %1684 = vmatprep.subr.mxu0 0.0
    %1685 = vmatpush2.msra.mxu0 0.0
    %1686 = vmatprep.mubr.f32.mxu0 0.0
    %1687 = vmatmul.mubr.f32.gmra.mxu0 %v1617
    %v1688 = vpop.f32.mrf.mxu0
    %v1689 = vadd.f32 0.0, %v1688
    %v1690 = vpop.f32.mrf.mxu0
    %1691 = vmatprep.mubr.f32.mxu0 0.0
    %1692 = vmatmul.mubr.f32.gmra.mxu0 %v1620
    %v1693 = vpop.f32.mrf.mxu0
    %v1694 = vadd.f32 0.0, %v1693
    %v1695 = vpop.f32.mrf.mxu0
    %1696 = vdwg.mxu0
    %v1697 = vadd.f32 %v1513, %v1689
    %v1698 = vadd.f32 %v1514, %v1694
    %v1699 = vadd.f32 %v1697, %v1028
    %v1700 = vadd.f32 %v1698, %v1029
    %v1701 = vld [vmem:[%s3 + $0x71] sm:$0x1]
    %v1702 = vld [vmem:[%s3 + $0x72] sm:$0x1]
    %v1703 = vsel %vm39, %v1699, 0.0
    %1704 = vadd.xlane.f32.xlu0 %v1703
    %v1705 = vpop.xlane.xlu0 %1704
    %v1706 = vsel %vm39, %v1700, 0.0
    %1707 = vadd.xlane.f32.xlu0 %v1706
    %v1708 = vpop.xlane.xlu0 %1707
    %v1709 = vmul.f32 %v1705, %v46
    %v1710 = vmul.f32 %v1708, %v46
    %v1711 = vsub.f32 %v1699, %v1709
    %v1712 = vsub.f32 %v1700, %v1710
    %v1713 = vmul.f32 %v1711, %v1711
    %v1714 = vmul.f32 %v1712, %v1712
    %v1715 = vsel %vm39, %v1713, 0.0
    %1716 = vadd.xlane.f32.xlu0 %v1715
    %v1717 = vpop.xlane.xlu0 %1716
    %v1718 = vsel %vm39, %v1714, 0.0
    %1719 = vadd.xlane.f32.xlu0 %v1718
    %v1720 = vpop.xlane.xlu0 %1719
    %v1721 = vmul.f32 %v1717, %v46
    %v1722 = vmul.f32 %v1720, %v46
    %v1723 = vadd.f32 %v1721, 1e-12
    %v1724 = vadd.f32 %v1722, 1e-12
    %v1725 = vrsqrt.pop %v1723
    %v1726 = vrsqrt.pop %v1724
    %v1727 = vmul.f32 %v1711, %v1725
    %v1728 = vmul.f32 %v1712, %v1726
    %v1729 = vlaneseq
    %v1730 = vshrl.u32 %v1729, 7
    %v1731 = vsub.s32 0, %v1730
    %v1732 = vrot.slane %v1701, %v1731
    %v1733 = vmul.f32 %v1727, %v1732
    %v1734 = vmul.f32 %v1728, %v1732
    %v1735 = vlaneseq
    %v1736 = vshrl.u32 %v1735, 7
    %v1737 = vsub.s32 0, %v1736
    %v1738 = vrot.slane %v1702, %v1737
    %v1739 = vadd.f32 %v1733, %v1738
    %v1740 = vadd.f32 %v1734, %v1738
    %v1741 = vld [vmem:[%s3 + $0x78] sm:$0xff]
    %v1742 = vld [vmem:[%s3 + $0x80] sm:$0xff]
    %v1743 = vld [vmem:[%s3 + $0x88] sm:$0xff]
    %v1744 = vld [vmem:[%s3 + $0x90] sm:$0xff]
    %v1745 = vld [vmem:[%s3 + $0x73] sm:$0x1]
    %v1746 = vlaneseq
    %v1747 = vshrl.u32 %v1746, 7
    %v1748 = vsub.s32 0, %v1747
    %v1749 = vrot.slane %v1745, %v1748
    %v1751 = vsel %vm39, %v1739, 0
    %v1754 = vsel %vm39, %v1740, 0
    %1756 = vmatprep.subr.mxu0 0.0
    %1757 = vmatpush1.msra.mxu0 0.0
    %1758 = vmatprep.subr.mxu0 0.0
    %1759 = vmatpush1.msra.mxu0 0.0
    %1760 = vmatprep.subr.mxu0 0.0
    %1761 = vmatpush1.msra.mxu0 0.0
    %1762 = vmatprep.subr.mxu0 0.0
    %1763 = vmatpush1.msra.mxu0 0.0
    %1764 = vmatprep.subr.mxu0 0.0
    %1765 = vmatpush1.msra.mxu0 0.0
    %1766 = vmatprep.subr.mxu0 0.0
    %1767 = vmatpush1.msra.mxu0 0.0
    %1768 = vmatprep.subr.mxu0 0.0
    %1769 = vmatpush1.msra.mxu0 0.0
    %1770 = vmatprep.subr.mxu0 0.0
    %1771 = vmatpush1.msra.mxu0 0.0
    %1772 = vmatprep.subr.mxu0 0.0
    %1773 = vmatpush1.msra.mxu0 0.0
    %1774 = vmatprep.subr.mxu0 0.0
    %1775 = vmatpush1.msra.mxu0 0.0
    %1776 = vmatprep.subr.mxu0 0.0
    %1777 = vmatpush1.msra.mxu0 0.0
    %1778 = vmatprep.subr.mxu0 0.0
    %1779 = vmatpush1.msra.mxu0 0.0
    %1780 = vmatprep.subr.mxu0 0.0
    %1781 = vmatpush1.msra.mxu0 %v1744
    %1782 = vmatprep.subr.mxu0 0.0
    %1783 = vmatpush1.msra.mxu0 %v1743
    %1784 = vmatprep.subr.mxu0 0.0
    %1785 = vmatpush1.msra.mxu0 %v1742
    %1786 = vmatprep.subr.mxu0 0.0
    %1787 = vmatpush1.msra.mxu0 %v1741
    %1788 = vmatprep.subr.mxu0 0.0
    %1789 = vmatpush2.msra.mxu0 0.0
    %1790 = vmatprep.subr.mxu0 0.0
    %1791 = vmatpush2.msra.mxu0 0.0
    %1792 = vmatprep.subr.mxu0 0.0
    %1793 = vmatpush2.msra.mxu0 0.0
    %1794 = vmatprep.subr.mxu0 0.0
    %1795 = vmatpush2.msra.mxu0 0.0
    %1796 = vmatprep.subr.mxu0 0.0
    %1797 = vmatpush2.msra.mxu0 0.0
    %1798 = vmatprep.subr.mxu0 0.0
    %1799 = vmatpush2.msra.mxu0 0.0
    %1800 = vmatprep.subr.mxu0 0.0
    %1801 = vmatpush2.msra.mxu0 0.0
    %1802 = vmatprep.subr.mxu0 0.0
    %1803 = vmatpush2.msra.mxu0 0.0
    %1804 = vmatprep.subr.mxu0 0.0
    %1805 = vmatpush2.msra.mxu0 0.0
    %1806 = vmatprep.subr.mxu0 0.0
    %1807 = vmatpush2.msra.mxu0 0.0
    %1808 = vmatprep.subr.mxu0 0.0
    %1809 = vmatpush2.msra.mxu0 0.0
    %1810 = vmatprep.subr.mxu0 0.0
    %1811 = vmatpush2.msra.mxu0 0.0
    %1812 = vmatprep.subr.mxu0 0.0
    %1813 = vmatpush2.msra.mxu0 0.0
    %1814 = vmatprep.subr.mxu0 0.0
    %1815 = vmatpush2.msra.mxu0 0.0
    %1816 = vmatprep.subr.mxu0 0.0
    %1817 = vmatpush2.msra.mxu0 0.0
    %1818 = vmatprep.subr.mxu0 0.0
    %1819 = vmatpush2.msra.mxu0 0.0
    %1820 = vmatprep.mubr.f32.mxu0 0.0
    %1821 = vmatmul.mubr.f32.gmra.mxu0 %v1751
    %v1822 = vpop.f32.mrf.mxu0
    %v1823 = vadd.f32 %v1749, %v1822
    %v1824 = vpop.f32.mrf.mxu0
    %1825 = vmatprep.mubr.f32.mxu0 0.0
    %1826 = vmatmul.mubr.f32.gmra.mxu0 %v1754
    %v1827 = vpop.f32.mrf.mxu0
    %v1828 = vadd.f32 %v1749, %v1827
    %v1829 = vpop.f32.mrf.mxu0
    %1830 = vdwg.mxu0
    %v1831 = vmul.f32 %v1823, 0.5
    %v1832 = vmul.f32 %v1828, 0.5
    %v1833 = vmul.f32 %v1823, 0.70710677
    %v1834 = vmul.f32 %v1828, 0.70710677
    %v1835 = verf.f32.pop %v1833
    %v1836 = verf.f32.pop %v1834
    %v1837 = vadd.f32 %v1835, 1.0
    %v1838 = vadd.f32 %v1836, 1.0
    %v1839 = vmul.f32 %v1831, %v1837
    %v1840 = vmul.f32 %v1832, %v1838
    %v1841 = vld [vmem:[%s3 + $0x98] sm:$0xff]
    %v1842 = vld [vmem:[%s3 + $0xa0] sm:$0xff]
    %v1843 = vld [vmem:[%s3 + $0xa8] sm:$0xff]
    %v1844 = vld [vmem:[%s3 + $0xb0] sm:$0xff]
    %v1845 = vld [vmem:[%s3 + $0xb8] sm:$0xff]
    %v1846 = vld [vmem:[%s3 + $0xc0] sm:$0xff]
    %v1847 = vld [vmem:[%s3 + $0xc8] sm:$0xff]
    %v1848 = vld [vmem:[%s3 + $0xd0] sm:$0xff]
    %v1849 = vld [vmem:[%s3 + $0x74] sm:$0x1]
    %v1850 = vlaneseq
    %v1851 = vshrl.u32 %v1850, 7
    %v1852 = vsub.s32 0, %v1851
    %v1853 = vrot.slane %v1849, %v1852
    %v1855 = vsel %vm906, %v1839, 0
    %v1858 = vsel %vm906, %v1840, 0
    %1860 = vmatprep.subr.mxu0 0.0
    %1861 = vmatpush1.msra.mxu0 0.0
    %1862 = vmatprep.subr.mxu0 0.0
    %1863 = vmatpush1.msra.mxu0 0.0
    %1864 = vmatprep.subr.mxu0 0.0
    %1865 = vmatpush1.msra.mxu0 0.0
    %1866 = vmatprep.subr.mxu0 0.0
    %1867 = vmatpush1.msra.mxu0 0.0
    %1868 = vmatprep.subr.mxu0 0.0
    %1869 = vmatpush1.msra.mxu0 0.0
    %1870 = vmatprep.subr.mxu0 0.0
    %1871 = vmatpush1.msra.mxu0 0.0
    %1872 = vmatprep.subr.mxu0 0.0
    %1873 = vmatpush1.msra.mxu0 0.0
    %1874 = vmatprep.subr.mxu0 0.0
    %1875 = vmatpush1.msra.mxu0 0.0
    %1876 = vmatprep.subr.mxu0 0.0
    %1877 = vmatpush1.msra.mxu0 %v1848
    %1878 = vmatprep.subr.mxu0 0.0
    %1879 = vmatpush1.msra.mxu0 %v1847
    %1880 = vmatprep.subr.mxu0 0.0
    %1881 = vmatpush1.msra.mxu0 %v1846
    %1882 = vmatprep.subr.mxu0 0.0
    %1883 = vmatpush1.msra.mxu0 %v1845
    %1884 = vmatprep.subr.mxu0 0.0
    %1885 = vmatpush1.msra.mxu0 %v1844
    %1886 = vmatprep.subr.mxu0 0.0
    %1887 = vmatpush1.msra.mxu0 %v1843
    %1888 = vmatprep.subr.mxu0 0.0
    %1889 = vmatpush1.msra.mxu0 %v1842
    %1890 = vmatprep.subr.mxu0 0.0
    %1891 = vmatpush1.msra.mxu0 %v1841
    %1892 = vmatprep.subr.mxu0 0.0
    %1893 = vmatpush2.msra.mxu0 0.0
    %1894 = vmatprep.subr.mxu0 0.0
    %1895 = vmatpush2.msra.mxu0 0.0
    %1896 = vmatprep.subr.mxu0 0.0
    %1897 = vmatpush2.msra.mxu0 0.0
    %1898 = vmatprep.subr.mxu0 0.0
    %1899 = vmatpush2.msra.mxu0 0.0
    %1900 = vmatprep.subr.mxu0 0.0
    %1901 = vmatpush2.msra.mxu0 0.0
    %1902 = vmatprep.subr.mxu0 0.0
    %1903 = vmatpush2.msra.mxu0 0.0
    %1904 = vmatprep.subr.mxu0 0.0
    %1905 = vmatpush2.msra.mxu0 0.0
    %1906 = vmatprep.subr.mxu0 0.0
    %1907 = vmatpush2.msra.mxu0 0.0
    %1908 = vmatprep.subr.mxu0 0.0
    %1909 = vmatpush2.msra.mxu0 0.0
    %1910 = vmatprep.subr.mxu0 0.0
    %1911 = vmatpush2.msra.mxu0 0.0
    %1912 = vmatprep.subr.mxu0 0.0
    %1913 = vmatpush2.msra.mxu0 0.0
    %1914 = vmatprep.subr.mxu0 0.0
    %1915 = vmatpush2.msra.mxu0 0.0
    %1916 = vmatprep.subr.mxu0 0.0
    %1917 = vmatpush2.msra.mxu0 0.0
    %1918 = vmatprep.subr.mxu0 0.0
    %1919 = vmatpush2.msra.mxu0 0.0
    %1920 = vmatprep.subr.mxu0 0.0
    %1921 = vmatpush2.msra.mxu0 0.0
    %1922 = vmatprep.subr.mxu0 0.0
    %1923 = vmatpush2.msra.mxu0 0.0
    %1924 = vmatprep.mubr.f32.mxu0 0.0
    %1925 = vmatmul.mubr.f32.gmra.mxu0 %v1855
    %v1926 = vpop.f32.mrf.mxu0
    %v1927 = vadd.f32 %v1853, %v1926
    %v1928 = vpop.f32.mrf.mxu0
    %1929 = vmatprep.mubr.f32.mxu0 0.0
    %1930 = vmatmul.mubr.f32.gmra.mxu0 %v1858
    %v1931 = vpop.f32.mrf.mxu0
    %v1932 = vadd.f32 %v1853, %v1931
    %v1933 = vpop.f32.mrf.mxu0
    %1934 = vdwg.mxu0
    %v1935 = vadd.f32 %v1927, %v1739
    %v1936 = vadd.f32 %v1932, %v1740
    %v1937 = vld [vmem:[%s3 + $0x75] sm:$0x1]
    %v1938 = vld [vmem:[%s3 + $0x76] sm:$0x1]
    %v1939 = vsel %vm39, %v1935, 0.0
    %1940 = vadd.xlane.f32.xlu0 %v1939
    %v1941 = vpop.xlane.xlu0 %1940
    %v1942 = vsel %vm39, %v1936, 0.0
    %1943 = vadd.xlane.f32.xlu0 %v1942
    %v1944 = vpop.xlane.xlu0 %1943
    %v1945 = vmul.f32 %v1941, %v46
    %v1946 = vmul.f32 %v1944, %v46
    %v1947 = vsub.f32 %v1935, %v1945
    %v1948 = vsub.f32 %v1936, %v1946
    %v1949 = vmul.f32 %v1947, %v1947
    %v1950 = vmul.f32 %v1948, %v1948
    %v1951 = vsel %vm39, %v1949, 0.0
    %1952 = vadd.xlane.f32.xlu0 %v1951
    %v1953 = vpop.xlane.xlu0 %1952
    %v1954 = vsel %vm39, %v1950, 0.0
    %1955 = vadd.xlane.f32.xlu0 %v1954
    %v1956 = vpop.xlane.xlu0 %1955
    %v1957 = vmul.f32 %v1953, %v46
    %v1958 = vmul.f32 %v1956, %v46
    %v1959 = vadd.f32 %v1957, 1e-12
    %v1960 = vadd.f32 %v1958, 1e-12
    %v1961 = vrsqrt.pop %v1959
    %v1962 = vrsqrt.pop %v1960
    %v1963 = vmul.f32 %v1947, %v1961
    %v1964 = vmul.f32 %v1948, %v1962
    %v1965 = vlaneseq
    %v1966 = vshrl.u32 %v1965, 7
    %v1967 = vsub.s32 0, %v1966
    %v1968 = vrot.slane %v1937, %v1967
    %v1969 = vmul.f32 %v1963, %v1968
    %v1970 = vmul.f32 %v1964, %v1968
    %v1971 = vlaneseq
    %v1972 = vshrl.u32 %v1971, 7
    %v1973 = vsub.s32 0, %v1972
    %v1974 = vrot.slane %v1938, %v1973
    %v1975 = vadd.f32 %v1969, %v1974
    %v1976 = vadd.f32 %v1970, %v1974
    %v1977 = vld [vmem:[%s3 + $0x168] sm:$0x3]
    %v1978 = vld [vmem:[%s3 + $0x170] sm:$0xff]
    %v1979 = vld [vmem:[%s3 + $0x178] sm:$0xff]
    %v1980 = vld [vmem:[%s3 + $0x180] sm:$0xff]
    %v1981 = vld [vmem:[%s3 + $0x188] sm:$0xff]
    %v1983 = vsel %vm457, %v1977, 0
    %1985 = vmatprep.subr.mxu0 0.0
    %1986 = vmatpush1.msra.mxu0 0.0
    %1987 = vmatprep.subr.mxu0 0.0
    %1988 = vmatpush1.msra.mxu0 0.0
    %1989 = vmatprep.subr.mxu0 0.0
    %1990 = vmatpush1.msra.mxu0 0.0
    %1991 = vmatprep.subr.mxu0 0.0
    %1992 = vmatpush1.msra.mxu0 0.0
    %1993 = vmatprep.subr.mxu0 0.0
    %1994 = vmatpush1.msra.mxu0 0.0
    %1995 = vmatprep.subr.mxu0 0.0
    %1996 = vmatpush1.msra.mxu0 0.0
    %1997 = vmatprep.subr.mxu0 0.0
    %1998 = vmatpush1.msra.mxu0 0.0
    %1999 = vmatprep.subr.mxu0 0.0
    %2000 = vmatpush1.msra.mxu0 0.0
    %2001 = vmatprep.subr.mxu0 0.0
    %2002 = vmatpush1.msra.mxu0 0.0
    %2003 = vmatprep.subr.mxu0 0.0
    %2004 = vmatpush1.msra.mxu0 0.0
    %2005 = vmatprep.subr.mxu0 0.0
    %2006 = vmatpush1.msra.mxu0 0.0
    %2007 = vmatprep.subr.mxu0 0.0
    %2008 = vmatpush1.msra.mxu0 0.0
    %2009 = vmatprep.subr.mxu0 0.0
    %2010 = vmatpush1.msra.mxu0 0.0
    %2011 = vmatprep.subr.mxu0 0.0
    %2012 = vmatpush1.msra.mxu0 0.0
    %2013 = vmatprep.subr.mxu0 0.0
    %2014 = vmatpush1.msra.mxu0 %v1976
    %2015 = vmatprep.subr.mxu0 0.0
    %2016 = vmatpush1.msra.mxu0 %v1975
    %2017 = vmatprep.subr.mxu0 0.0
    %2018 = vmatpush2.msra.mxu0 0.0
    %2019 = vmatprep.subr.mxu0 0.0
    %2020 = vmatpush2.msra.mxu0 0.0
    %2021 = vmatprep.subr.mxu0 0.0
    %2022 = vmatpush2.msra.mxu0 0.0
    %2023 = vmatprep.subr.mxu0 0.0
    %2024 = vmatpush2.msra.mxu0 0.0
    %2025 = vmatprep.subr.mxu0 0.0
    %2026 = vmatpush2.msra.mxu0 0.0
    %2027 = vmatprep.subr.mxu0 0.0
    %2028 = vmatpush2.msra.mxu0 0.0
    %2029 = vmatprep.subr.mxu0 0.0
    %2030 = vmatpush2.msra.mxu0 0.0
    %2031 = vmatprep.subr.mxu0 0.0
    %2032 = vmatpush2.msra.mxu0 0.0
    %2033 = vmatprep.subr.mxu0 0.0
    %2034 = vmatpush2.msra.mxu0 0.0
    %2035 = vmatprep.subr.mxu0 0.0
    %2036 = vmatpush2.msra.mxu0 0.0
    %2037 = vmatprep.subr.mxu0 0.0
    %2038 = vmatpush2.msra.mxu0 0.0
    %2039 = vmatprep.subr.mxu0 0.0
    %2040 = vmatpush2.msra.mxu0 0.0
    %2041 = vmatprep.subr.mxu0 0.0
    %2042 = vmatpush2.msra.mxu0 0.0
    %2043 = vmatprep.subr.mxu0 0.0
    %2044 = vmatpush2.msra.mxu0 0.0
    %2045 = vmatprep.subr.mxu0 0.0
    %2046 = vmatpush2.msra.mxu0 0.0
    %2047 = vmatprep.subr.mxu0 0.0
    %2048 = vmatpush2.msra.mxu0 0.0
    %2049 = vmatprep.mubr.f32.mxu0 0.0
    %2050 = vmatmul.mubr.f32.gmra.mxu0 %v1983
    %v2051 = vpop.f32.mrf.mxu0
    %v2052 = vadd.f32 0.0, %v2051
    %v2053 = vpop.f32.mrf.mxu0
    %2054 = vdwg.mxu0
    %v2056 = vsel %vm39, %v2052, 0
    %2058 = vmatprep.subr.mxu0 0.0
    %2059 = vmatpush1.msra.mxu0 0.0
    %2060 = vmatprep.subr.mxu0 0.0
    %2061 = vmatpush1.msra.mxu0 0.0
    %2062 = vmatprep.subr.mxu0 0.0
    %2063 = vmatpush1.msra.mxu0 0.0
    %2064 = vmatprep.subr.mxu0 0.0
    %2065 = vmatpush1.msra.mxu0 0.0
    %2066 = vmatprep.subr.mxu0 0.0
    %2067 = vmatpush1.msra.mxu0 0.0
    %2068 = vmatprep.subr.mxu0 0.0
    %2069 = vmatpush1.msra.mxu0 0.0
    %2070 = vmatprep.subr.mxu0 0.0
    %2071 = vmatpush1.msra.mxu0 0.0
    %2072 = vmatprep.subr.mxu0 0.0
    %2073 = vmatpush1.msra.mxu0 0.0
    %2074 = vmatprep.subr.mxu0 0.0
    %2075 = vmatpush1.msra.mxu0 0.0
    %2076 = vmatprep.subr.mxu0 0.0
    %2077 = vmatpush1.msra.mxu0 0.0
    %2078 = vmatprep.subr.mxu0 0.0
    %2079 = vmatpush1.msra.mxu0 0.0
    %2080 = vmatprep.subr.mxu0 0.0
    %2081 = vmatpush1.msra.mxu0 0.0
    %2082 = vmatprep.subr.mxu0 0.0
    %2083 = vmatpush1.msra.mxu0 %v1981
    %2084 = vmatprep.subr.mxu0 0.0
    %2085 = vmatpush1.msra.mxu0 %v1980
    %2086 = vmatprep.subr.mxu0 0.0
    %2087 = vmatpush1.msra.mxu0 %v1979
    %2088 = vmatprep.subr.mxu0 0.0
    %2089 = vmatpush1.msra.mxu0 %v1978
    %2090 = vmatprep.subr.mxu0 0.0
    %2091 = vmatpush2.msra.mxu0 0.0
    %2092 = vmatprep.subr.mxu0 0.0
    %2093 = vmatpush2.msra.mxu0 0.0
    %2094 = vmatprep.subr.mxu0 0.0
    %2095 = vmatpush2.msra.mxu0 0.0
    %2096 = vmatprep.subr.mxu0 0.0
    %2097 = vmatpush2.msra.mxu0 0.0
    %2098 = vmatprep.subr.mxu0 0.0
    %2099 = vmatpush2.msra.mxu0 0.0
    %2100 = vmatprep.subr.mxu0 0.0
    %2101 = vmatpush2.msra.mxu0 0.0
    %2102 = vmatprep.subr.mxu0 0.0
    %2103 = vmatpush2.msra.mxu0 0.0
    %2104 = vmatprep.subr.mxu0 0.0
    %2105 = vmatpush2.msra.mxu0 0.0
    %2106 = vmatprep.subr.mxu0 0.0
    %2107 = vmatpush2.msra.mxu0 0.0
    %2108 = vmatprep.subr.mxu0 0.0
    %2109 = vmatpush2.msra.mxu0 0.0
    %2110 = vmatprep.subr.mxu0 0.0
    %2111 = vmatpush2.msra.mxu0 0.0
    %2112 = vmatprep.subr.mxu0 0.0
    %2113 = vmatpush2.msra.mxu0 0.0
    %2114 = vmatprep.subr.mxu0 0.0
    %2115 = vmatpush2.msra.mxu0 0.0
    %2116 = vmatprep.subr.mxu0 0.0
    %2117 = vmatpush2.msra.mxu0 0.0
    %2118 = vmatprep.subr.mxu0 0.0
    %2119 = vmatpush2.msra.mxu0 0.0
    %2120 = vmatprep.subr.mxu0 0.0
    %2121 = vmatpush2.msra.mxu0 0.0
    %2122 = vmatprep.mubr.f32.mxu0 0.0
    %2123 = vmatmul.mubr.f32.gmra.mxu0 %v2056
    %v2124 = vpop.f32.mrf.mxu0
    %v2125 = vadd.f32 0.0, %v2124
    %v2126 = vpop.f32.mrf.mxu0
    %2127 = vdwg.mxu0
    %2128 = vst [vmem:[#allocation6] sm:$0x3] %v2125
    %v2129 = vld [vmem:[%s3 + $0xd8] sm:$0xff]
    %v2130 = vld [vmem:[%s3 + $0xe0] sm:$0xff]
    %v2131 = vld [vmem:[%s3 + $0xe8] sm:$0xff]
    %v2132 = vld [vmem:[%s3 + $0xf0] sm:$0xff]
    %v2133 = vld [vmem:[%s3 + $0xf8] sm:$0x1]
    %v2134 = vld [vmem:[%s3 + $0x100] sm:$0xff]
    %v2135 = vld [vmem:[%s3 + $0x108] sm:$0xff]
    %v2136 = vld [vmem:[%s3 + $0x110] sm:$0xff]
    %v2137 = vld [vmem:[%s3 + $0x118] sm:$0xff]
    %v2138 = vlaneseq
    %v2139 = vshrl.u32 %v2138, 7
    %v2140 = vsub.s32 0, %v2139
    %v2141 = vrot.slane %v2133, %v2140
    %v2143 = vsel %vm39, %v1975, 0
    %v2146 = vsel %vm39, %v1976, 0
    %2148 = vmatprep.subr.mxu0 0.0
    %2149 = vmatpush1.msra.mxu0 0.0
    %2150 = vmatprep.subr.mxu0 0.0
    %2151 = vmatpush1.msra.mxu0 0.0
    %2152 = vmatprep.subr.mxu0 0.0
    %2153 = vmatpush1.msra.mxu0 0.0
    %2154 = vmatprep.subr.mxu0 0.0
    %2155 = vmatpush1.msra.mxu0 0.0
    %2156 = vmatprep.subr.mxu0 0.0
    %2157 = vmatpush1.msra.mxu0 0.0
    %2158 = vmatprep.subr.mxu0 0.0
    %2159 = vmatpush1.msra.mxu0 0.0
    %2160 = vmatprep.subr.mxu0 0.0
    %2161 = vmatpush1.msra.mxu0 0.0
    %2162 = vmatprep.subr.mxu0 0.0
    %2163 = vmatpush1.msra.mxu0 0.0
    %2164 = vmatprep.subr.mxu0 0.0
    %2165 = vmatpush1.msra.mxu0 0.0
    %2166 = vmatprep.subr.mxu0 0.0
    %2167 = vmatpush1.msra.mxu0 0.0
    %2168 = vmatprep.subr.mxu0 0.0
    %2169 = vmatpush1.msra.mxu0 0.0
    %2170 = vmatprep.subr.mxu0 0.0
    %2171 = vmatpush1.msra.mxu0 0.0
    %2172 = vmatprep.subr.mxu0 0.0
    %2173 = vmatpush1.msra.mxu0 %v2132
    %2174 = vmatprep.subr.mxu0 0.0
    %2175 = vmatpush1.msra.mxu0 %v2131
    %2176 = vmatprep.subr.mxu0 0.0
    %2177 = vmatpush1.msra.mxu0 %v2130
    %2178 = vmatprep.subr.mxu0 0.0
    %2179 = vmatpush1.msra.mxu0 %v2129
    %2180 = vmatprep.subr.mxu0 0.0
    %2181 = vmatpush2.msra.mxu0 0.0
    %2182 = vmatprep.subr.mxu0 0.0
    %2183 = vmatpush2.msra.mxu0 0.0
    %2184 = vmatprep.subr.mxu0 0.0
    %2185 = vmatpush2.msra.mxu0 0.0
    %2186 = vmatprep.subr.mxu0 0.0
    %2187 = vmatpush2.msra.mxu0 0.0
    %2188 = vmatprep.subr.mxu0 0.0
    %2189 = vmatpush2.msra.mxu0 0.0
    %2190 = vmatprep.subr.mxu0 0.0
    %2191 = vmatpush2.msra.mxu0 0.0
    %2192 = vmatprep.subr.mxu0 0.0
    %2193 = vmatpush2.msra.mxu0 0.0
    %2194 = vmatprep.subr.mxu0 0.0
    %2195 = vmatpush2.msra.mxu0 0.0
    %2196 = vmatprep.subr.mxu0 0.0
    %2197 = vmatpush2.msra.mxu0 0.0
    %2198 = vmatprep.subr.mxu0 0.0
    %2199 = vmatpush2.msra.mxu0 0.0
    %2200 = vmatprep.subr.mxu0 0.0
    %2201 = vmatpush2.msra.mxu0 0.0
    %2202 = vmatprep.subr.mxu0 0.0
    %2203 = vmatpush2.msra.mxu0 0.0
    %2204 = vmatprep.subr.mxu0 0.0
    %2205 = vmatpush2.msra.mxu0 0.0
    %2206 = vmatprep.subr.mxu0 0.0
    %2207 = vmatpush2.msra.mxu0 0.0
    %2208 = vmatprep.subr.mxu0 0.0
    %2209 = vmatpush2.msra.mxu0 0.0
    %2210 = vmatprep.subr.mxu0 0.0
    %2211 = vmatpush2.msra.mxu0 0.0
    %2212 = vmatprep.mubr.f32.mxu0 0.0
    %2213 = vmatmul.mubr.f32.gmra.mxu0 %v2143
    %v2214 = vpop.f32.mrf.mxu0
    %v2215 = vadd.f32 %v2141, %v2214
    %v2216 = vpop.f32.mrf.mxu0
    %2217 = vmatprep.mubr.f32.mxu0 0.0
    %2218 = vmatmul.mubr.f32.gmra.mxu0 %v2146
    %v2219 = vpop.f32.mrf.mxu0
    %v2220 = vadd.f32 %v2141, %v2219
    %v2221 = vpop.f32.mrf.mxu0
    %2222 = vdwg.mxu0
    %v2223 = vld [vmem:[%s3 + $0x148] sm:$0xff]
    %v2224 = vld [vmem:[%s3 + $0x150] sm:$0xff]
    %v2225 = vld [vmem:[%s3 + $0x158] sm:$0xff]
    %v2226 = vld [vmem:[%s3 + $0x160] sm:$0xff]
    %v2227 = vld [vmem:[%s3 + $0x2] sm:$0x1]
    %v2229 = vsel %vm457, %v2223, 0
    %v2232 = vsel %vm457, %v2224, 0
    %2234 = vmatprep.subr.mxu0 0.0
    %2235 = vmatpush1.msra.mxu0 0.0
    %2236 = vmatprep.subr.mxu0 0.0
    %2237 = vmatpush1.msra.mxu0 0.0
    %2238 = vmatprep.subr.mxu0 0.0
    %2239 = vmatpush1.msra.mxu0 0.0
    %2240 = vmatprep.subr.mxu0 0.0
    %2241 = vmatpush1.msra.mxu0 0.0
    %2242 = vmatprep.subr.mxu0 0.0
    %2243 = vmatpush1.msra.mxu0 0.0
    %2244 = vmatprep.subr.mxu0 0.0
    %2245 = vmatpush1.msra.mxu0 0.0
    %2246 = vmatprep.subr.mxu0 0.0
    %2247 = vmatpush1.msra.mxu0 0.0
    %2248 = vmatprep.subr.mxu0 0.0
    %2249 = vmatpush1.msra.mxu0 0.0
    %2250 = vmatprep.subr.mxu0 0.0
    %2251 = vmatpush1.msra.mxu0 0.0
    %2252 = vmatprep.subr.mxu0 0.0
    %2253 = vmatpush1.msra.mxu0 0.0
    %2254 = vmatprep.subr.mxu0 0.0
    %2255 = vmatpush1.msra.mxu0 0.0
    %2256 = vmatprep.subr.mxu0 0.0
    %2257 = vmatpush1.msra.mxu0 0.0
    %2258 = vmatprep.subr.mxu0 0.0
    %2259 = vmatpush1.msra.mxu0 0.0
    %2260 = vmatprep.subr.mxu0 0.0
    %2261 = vmatpush1.msra.mxu0 0.0
    %2262 = vmatprep.subr.mxu0 0.0
    %2263 = vmatpush1.msra.mxu0 %v2220
    %2264 = vmatprep.subr.mxu0 0.0
    %2265 = vmatpush1.msra.mxu0 %v2215
    %2266 = vmatprep.subr.mxu0 0.0
    %2267 = vmatpush2.msra.mxu0 0.0
    %2268 = vmatprep.subr.mxu0 0.0
    %2269 = vmatpush2.msra.mxu0 0.0
    %2270 = vmatprep.subr.mxu0 0.0
    %2271 = vmatpush2.msra.mxu0 0.0
    %2272 = vmatprep.subr.mxu0 0.0
    %2273 = vmatpush2.msra.mxu0 0.0
    %2274 = vmatprep.subr.mxu0 0.0
    %2275 = vmatpush2.msra.mxu0 0.0
    %2276 = vmatprep.subr.mxu0 0.0
    %2277 = vmatpush2.msra.mxu0 0.0
    %2278 = vmatprep.subr.mxu0 0.0
    %2279 = vmatpush2.msra.mxu0 0.0
    %2280 = vmatprep.subr.mxu0 0.0
    %2281 = vmatpush2.msra.mxu0 0.0
    %2282 = vmatprep.subr.mxu0 0.0
    %2283 = vmatpush2.msra.mxu0 0.0
    %2284 = vmatprep.subr.mxu0 0.0
    %2285 = vmatpush2.msra.mxu0 0.0
    %2286 = vmatprep.subr.mxu0 0.0
    %2287 = vmatpush2.msra.mxu0 0.0
    %2288 = vmatprep.subr.mxu0 0.0
    %2289 = vmatpush2.msra.mxu0 0.0
    %2290 = vmatprep.subr.mxu0 0.0
    %2291 = vmatpush2.msra.mxu0 0.0
    %2292 = vmatprep.subr.mxu0 0.0
    %2293 = vmatpush2.msra.mxu0 0.0
    %2294 = vmatprep.subr.mxu0 0.0
    %2295 = vmatpush2.msra.mxu0 0.0
    %2296 = vmatprep.subr.mxu0 0.0
    %2297 = vmatpush2.msra.mxu0 0.0
    %2298 = vmatprep.mubr.f32.mxu0 0.0
    %2299 = vmatmul.mubr.f32.gmra.mxu0 %v2229
    %v2300 = vpop.f32.mrf.mxu0
    %v2301 = vadd.f32 0.0, %v2300
    %v2302 = vpop.f32.mrf.mxu0
    %2303 = vmatprep.mubr.f32.mxu0 0.0
    %2304 = vmatmul.mubr.f32.gmra.mxu0 %v2232
    %v2305 = vpop.f32.mrf.mxu0
    %v2306 = vadd.f32 0.0, %v2305
    %v2307 = vpop.f32.mrf.mxu0
    %2308 = vdwg.mxu0
    %v2309 = vlaneseq
    %v2310 = vshrl.u32 %v2309, 7
    %v2311 = vsub.s32 0, %v2310
    %v2312 = vrot.slane %v2227, %v2311
    %v2313 = vmul.f32 %v2312, %v2301
    %v2314 = vmul.f32 %v2312, %v2306
    %v2315 = vsub.f32 1.0, %v2227
    %v2317 = vsel %vm457, %v2225, 0
    %v2320 = vsel %vm457, %v2226, 0
    %2322 = vmatprep.subr.mxu0 0.0
    %2323 = vmatpush1.msra.mxu0 0.0
    %2324 = vmatprep.subr.mxu0 0.0
    %2325 = vmatpush1.msra.mxu0 0.0
    %2326 = vmatprep.subr.mxu0 0.0
    %2327 = vmatpush1.msra.mxu0 0.0
    %2328 = vmatprep.subr.mxu0 0.0
    %2329 = vmatpush1.msra.mxu0 0.0
    %2330 = vmatprep.subr.mxu0 0.0
    %2331 = vmatpush1.msra.mxu0 0.0
    %2332 = vmatprep.subr.mxu0 0.0
    %2333 = vmatpush1.msra.mxu0 0.0
    %2334 = vmatprep.subr.mxu0 0.0
    %2335 = vmatpush1.msra.mxu0 0.0
    %2336 = vmatprep.subr.mxu0 0.0
    %2337 = vmatpush1.msra.mxu0 0.0
    %2338 = vmatprep.subr.mxu0 0.0
    %2339 = vmatpush1.msra.mxu0 0.0
    %2340 = vmatprep.subr.mxu0 0.0
    %2341 = vmatpush1.msra.mxu0 0.0
    %2342 = vmatprep.subr.mxu0 0.0
    %2343 = vmatpush1.msra.mxu0 0.0
    %2344 = vmatprep.subr.mxu0 0.0
    %2345 = vmatpush1.msra.mxu0 0.0
    %2346 = vmatprep.subr.mxu0 0.0
    %2347 = vmatpush1.msra.mxu0 0.0
    %2348 = vmatprep.subr.mxu0 0.0
    %2349 = vmatpush1.msra.mxu0 0.0
    %2350 = vmatprep.subr.mxu0 0.0
    %2351 = vmatpush1.msra.mxu0 %v2220
    %2352 = vmatprep.subr.mxu0 0.0
    %2353 = vmatpush1.msra.mxu0 %v2215
    %2354 = vmatprep.subr.mxu0 0.0
    %2355 = vmatpush2.msra.mxu0 0.0
    %2356 = vmatprep.subr.mxu0 0.0
    %2357 = vmatpush2.msra.mxu0 0.0
    %2358 = vmatprep.subr.mxu0 0.0
    %2359 = vmatpush2.msra.mxu0 0.0
    %2360 = vmatprep.subr.mxu0 0.0
    %2361 = vmatpush2.msra.mxu0 0.0
    %2362 = vmatprep.subr.mxu0 0.0
    %2363 = vmatpush2.msra.mxu0 0.0
    %2364 = vmatprep.subr.mxu0 0.0
    %2365 = vmatpush2.msra.mxu0 0.0
    %2366 = vmatprep.subr.mxu0 0.0
    %2367 = vmatpush2.msra.mxu0 0.0
    %2368 = vmatprep.subr.mxu0 0.0
    %2369 = vmatpush2.msra.mxu0 0.0
    %2370 = vmatprep.subr.mxu0 0.0
    %2371 = vmatpush2.msra.mxu0 0.0
    %2372 = vmatprep.subr.mxu0 0.0
    %2373 = vmatpush2.msra.mxu0 0.0
    %2374 = vmatprep.subr.mxu0 0.0
    %2375 = vmatpush2.msra.mxu0 0.0
    %2376 = vmatprep.subr.mxu0 0.0
    %2377 = vmatpush2.msra.mxu0 0.0
    %2378 = vmatprep.subr.mxu0 0.0
    %2379 = vmatpush2.msra.mxu0 0.0
    %2380 = vmatprep.subr.mxu0 0.0
    %2381 = vmatpush2.msra.mxu0 0.0
    %2382 = vmatprep.subr.mxu0 0.0
    %2383 = vmatpush2.msra.mxu0 0.0
    %2384 = vmatprep.subr.mxu0 0.0
    %2385 = vmatpush2.msra.mxu0 0.0
    %2386 = vmatprep.mubr.f32.mxu0 0.0
    %2387 = vmatmul.mubr.f32.gmra.mxu0 %v2317
    %v2388 = vpop.f32.mrf.mxu0
    %v2389 = vadd.f32 0.0, %v2388
    %v2390 = vpop.f32.mrf.mxu0
    %2391 = vmatprep.mubr.f32.mxu0 0.0
    %2392 = vmatmul.mubr.f32.gmra.mxu0 %v2320
    %v2393 = vpop.f32.mrf.mxu0
    %v2394 = vadd.f32 0.0, %v2393
    %v2395 = vpop.f32.mrf.mxu0
    %2396 = vdwg.mxu0
    %v2397 = vlaneseq
    %v2398 = vshrl.u32 %v2397, 7
    %v2399 = vsub.s32 0, %v2398
    %v2400 = vrot.slane %v2315, %v2399
    %v2401 = vmul.f32 %v2400, %v2389
    %v2402 = vmul.f32 %v2400, %v2394
    %v2403 = vadd.f32 %v2313, %v2401
    %v2404 = vadd.f32 %v2314, %v2402
    %v2405 = vld [vmem:[%s3 + $0x3] sm:$0x1]
    %v2406 = vld [vmem:[%s3 + $0x4] sm:$0x1]
    %v2408 = vsel %vm39, 0.0, 0
    %2410 = vmatprep.subr.mxu0 0.0
    %2411 = vmatpush1.msra.mxu0 0.0
    %2412 = vmatprep.subr.mxu0 0.0
    %2413 = vmatpush1.msra.mxu0 0.0
    %2414 = vmatprep.subr.mxu0 0.0
    %2415 = vmatpush1.msra.mxu0 0.0
    %2416 = vmatprep.subr.mxu0 0.0
    %2417 = vmatpush1.msra.mxu0 0.0
    %2418 = vmatprep.subr.mxu0 0.0
    %2419 = vmatpush1.msra.mxu0 0.0
    %2420 = vmatprep.subr.mxu0 0.0
    %2421 = vmatpush1.msra.mxu0 0.0
    %2422 = vmatprep.subr.mxu0 0.0
    %2423 = vmatpush1.msra.mxu0 0.0
    %2424 = vmatprep.subr.mxu0 0.0
    %2425 = vmatpush1.msra.mxu0 0.0
    %2426 = vmatprep.subr.mxu0 0.0
    %2427 = vmatpush1.msra.mxu0 0.0
    %2428 = vmatprep.subr.mxu0 0.0
    %2429 = vmatpush1.msra.mxu0 0.0
    %2430 = vmatprep.subr.mxu0 0.0
    %2431 = vmatpush1.msra.mxu0 0.0
    %2432 = vmatprep.subr.mxu0 0.0
    %2433 = vmatpush1.msra.mxu0 0.0
    %2434 = vmatprep.subr.mxu0 0.0
    %2435 = vmatpush1.msra.mxu0 %v2137
    %2436 = vmatprep.subr.mxu0 0.0
    %2437 = vmatpush1.msra.mxu0 %v2136
    %2438 = vmatprep.subr.mxu0 0.0
    %2439 = vmatpush1.msra.mxu0 %v2135
    %2440 = vmatprep.subr.mxu0 0.0
    %2441 = vmatpush1.msra.mxu0 %v2134
    %2442 = vmatprep.subr.mxu0 0.0
    %2443 = vmatpush2.msra.mxu0 0.0
    %2444 = vmatprep.subr.mxu0 0.0
    %2445 = vmatpush2.msra.mxu0 0.0
    %2446 = vmatprep.subr.mxu0 0.0
    %2447 = vmatpush2.msra.mxu0 0.0
    %2448 = vmatprep.subr.mxu0 0.0
    %2449 = vmatpush2.msra.mxu0 0.0
    %2450 = vmatprep.subr.mxu0 0.0
    %2451 = vmatpush2.msra.mxu0 0.0
    %2452 = vmatprep.subr.mxu0 0.0
    %2453 = vmatpush2.msra.mxu0 0.0
    %2454 = vmatprep.subr.mxu0 0.0
    %2455 = vmatpush2.msra.mxu0 0.0
    %2456 = vmatprep.subr.mxu0 0.0
    %2457 = vmatpush2.msra.mxu0 0.0
    %2458 = vmatprep.subr.mxu0 0.0
    %2459 = vmatpush2.msra.mxu0 0.0
    %2460 = vmatprep.subr.mxu0 0.0
    %2461 = vmatpush2.msra.mxu0 0.0
    %2462 = vmatprep.subr.mxu0 0.0
    %2463 = vmatpush2.msra.mxu0 0.0
    %2464 = vmatprep.subr.mxu0 0.0
    %2465 = vmatpush2.msra.mxu0 0.0
    %2466 = vmatprep.subr.mxu0 0.0
    %2467 = vmatpush2.msra.mxu0 0.0
    %2468 = vmatprep.subr.mxu0 0.0
    %2469 = vmatpush2.msra.mxu0 0.0
    %2470 = vmatprep.subr.mxu0 0.0
    %2471 = vmatpush2.msra.mxu0 0.0
    %2472 = vmatprep.subr.mxu0 0.0
    %2473 = vmatpush2.msra.mxu0 0.0
    %2474 = vmatprep.mubr.f32.mxu0 0.0
    %2475 = vmatmul.mubr.f32.gmra.mxu0 %v2408
    %v2476 = vpop.f32.mrf.mxu0
    %v2477 = vadd.f32 0.0, %v2476
    %v2478 = vpop.f32.mrf.mxu0
    %2479 = vdwg.mxu0
    %v2480 = vadd.f32 %v2403, %v2477
    %v2481 = vlaneseq
    %v2482 = vshrl.u32 %v2481, 7
    %v2483 = vsub.s32 0, %v2482
    %v2484 = vrot.slane %v2405, %v2483
    %v2485 = vmul.f32 %v2480, %v2484
    %v2486 = vtanh.pop %v2485
    %v2487 = vmul.f32 %v2486, %v2484
    %v2488 = vlaneseq
    %v2489 = vshrl.u32 %v2488, 7
    %v2490 = vsub.s32 0, %v2489
    %v2491 = vrot.slane %v2406, %v2490
    %v2492 = vadd.f32 %v2487, %v2491
    %v2493 = vmul.f32 %v2492, 0.0
    %2495 = vrot.lane.b32.xlu0 %v2492, 64
    %v2496 = vpop.permute.xlu0 %2495
    %v2498 = vmul.f32 %v2492, %v2496
    %2500 = vrot.lane.b32.xlu0 %v2498, 32
    %v2501 = vpop.permute.xlu0 %2500
    %v2503 = vadd.f32 %v2493, %v2501
    %v2504 = vtanh.pop %v2503
    %2506 = vrot.lane.b32.xlu0 %v2504, 64
    %v2507 = vpop.permute.xlu0 %2506
    %v2509 = vmul.f32 %v2492, %v2507
    %2511 = vrot.lane.b32.xlu0 %v2509, 32
    %v2512 = vpop.permute.xlu0 %2511
    %v2513 = vsel %vm39, %v2512, 0
    %2515 = vmatprep.subr.mxu0 0.0
    %2516 = vmatpush1.msra.mxu0 0.0
    %2517 = vmatprep.subr.mxu0 0.0
    %2518 = vmatpush1.msra.mxu0 0.0
    %2519 = vmatprep.subr.mxu0 0.0
    %2520 = vmatpush1.msra.mxu0 0.0
    %2521 = vmatprep.subr.mxu0 0.0
    %2522 = vmatpush1.msra.mxu0 0.0
    %2523 = vmatprep.subr.mxu0 0.0
    %2524 = vmatpush1.msra.mxu0 0.0
    %2525 = vmatprep.subr.mxu0 0.0
    %2526 = vmatpush1.msra.mxu0 0.0
    %2527 = vmatprep.subr.mxu0 0.0
    %2528 = vmatpush1.msra.mxu0 0.0
    %2529 = vmatprep.subr.mxu0 0.0
    %2530 = vmatpush1.msra.mxu0 0.0
    %2531 = vmatprep.subr.mxu0 0.0
    %2532 = vmatpush1.msra.mxu0 0.0
    %2533 = vmatprep.subr.mxu0 0.0
    %2534 = vmatpush1.msra.mxu0 0.0
    %2535 = vmatprep.subr.mxu0 0.0
    %2536 = vmatpush1.msra.mxu0 0.0
    %2537 = vmatprep.subr.mxu0 0.0
    %2538 = vmatpush1.msra.mxu0 0.0
    %2539 = vmatprep.subr.mxu0 0.0
    %2540 = vmatpush1.msra.mxu0 %v2137
    %2541 = vmatprep.subr.mxu0 0.0
    %2542 = vmatpush1.msra.mxu0 %v2136
    %2543 = vmatprep.subr.mxu0 0.0
    %2544 = vmatpush1.msra.mxu0 %v2135
    %2545 = vmatprep.subr.mxu0 0.0
    %2546 = vmatpush1.msra.mxu0 %v2134
    %2547 = vmatprep.subr.mxu0 0.0
    %2548 = vmatpush2.msra.mxu0 0.0
    %2549 = vmatprep.subr.mxu0 0.0
    %2550 = vmatpush2.msra.mxu0 0.0
    %2551 = vmatprep.subr.mxu0 0.0
    %2552 = vmatpush2.msra.mxu0 0.0
    %2553 = vmatprep.subr.mxu0 0.0
    %2554 = vmatpush2.msra.mxu0 0.0
    %2555 = vmatprep.subr.mxu0 0.0
    %2556 = vmatpush2.msra.mxu0 0.0
    %2557 = vmatprep.subr.mxu0 0.0
    %2558 = vmatpush2.msra.mxu0 0.0
    %2559 = vmatprep.subr.mxu0 0.0
    %2560 = vmatpush2.msra.mxu0 0.0
    %2561 = vmatprep.subr.mxu0 0.0
    %2562 = vmatpush2.msra.mxu0 0.0
    %2563 = vmatprep.subr.mxu0 0.0
    %2564 = vmatpush2.msra.mxu0 0.0
    %2565 = vmatprep.subr.mxu0 0.0
    %2566 = vmatpush2.msra.mxu0 0.0
    %2567 = vmatprep.subr.mxu0 0.0
    %2568 = vmatpush2.msra.mxu0 0.0
    %2569 = vmatprep.subr.mxu0 0.0
    %2570 = vmatpush2.msra.mxu0 0.0
    %2571 = vmatprep.subr.mxu0 0.0
    %2572 = vmatpush2.msra.mxu0 0.0
    %2573 = vmatprep.subr.mxu0 0.0
    %2574 = vmatpush2.msra.mxu0 0.0
    %2575 = vmatprep.subr.mxu0 0.0
    %2576 = vmatpush2.msra.mxu0 0.0
    %2577 = vmatprep.subr.mxu0 0.0
    %2578 = vmatpush2.msra.mxu0 0.0
    %2579 = vmatprep.mubr.f32.mxu0 0.0
    %2580 = vmatmul.mubr.f32.gmra.mxu0 %v2513
    %v2581 = vpop.f32.mrf.mxu0
    %v2582 = vadd.f32 0.0, %v2581
    %v2583 = vpop.f32.mrf.mxu0
    %2584 = vdwg.mxu0
    %v2586 = vrot.slane %v2582, 6
    %v2588 = vadd.f32 %v2403, %v2586
    %v2589 = vmul.f32 %v2588, %v2484
    %v2590 = vtanh.pop %v2589
    %v2591 = vmul.f32 %v2590, %v2484
    %v2592 = vadd.f32 %v2591, %v2491
    %v2594 = vrot.slane %v2503, 6
    %v2596 = vmul.f32 %v2592, %v2594
    %2598 = vrot.lane.b32.xlu0 %v2592, 64
    %v2599 = vpop.permute.xlu0 %2598
    %v2601 = vmul.f32 %v2592, %v2599
    %2603 = vrot.lane.b32.xlu0 %v2601, 32
    %v2604 = vpop.permute.xlu0 %2603
    %v2606 = vadd.f32 %v2596, %v2604
    %v2607 = vtanh.pop %v2606
    %2609 = vrot.lane.b32.xlu0 %v2607, 64
    %v2610 = vpop.permute.xlu0 %2609
    %v2612 = vmul.f32 %v2592, %v2610
    %v2614 = vrot.slane %v2612, 2
    %2615 = vrot.lane.b32.xlu0 %v2614, 32
    %v2616 = vpop.permute.xlu0 %2615
    %v2617 = vsel %vm39, %v2616, 0
    %2619 = vmatprep.subr.mxu0 0.0
    %2620 = vmatpush1.msra.mxu0 0.0
    %2621 = vmatprep.subr.mxu0 0.0
    %2622 = vmatpush1.msra.mxu0 0.0
    %2623 = vmatprep.subr.mxu0 0.0
    %2624 = vmatpush1.msra.mxu0 0.0
    %2625 = vmatprep.subr.mxu0 0.0
    %2626 = vmatpush1.msra.mxu0 0.0
    %2627 = vmatprep.subr.mxu0 0.0
    %2628 = vmatpush1.msra.mxu0 0.0
    %2629 = vmatprep.subr.mxu0 0.0
    %2630 = vmatpush1.msra.mxu0 0.0
    %2631 = vmatprep.subr.mxu0 0.0
    %2632 = vmatpush1.msra.mxu0 0.0
    %2633 = vmatprep.subr.mxu0 0.0
    %2634 = vmatpush1.msra.mxu0 0.0
    %2635 = vmatprep.subr.mxu0 0.0
    %2636 = vmatpush1.msra.mxu0 0.0
    %2637 = vmatprep.subr.mxu0 0.0
    %2638 = vmatpush1.msra.mxu0 0.0
    %2639 = vmatprep.subr.mxu0 0.0
    %2640 = vmatpush1.msra.mxu0 0.0
    %2641 = vmatprep.subr.mxu0 0.0
    %2642 = vmatpush1.msra.mxu0 0.0
    %2643 = vmatprep.subr.mxu0 0.0
    %2644 = vmatpush1.msra.mxu0 %v2137
    %2645 = vmatprep.subr.mxu0 0.0
    %2646 = vmatpush1.msra.mxu0 %v2136
    %2647 = vmatprep.subr.mxu0 0.0
    %2648 = vmatpush1.msra.mxu0 %v2135
    %2649 = vmatprep.subr.mxu0 0.0
    %2650 = vmatpush1.msra.mxu0 %v2134
    %2651 = vmatprep.subr.mxu0 0.0
    %2652 = vmatpush2.msra.mxu0 0.0
    %2653 = vmatprep.subr.mxu0 0.0
    %2654 = vmatpush2.msra.mxu0 0.0
    %2655 = vmatprep.subr.mxu0 0.0
    %2656 = vmatpush2.msra.mxu0 0.0
    %2657 = vmatprep.subr.mxu0 0.0
    %2658 = vmatpush2.msra.mxu0 0.0
    %2659 = vmatprep.subr.mxu0 0.0
    %2660 = vmatpush2.msra.mxu0 0.0
    %2661 = vmatprep.subr.mxu0 0.0
    %2662 = vmatpush2.msra.mxu0 0.0
    %2663 = vmatprep.subr.mxu0 0.0
    %2664 = vmatpush2.msra.mxu0 0.0
    %2665 = vmatprep.subr.mxu0 0.0
    %2666 = vmatpush2.msra.mxu0 0.0
    %2667 = vmatprep.subr.mxu0 0.0
    %2668 = vmatpush2.msra.mxu0 0.0
    %2669 = vmatprep.subr.mxu0 0.0
    %2670 = vmatpush2.msra.mxu0 0.0
    %2671 = vmatprep.subr.mxu0 0.0
    %2672 = vmatpush2.msra.mxu0 0.0
    %2673 = vmatprep.subr.mxu0 0.0
    %2674 = vmatpush2.msra.mxu0 0.0
    %2675 = vmatprep.subr.mxu0 0.0
    %2676 = vmatpush2.msra.mxu0 0.0
    %2677 = vmatprep.subr.mxu0 0.0
    %2678 = vmatpush2.msra.mxu0 0.0
    %2679 = vmatprep.subr.mxu0 0.0
    %2680 = vmatpush2.msra.mxu0 0.0
    %2681 = vmatprep.subr.mxu0 0.0
    %2682 = vmatpush2.msra.mxu0 0.0
    %2683 = vmatprep.mubr.f32.mxu0 0.0
    %2684 = vmatmul.mubr.f32.gmra.mxu0 %v2617
    %v2685 = vpop.f32.mrf.mxu0
    %v2686 = vadd.f32 0.0, %v2685
    %v2687 = vpop.f32.mrf.mxu0
    %2688 = vdwg.mxu0
    %v2690 = vrot.slane %v2686, 4
    %v2692 = vadd.f32 %v2403, %v2690
    %v2693 = vmul.f32 %v2692, %v2484
    %v2694 = vtanh.pop %v2693
    %v2695 = vmul.f32 %v2694, %v2484
    %v2696 = vadd.f32 %v2695, %v2491
    %v2698 = vrot.slane %v2606, 6
    %v2700 = vmul.f32 %v2696, %v2698
    %2702 = vrot.lane.b32.xlu0 %v2696, 64
    %v2703 = vpop.permute.xlu0 %2702
    %v2705 = vmul.f32 %v2696, %v2703
    %2707 = vrot.lane.b32.xlu0 %v2705, 32
    %v2708 = vpop.permute.xlu0 %2707
    %v2710 = vadd.f32 %v2700, %v2708
    %v2711 = vtanh.pop %v2710
    %2713 = vrot.lane.b32.xlu0 %v2711, 64
    %v2714 = vpop.permute.xlu0 %2713
    %v2716 = vmul.f32 %v2696, %v2714
    %v2718 = vrot.slane %v2716, 4
    %2719 = vrot.lane.b32.xlu0 %v2718, 32
    %v2720 = vpop.permute.xlu0 %2719
    %v2721 = vsel %vm39, %v2720, 0
    %2723 = vmatprep.subr.mxu0 0.0
    %2724 = vmatpush1.msra.mxu0 0.0
    %2725 = vmatprep.subr.mxu0 0.0
    %2726 = vmatpush1.msra.mxu0 0.0
    %2727 = vmatprep.subr.mxu0 0.0
    %2728 = vmatpush1.msra.mxu0 0.0
    %2729 = vmatprep.subr.mxu0 0.0
    %2730 = vmatpush1.msra.mxu0 0.0
    %2731 = vmatprep.subr.mxu0 0.0
    %2732 = vmatpush1.msra.mxu0 0.0
    %2733 = vmatprep.subr.mxu0 0.0
    %2734 = vmatpush1.msra.mxu0 0.0
    %2735 = vmatprep.subr.mxu0 0.0
    %2736 = vmatpush1.msra.mxu0 0.0
    %2737 = vmatprep.subr.mxu0 0.0
    %2738 = vmatpush1.msra.mxu0 0.0
    %2739 = vmatprep.subr.mxu0 0.0
    %2740 = vmatpush1.msra.mxu0 0.0
    %2741 = vmatprep.subr.mxu0 0.0
    %2742 = vmatpush1.msra.mxu0 0.0
    %2743 = vmatprep.subr.mxu0 0.0
    %2744 = vmatpush1.msra.mxu0 0.0
    %2745 = vmatprep.subr.mxu0 0.0
    %2746 = vmatpush1.msra.mxu0 0.0
    %2747 = vmatprep.subr.mxu0 0.0
    %2748 = vmatpush1.msra.mxu0 %v2137
    %2749 = vmatprep.subr.mxu0 0.0
    %2750 = vmatpush1.msra.mxu0 %v2136
    %2751 = vmatprep.subr.mxu0 0.0
    %2752 = vmatpush1.msra.mxu0 %v2135
    %2753 = vmatprep.subr.mxu0 0.0
    %2754 = vmatpush1.msra.mxu0 %v2134
    %2755 = vmatprep.subr.mxu0 0.0
    %2756 = vmatpush2.msra.mxu0 0.0
    %2757 = vmatprep.subr.mxu0 0.0
    %2758 = vmatpush2.msra.mxu0 0.0
    %2759 = vmatprep.subr.mxu0 0.0
    %2760 = vmatpush2.msra.mxu0 0.0
    %2761 = vmatprep.subr.mxu0 0.0
    %2762 = vmatpush2.msra.mxu0 0.0
    %2763 = vmatprep.subr.mxu0 0.0
    %2764 = vmatpush2.msra.mxu0 0.0
    %2765 = vmatprep.subr.mxu0 0.0
    %2766 = vmatpush2.msra.mxu0 0.0
    %2767 = vmatprep.subr.mxu0 0.0
    %2768 = vmatpush2.msra.mxu0 0.0
    %2769 = vmatprep.subr.mxu0 0.0
    %2770 = vmatpush2.msra.mxu0 0.0
    %2771 = vmatprep.subr.mxu0 0.0
    %2772 = vmatpush2.msra.mxu0 0.0
    %2773 = vmatprep.subr.mxu0 0.0
    %2774 = vmatpush2.msra.mxu0 0.0
    %2775 = vmatprep.subr.mxu0 0.0
    %2776 = vmatpush2.msra.mxu0 0.0
    %2777 = vmatprep.subr.mxu0 0.0
    %2778 = vmatpush2.msra.mxu0 0.0
    %2779 = vmatprep.subr.mxu0 0.0
    %2780 = vmatpush2.msra.mxu0 0.0
    %2781 = vmatprep.subr.mxu0 0.0
    %2782 = vmatpush2.msra.mxu0 0.0
    %2783 = vmatprep.subr.mxu0 0.0
    %2784 = vmatpush2.msra.mxu0 0.0
    %2785 = vmatprep.subr.mxu0 0.0
    %2786 = vmatpush2.msra.mxu0 0.0
    %2787 = vmatprep.mubr.f32.mxu0 0.0
    %2788 = vmatmul.mubr.f32.gmra.mxu0 %v2721
    %v2789 = vpop.f32.mrf.mxu0
    %v2790 = vadd.f32 0.0, %v2789
    %v2791 = vpop.f32.mrf.mxu0
    %2792 = vdwg.mxu0
    %v2794 = vrot.slane %v2790, 2
    %v2796 = vadd.f32 %v2403, %v2794
    %v2797 = vmul.f32 %v2796, %v2484
    %v2798 = vtanh.pop %v2797
    %v2799 = vmul.f32 %v2798, %v2484
    %v2800 = vadd.f32 %v2799, %v2491
    %v2802 = vrot.slane %v2710, 6
    %v2804 = vmul.f32 %v2800, %v2802
    %2806 = vrot.lane.b32.xlu0 %v2800, 64
    %v2807 = vpop.permute.xlu0 %2806
    %v2809 = vmul.f32 %v2800, %v2807
    %2811 = vrot.lane.b32.xlu0 %v2809, 32
    %v2812 = vpop.permute.xlu0 %2811
    %v2814 = vadd.f32 %v2804, %v2812
    %v2815 = vtanh.pop %v2814
    %2817 = vrot.lane.b32.xlu0 %v2815, 64
    %v2818 = vpop.permute.xlu0 %2817
    %v2820 = vmul.f32 %v2800, %v2818
    %v2822 = vrot.slane %v2820, 6
    %2823 = vrot.lane.b32.xlu0 %v2822, 32
    %v2824 = vpop.permute.xlu0 %2823
    %v2825 = vsel %vm39, %v2824, 0
    %2827 = vmatprep.subr.mxu0 0.0
    %2828 = vmatpush1.msra.mxu0 0.0
    %2829 = vmatprep.subr.mxu0 0.0
    %2830 = vmatpush1.msra.mxu0 0.0
    %2831 = vmatprep.subr.mxu0 0.0
    %2832 = vmatpush1.msra.mxu0 0.0
    %2833 = vmatprep.subr.mxu0 0.0
    %2834 = vmatpush1.msra.mxu0 0.0
    %2835 = vmatprep.subr.mxu0 0.0
    %2836 = vmatpush1.msra.mxu0 0.0
    %2837 = vmatprep.subr.mxu0 0.0
    %2838 = vmatpush1.msra.mxu0 0.0
    %2839 = vmatprep.subr.mxu0 0.0
    %2840 = vmatpush1.msra.mxu0 0.0
    %2841 = vmatprep.subr.mxu0 0.0
    %2842 = vmatpush1.msra.mxu0 0.0
    %2843 = vmatprep.subr.mxu0 0.0
    %2844 = vmatpush1.msra.mxu0 0.0
    %2845 = vmatprep.subr.mxu0 0.0
    %2846 = vmatpush1.msra.mxu0 0.0
    %2847 = vmatprep.subr.mxu0 0.0
    %2848 = vmatpush1.msra.mxu0 0.0
    %2849 = vmatprep.subr.mxu0 0.0
    %2850 = vmatpush1.msra.mxu0 0.0
    %2851 = vmatprep.subr.mxu0 0.0
    %2852 = vmatpush1.msra.mxu0 %v2137
    %2853 = vmatprep.subr.mxu0 0.0
    %2854 = vmatpush1.msra.mxu0 %v2136
    %2855 = vmatprep.subr.mxu0 0.0
    %2856 = vmatpush1.msra.mxu0 %v2135
    %2857 = vmatprep.subr.mxu0 0.0
    %2858 = vmatpush1.msra.mxu0 %v2134
    %2859 = vmatprep.subr.mxu0 0.0
    %2860 = vmatpush2.msra.mxu0 0.0
    %2861 = vmatprep.subr.mxu0 0.0
    %2862 = vmatpush2.msra.mxu0 0.0
    %2863 = vmatprep.subr.mxu0 0.0
    %2864 = vmatpush2.msra.mxu0 0.0
    %2865 = vmatprep.subr.mxu0 0.0
    %2866 = vmatpush2.msra.mxu0 0.0
    %2867 = vmatprep.subr.mxu0 0.0
    %2868 = vmatpush2.msra.mxu0 0.0
    %2869 = vmatprep.subr.mxu0 0.0
    %2870 = vmatpush2.msra.mxu0 0.0
    %2871 = vmatprep.subr.mxu0 0.0
    %2872 = vmatpush2.msra.mxu0 0.0
    %2873 = vmatprep.subr.mxu0 0.0
    %2874 = vmatpush2.msra.mxu0 0.0
    %2875 = vmatprep.subr.mxu0 0.0
    %2876 = vmatpush2.msra.mxu0 0.0
    %2877 = vmatprep.subr.mxu0 0.0
    %2878 = vmatpush2.msra.mxu0 0.0
    %2879 = vmatprep.subr.mxu0 0.0
    %2880 = vmatpush2.msra.mxu0 0.0
    %2881 = vmatprep.subr.mxu0 0.0
    %2882 = vmatpush2.msra.mxu0 0.0
    %2883 = vmatprep.subr.mxu0 0.0
    %2884 = vmatpush2.msra.mxu0 0.0
    %2885 = vmatprep.subr.mxu0 0.0
    %2886 = vmatpush2.msra.mxu0 0.0
    %2887 = vmatprep.subr.mxu0 0.0
    %2888 = vmatpush2.msra.mxu0 0.0
    %2889 = vmatprep.subr.mxu0 0.0
    %2890 = vmatpush2.msra.mxu0 0.0
    %2891 = vmatprep.mubr.f32.mxu0 0.0
    %2892 = vmatmul.mubr.f32.gmra.mxu0 %v2825
    %v2893 = vpop.f32.mrf.mxu0
    %v2894 = vadd.f32 0.0, %v2893
    %v2895 = vpop.f32.mrf.mxu0
    %2896 = vdwg.mxu0
    %v2897 = vadd.f32 %v2404, %v2894
    %v2898 = vmul.f32 %v2897, %v2484
    %v2899 = vtanh.pop %v2898
    %v2900 = vmul.f32 %v2899, %v2484
    %v2901 = vadd.f32 %v2900, %v2491
    %v2903 = vrot.slane %v2814, 6
    %v2905 = vmul.f32 %v2901, %v2903
    %2907 = vrot.lane.b32.xlu0 %v2901, 64
    %v2908 = vpop.permute.xlu0 %2907
    %v2910 = vmul.f32 %v2901, %v2908
    %2912 = vrot.lane.b32.xlu0 %v2910, 32
    %v2913 = vpop.permute.xlu0 %2912
    %v2915 = vadd.f32 %v2905, %v2913
    %v2916 = vtanh.pop %v2915
    %2918 = vrot.lane.b32.xlu0 %v2916, 64
    %v2919 = vpop.permute.xlu0 %2918
    %v2921 = vmul.f32 %v2901, %v2919
    %2923 = vrot.lane.b32.xlu0 %v2921, 32
    %v2924 = vpop.permute.xlu0 %2923
    %v2925 = vsel %vm39, %v2924, 0
    %2927 = vmatprep.subr.mxu0 0.0
    %2928 = vmatpush1.msra.mxu0 0.0
    %2929 = vmatprep.subr.mxu0 0.0
    %2930 = vmatpush1.msra.mxu0 0.0
    %2931 = vmatprep.subr.mxu0 0.0
    %2932 = vmatpush1.msra.mxu0 0.0
    %2933 = vmatprep.subr.mxu0 0.0
    %2934 = vmatpush1.msra.mxu0 0.0
    %2935 = vmatprep.subr.mxu0 0.0
    %2936 = vmatpush1.msra.mxu0 0.0
    %2937 = vmatprep.subr.mxu0 0.0
    %2938 = vmatpush1.msra.mxu0 0.0
    %2939 = vmatprep.subr.mxu0 0.0
    %2940 = vmatpush1.msra.mxu0 0.0
    %2941 = vmatprep.subr.mxu0 0.0
    %2942 = vmatpush1.msra.mxu0 0.0
    %2943 = vmatprep.subr.mxu0 0.0
    %2944 = vmatpush1.msra.mxu0 0.0
    %2945 = vmatprep.subr.mxu0 0.0
    %2946 = vmatpush1.msra.mxu0 0.0
    %2947 = vmatprep.subr.mxu0 0.0
    %2948 = vmatpush1.msra.mxu0 0.0
    %2949 = vmatprep.subr.mxu0 0.0
    %2950 = vmatpush1.msra.mxu0 0.0
    %2951 = vmatprep.subr.mxu0 0.0
    %2952 = vmatpush1.msra.mxu0 %v2137
    %2953 = vmatprep.subr.mxu0 0.0
    %2954 = vmatpush1.msra.mxu0 %v2136
    %2955 = vmatprep.subr.mxu0 0.0
    %2956 = vmatpush1.msra.mxu0 %v2135
    %2957 = vmatprep.subr.mxu0 0.0
    %2958 = vmatpush1.msra.mxu0 %v2134
    %2959 = vmatprep.subr.mxu0 0.0
    %2960 = vmatpush2.msra.mxu0 0.0
    %2961 = vmatprep.subr.mxu0 0.0
    %2962 = vmatpush2.msra.mxu0 0.0
    %2963 = vmatprep.subr.mxu0 0.0
    %2964 = vmatpush2.msra.mxu0 0.0
    %2965 = vmatprep.subr.mxu0 0.0
    %2966 = vmatpush2.msra.mxu0 0.0
    %2967 = vmatprep.subr.mxu0 0.0
    %2968 = vmatpush2.msra.mxu0 0.0
    %2969 = vmatprep.subr.mxu0 0.0
    %2970 = vmatpush2.msra.mxu0 0.0
    %2971 = vmatprep.subr.mxu0 0.0
    %2972 = vmatpush2.msra.mxu0 0.0
    %2973 = vmatprep.subr.mxu0 0.0
    %2974 = vmatpush2.msra.mxu0 0.0
    %2975 = vmatprep.subr.mxu0 0.0
    %2976 = vmatpush2.msra.mxu0 0.0
    %2977 = vmatprep.subr.mxu0 0.0
    %2978 = vmatpush2.msra.mxu0 0.0
    %2979 = vmatprep.subr.mxu0 0.0
    %2980 = vmatpush2.msra.mxu0 0.0
    %2981 = vmatprep.subr.mxu0 0.0
    %2982 = vmatpush2.msra.mxu0 0.0
    %2983 = vmatprep.subr.mxu0 0.0
    %2984 = vmatpush2.msra.mxu0 0.0
    %2985 = vmatprep.subr.mxu0 0.0
    %2986 = vmatpush2.msra.mxu0 0.0
    %2987 = vmatprep.subr.mxu0 0.0
    %2988 = vmatpush2.msra.mxu0 0.0
    %2989 = vmatprep.subr.mxu0 0.0
    %2990 = vmatpush2.msra.mxu0 0.0
    %2991 = vmatprep.mubr.f32.mxu0 0.0
    %2992 = vmatmul.mubr.f32.gmra.mxu0 %v2925
    %v2993 = vpop.f32.mrf.mxu0
    %v2994 = vadd.f32 0.0, %v2993
    %v2995 = vpop.f32.mrf.mxu0
    %2996 = vdwg.mxu0
    %v2998 = vrot.slane %v2994, 6
    %v3000 = vadd.f32 %v2404, %v2998
    %v3001 = vmul.f32 %v3000, %v2484
    %v3002 = vtanh.pop %v3001
    %v3003 = vmul.f32 %v3002, %v2484
    %v3004 = vadd.f32 %v3003, %v2491
    %v3006 = vrot.slane %v2915, 6
    %v3008 = vmul.f32 %v3004, %v3006
    %3010 = vrot.lane.b32.xlu0 %v3004, 64
    %v3011 = vpop.permute.xlu0 %3010
    %v3013 = vmul.f32 %v3004, %v3011
    %3015 = vrot.lane.b32.xlu0 %v3013, 32
    %v3016 = vpop.permute.xlu0 %3015
    %v3018 = vadd.f32 %v3008, %v3016
    %v3019 = vtanh.pop %v3018
    %3021 = vrot.lane.b32.xlu0 %v3019, 64
    %v3022 = vpop.permute.xlu0 %3021
    %v3024 = vmul.f32 %v3004, %v3022
    %v3026 = vrot.slane %v3024, 2
    %3027 = vrot.lane.b32.xlu0 %v3026, 32
    %v3028 = vpop.permute.xlu0 %3027
    %v3029 = vsel %vm39, %v3028, 0
    %3031 = vmatprep.subr.mxu0 0.0
    %3032 = vmatpush1.msra.mxu0 0.0
    %3033 = vmatprep.subr.mxu0 0.0
    %3034 = vmatpush1.msra.mxu0 0.0
    %3035 = vmatprep.subr.mxu0 0.0
    %3036 = vmatpush1.msra.mxu0 0.0
    %3037 = vmatprep.subr.mxu0 0.0
    %3038 = vmatpush1.msra.mxu0 0.0
    %3039 = vmatprep.subr.mxu0 0.0
    %3040 = vmatpush1.msra.mxu0 0.0
    %3041 = vmatprep.subr.mxu0 0.0
    %3042 = vmatpush1.msra.mxu0 0.0
    %3043 = vmatprep.subr.mxu0 0.0
    %3044 = vmatpush1.msra.mxu0 0.0
    %3045 = vmatprep.subr.mxu0 0.0
    %3046 = vmatpush1.msra.mxu0 0.0
    %3047 = vmatprep.subr.mxu0 0.0
    %3048 = vmatpush1.msra.mxu0 0.0
    %3049 = vmatprep.subr.mxu0 0.0
    %3050 = vmatpush1.msra.mxu0 0.0
    %3051 = vmatprep.subr.mxu0 0.0
    %3052 = vmatpush1.msra.mxu0 0.0
    %3053 = vmatprep.subr.mxu0 0.0
    %3054 = vmatpush1.msra.mxu0 0.0
    %3055 = vmatprep.subr.mxu0 0.0
    %3056 = vmatpush1.msra.mxu0 %v2137
    %3057 = vmatprep.subr.mxu0 0.0
    %3058 = vmatpush1.msra.mxu0 %v2136
    %3059 = vmatprep.subr.mxu0 0.0
    %3060 = vmatpush1.msra.mxu0 %v2135
    %3061 = vmatprep.subr.mxu0 0.0
    %3062 = vmatpush1.msra.mxu0 %v2134
    %3063 = vmatprep.subr.mxu0 0.0
    %3064 = vmatpush2.msra.mxu0 0.0
    %3065 = vmatprep.subr.mxu0 0.0
    %3066 = vmatpush2.msra.mxu0 0.0
    %3067 = vmatprep.subr.mxu0 0.0
    %3068 = vmatpush2.msra.mxu0 0.0
    %3069 = vmatprep.subr.mxu0 0.0
    %3070 = vmatpush2.msra.mxu0 0.0
    %3071 = vmatprep.subr.mxu0 0.0
    %3072 = vmatpush2.msra.mxu0 0.0
    %3073 = vmatprep.subr.mxu0 0.0
    %3074 = vmatpush2.msra.mxu0 0.0
    %3075 = vmatprep.subr.mxu0 0.0
    %3076 = vmatpush2.msra.mxu0 0.0
    %3077 = vmatprep.subr.mxu0 0.0
    %3078 = vmatpush2.msra.mxu0 0.0
    %3079 = vmatprep.subr.mxu0 0.0
    %3080 = vmatpush2.msra.mxu0 0.0
    %3081 = vmatprep.subr.mxu0 0.0
    %3082 = vmatpush2.msra.mxu0 0.0
    %3083 = vmatprep.subr.mxu0 0.0
    %3084 = vmatpush2.msra.mxu0 0.0
    %3085 = vmatprep.subr.mxu0 0.0
    %3086 = vmatpush2.msra.mxu0 0.0
    %3087 = vmatprep.subr.mxu0 0.0
    %3088 = vmatpush2.msra.mxu0 0.0
    %3089 = vmatprep.subr.mxu0 0.0
    %3090 = vmatpush2.msra.mxu0 0.0
    %3091 = vmatprep.subr.mxu0 0.0
    %3092 = vmatpush2.msra.mxu0 0.0
    %3093 = vmatprep.subr.mxu0 0.0
    %3094 = vmatpush2.msra.mxu0 0.0
    %3095 = vmatprep.mubr.f32.mxu0 0.0
    %3096 = vmatmul.mubr.f32.gmra.mxu0 %v3029
    %v3097 = vpop.f32.mrf.mxu0
    %v3098 = vadd.f32 0.0, %v3097
    %v3099 = vpop.f32.mrf.mxu0
    %3100 = vdwg.mxu0
    %v3102 = vrot.slane %v3098, 4
    %v3104 = vadd.f32 %v2404, %v3102
    %v3105 = vmul.f32 %v3104, %v2484
    %v3106 = vtanh.pop %v3105
    %v3107 = vmul.f32 %v3106, %v2484
    %v3108 = vadd.f32 %v3107, %v2491
    %v3110 = vrot.slane %v3018, 6
    %v3112 = vmul.f32 %v3108, %v3110
    %3114 = vrot.lane.b32.xlu0 %v3108, 64
    %v3115 = vpop.permute.xlu0 %3114
    %v3117 = vmul.f32 %v3108, %v3115
    %3119 = vrot.lane.b32.xlu0 %v3117, 32
    %v3120 = vpop.permute.xlu0 %3119
    %v3122 = vadd.f32 %v3112, %v3120
    %v3123 = vtanh.pop %v3122
    %3125 = vrot.lane.b32.xlu0 %v3123, 64
    %v3126 = vpop.permute.xlu0 %3125
    %v3128 = vmul.f32 %v3108, %v3126
    %v3130 = vrot.slane %v3128, 4
    %3131 = vrot.lane.b32.xlu0 %v3130, 32
    %v3132 = vpop.permute.xlu0 %3131
    %v3133 = vsel %vm39, %v3132, 0
    %3135 = vmatprep.subr.mxu0 0.0
    %3136 = vmatpush1.msra.mxu0 0.0
    %3137 = vmatprep.subr.mxu0 0.0
    %3138 = vmatpush1.msra.mxu0 0.0
    %3139 = vmatprep.subr.mxu0 0.0
    %3140 = vmatpush1.msra.mxu0 0.0
    %3141 = vmatprep.subr.mxu0 0.0
    %3142 = vmatpush1.msra.mxu0 0.0
    %3143 = vmatprep.subr.mxu0 0.0
    %3144 = vmatpush1.msra.mxu0 0.0
    %3145 = vmatprep.subr.mxu0 0.0
    %3146 = vmatpush1.msra.mxu0 0.0
    %3147 = vmatprep.subr.mxu0 0.0
    %3148 = vmatpush1.msra.mxu0 0.0
    %3149 = vmatprep.subr.mxu0 0.0
    %3150 = vmatpush1.msra.mxu0 0.0
    %3151 = vmatprep.subr.mxu0 0.0
    %3152 = vmatpush1.msra.mxu0 0.0
    %3153 = vmatprep.subr.mxu0 0.0
    %3154 = vmatpush1.msra.mxu0 0.0
    %3155 = vmatprep.subr.mxu0 0.0
    %3156 = vmatpush1.msra.mxu0 0.0
    %3157 = vmatprep.subr.mxu0 0.0
    %3158 = vmatpush1.msra.mxu0 0.0
    %3159 = vmatprep.subr.mxu0 0.0
    %3160 = vmatpush1.msra.mxu0 %v2137
    %3161 = vmatprep.subr.mxu0 0.0
    %3162 = vmatpush1.msra.mxu0 %v2136
    %3163 = vmatprep.subr.mxu0 0.0
    %3164 = vmatpush1.msra.mxu0 %v2135
    %3165 = vmatprep.subr.mxu0 0.0
    %3166 = vmatpush1.msra.mxu0 %v2134
    %3167 = vmatprep.subr.mxu0 0.0
    %3168 = vmatpush2.msra.mxu0 0.0
    %3169 = vmatprep.subr.mxu0 0.0
    %3170 = vmatpush2.msra.mxu0 0.0
    %3171 = vmatprep.subr.mxu0 0.0
    %3172 = vmatpush2.msra.mxu0 0.0
    %3173 = vmatprep.subr.mxu0 0.0
    %3174 = vmatpush2.msra.mxu0 0.0
    %3175 = vmatprep.subr.mxu0 0.0
    %3176 = vmatpush2.msra.mxu0 0.0
    %3177 = vmatprep.subr.mxu0 0.0
    %3178 = vmatpush2.msra.mxu0 0.0
    %3179 = vmatprep.subr.mxu0 0.0
    %3180 = vmatpush2.msra.mxu0 0.0
    %3181 = vmatprep.subr.mxu0 0.0
    %3182 = vmatpush2.msra.mxu0 0.0
    %3183 = vmatprep.subr.mxu0 0.0
    %3184 = vmatpush2.msra.mxu0 0.0
    %3185 = vmatprep.subr.mxu0 0.0
    %3186 = vmatpush2.msra.mxu0 0.0
    %3187 = vmatprep.subr.mxu0 0.0
    %3188 = vmatpush2.msra.mxu0 0.0
    %3189 = vmatprep.subr.mxu0 0.0
    %3190 = vmatpush2.msra.mxu0 0.0
    %3191 = vmatprep.subr.mxu0 0.0
    %3192 = vmatpush2.msra.mxu0 0.0
    %3193 = vmatprep.subr.mxu0 0.0
    %3194 = vmatpush2.msra.mxu0 0.0
    %3195 = vmatprep.subr.mxu0 0.0
    %3196 = vmatpush2.msra.mxu0 0.0
    %3197 = vmatprep.subr.mxu0 0.0
    %3198 = vmatpush2.msra.mxu0 0.0
    %3199 = vmatprep.mubr.f32.mxu0 0.0
    %3200 = vmatmul.mubr.f32.gmra.mxu0 %v3133
    %v3201 = vpop.f32.mrf.mxu0
    %v3202 = vadd.f32 0.0, %v3201
    %v3203 = vpop.f32.mrf.mxu0
    %3204 = vdwg.mxu0
    %v3206 = vrot.slane %v3202, 2
    %v3208 = vadd.f32 %v2404, %v3206
    %v3209 = vmul.f32 %v3208, %v2484
    %v3210 = vtanh.pop %v3209
    %v3211 = vmul.f32 %v3210, %v2484
    %v3212 = vadd.f32 %v3211, %v2491
    %v3214 = vrot.slane %v3122, 6
    %v3216 = vmul.f32 %v3212, %v3214
    %3218 = vrot.lane.b32.xlu0 %v3212, 64
    %v3219 = vpop.permute.xlu0 %3218
    %v3221 = vmul.f32 %v3212, %v3219
    %3223 = vrot.lane.b32.xlu0 %v3221, 32
    %v3224 = vpop.permute.xlu0 %3223
    %v3226 = vadd.f32 %v3216, %v3224
    %v3227 = vtanh.pop %v3226
    %3229 = vrot.lane.b32.xlu0 %v3227, 64
    %v3230 = vpop.permute.xlu0 %3229
    %v3232 = vmul.f32 %v3212, %v3230
    %v3234 = vmul.f32 %v2312, %v2512
    %v3236 = vrot.slane %v3232, 6
    %3237 = vrot.lane.b32.xlu0 %v3236, 32
    %v3238 = vpop.permute.xlu0 %3237
    %v3240 = vmul.f32 %v2400, %v3238
    %v3241 = vadd.f32 %v3234, %v3240
    %v3242 = vld [vmem:[%s3 + $0x120] sm:$0xff]
    %v3243 = vld [vmem:[%s3 + $0x128] sm:$0xff]
    %v3244 = vld [vmem:[%s3 + $0x130] sm:$0xff]
    %v3245 = vld [vmem:[%s3 + $0x138] sm:$0xff]
    %v3246 = vld [vmem:[%s3 + $0x140] sm:$0x1]
    %v3247 = vlaneseq
    %v3248 = vshrl.u32 %v3247, 7
    %v3249 = vsub.s32 0, %v3248
    %v3250 = vrot.slane %v3246, %v3249
    %v3252 = vsel %vm39, %v3241, 0
    %3254 = vmatprep.subr.mxu0 0.0
    %3255 = vmatpush1.msra.mxu0 0.0
    %3256 = vmatprep.subr.mxu0 0.0
    %3257 = vmatpush1.msra.mxu0 0.0
    %3258 = vmatprep.subr.mxu0 0.0
    %3259 = vmatpush1.msra.mxu0 0.0
    %3260 = vmatprep.subr.mxu0 0.0
    %3261 = vmatpush1.msra.mxu0 0.0
    %3262 = vmatprep.subr.mxu0 0.0
    %3263 = vmatpush1.msra.mxu0 0.0
    %3264 = vmatprep.subr.mxu0 0.0
    %3265 = vmatpush1.msra.mxu0 0.0
    %3266 = vmatprep.subr.mxu0 0.0
    %3267 = vmatpush1.msra.mxu0 0.0
    %3268 = vmatprep.subr.mxu0 0.0
    %3269 = vmatpush1.msra.mxu0 0.0
    %3270 = vmatprep.subr.mxu0 0.0
    %3271 = vmatpush1.msra.mxu0 0.0
    %3272 = vmatprep.subr.mxu0 0.0
    %3273 = vmatpush1.msra.mxu0 0.0
    %3274 = vmatprep.subr.mxu0 0.0
    %3275 = vmatpush1.msra.mxu0 0.0
    %3276 = vmatprep.subr.mxu0 0.0
    %3277 = vmatpush1.msra.mxu0 0.0
    %3278 = vmatprep.subr.mxu0 0.0
    %3279 = vmatpush1.msra.mxu0 %v3245
    %3280 = vmatprep.subr.mxu0 0.0
    %3281 = vmatpush1.msra.mxu0 %v3244
    %3282 = vmatprep.subr.mxu0 0.0
    %3283 = vmatpush1.msra.mxu0 %v3243
    %3284 = vmatprep.subr.mxu0 0.0
    %3285 = vmatpush1.msra.mxu0 %v3242
    %3286 = vmatprep.subr.mxu0 0.0
    %3287 = vmatpush2.msra.mxu0 0.0
    %3288 = vmatprep.subr.mxu0 0.0
    %3289 = vmatpush2.msra.mxu0 0.0
    %3290 = vmatprep.subr.mxu0 0.0
    %3291 = vmatpush2.msra.mxu0 0.0
    %3292 = vmatprep.subr.mxu0 0.0
    %3293 = vmatpush2.msra.mxu0 0.0
    %3294 = vmatprep.subr.mxu0 0.0
    %3295 = vmatpush2.msra.mxu0 0.0
    %3296 = vmatprep.subr.mxu0 0.0
    %3297 = vmatpush2.msra.mxu0 0.0
    %3298 = vmatprep.subr.mxu0 0.0
    %3299 = vmatpush2.msra.mxu0 0.0
    %3300 = vmatprep.subr.mxu0 0.0
    %3301 = vmatpush2.msra.mxu0 0.0
    %3302 = vmatprep.subr.mxu0 0.0
    %3303 = vmatpush2.msra.mxu0 0.0
    %3304 = vmatprep.subr.mxu0 0.0
    %3305 = vmatpush2.msra.mxu0 0.0
    %3306 = vmatprep.subr.mxu0 0.0
    %3307 = vmatpush2.msra.mxu0 0.0
    %3308 = vmatprep.subr.mxu0 0.0
    %3309 = vmatpush2.msra.mxu0 0.0
    %3310 = vmatprep.subr.mxu0 0.0
    %3311 = vmatpush2.msra.mxu0 0.0
    %3312 = vmatprep.subr.mxu0 0.0
    %3313 = vmatpush2.msra.mxu0 0.0
    %3314 = vmatprep.subr.mxu0 0.0
    %3315 = vmatpush2.msra.mxu0 0.0
    %3316 = vmatprep.subr.mxu0 0.0
    %3317 = vmatpush2.msra.mxu0 0.0
    %3318 = vmatprep.mubr.f32.mxu0 0.0
    %3319 = vmatmul.mubr.f32.gmra.mxu0 %v3252
    %v3320 = vpop.f32.mrf.mxu0
    %v3321 = vadd.f32 %v3250, %v3320
    %v3322 = vpop.f32.mrf.mxu0
    %3323 = vdwg.mxu0
    %3324 = vst [vmem:[#allocation5] sm:$0x3] %v3321
    // Predicated region
    $region22: #{forward.1} parent=1 // pred_check
      _
    $region23: #{forward.1} parent=1 // pred_check_branch
      %3326 = sbr.rel (0) target = $region25
    $region24: #{forward.1} parent=1 // pred_region
      %s3328 = ssub.s32 32, 32
      %3329 = vsyncadd [#allocation4], %s3328
      %s3331 = sshll.u32 [#allocation5], 4
      %s3332 = int_to_ptr.vmem [resolvable:$true] %s3331
      %3334 = dma.vmem_to_hbm [thread:$0]  %s3332, 32, %s4, [#allocation4]
    $region25: #{forward.1} parent=1 // pred_fallthru
      _
    // Predicated region
    $region26: #{forward.1} parent=1 // pred_check
      _
    $region27: #{forward.1} parent=1 // pred_check_branch
      %3336 = sbr.rel (0) target = $region29
    $region28: #{forward.1} parent=1 // pred_region
      %s3338 = ssub.s32 32, 32
      %3339 = vsyncadd [#allocation7], %s3338
      %s3341 = sshll.u32 [#allocation6], 4
      %s3342 = int_to_ptr.vmem [resolvable:$true] %s3341
      %3344 = dma.vmem_to_hbm [thread:$0]  %s3342, 32, %s5, [#allocation7]
    $region29: #{forward.1} parent=1 // pred_fallthru
      _
    // Predicated region
    $region30: #{forward.1} parent=1 // pred_check
      _
    $region31: #{forward.1} parent=1 // pred_check_branch
      %3346 = sbr.rel (0) target = $region33
    $region32: #{forward.1} parent=1 // pred_region
      %3347 = dma.done [#allocation4], 32
    $region33: #{forward.1} parent=1 // pred_fallthru
      _
    // Predicated region
    $region34: #{forward.1} parent=1 // pred_check
      _
    $region35: #{forward.1} parent=1 // pred_check_branch
      %3349 = sbr.rel (0) target = $region37
    $region36: #{forward.1} parent=1 // pred_region
      %3350 = dma.done [#allocation7], 32
    $region37: #{forward.1} parent=1 // pred_fallthru
      _
    %3351 = vsyncpa [#allocation3], 1
    %3352 = vsyncpa [#allocation4], 1
    %3353 = vsyncpa [#allocation7], 1

</llo_original>
